<compile_context>
chip_gen: v7x
topology: tpu7x:2x2x1
jax: 0.10.0
libtpu: 0.0.40
codegen_flags: <defaults>
</compile_context>

<pallas_src>
import functools

import jax
import jax.numpy as jnp
from jax.experimental import pallas as pl
from jax.experimental.pallas import tpu as pltpu

LANE = 128  # TPU lane width; channel dim is padded to a multiple of this.


def _round_up(x, m):
    return (x + m - 1) // m * m


def _pick_tile_h(h, w, target_rows=1024):
    """Largest th with h % th == 0, (th*w) % 8 == 0 and th*w <= target_rows."""
    legal = [th for th in range(1, h + 1) if h % th == 0 and (th * w) % 8 == 0]
    small = [th for th in legal if th * w <= target_rows]
    if small:
        return max(small)
    if legal:
        return min(legal)
    # Whole image: a block equal to the full dim is always a legal layout.
    return h


def _conv3x3_residual_kernel(xpad_ref, w_ref, o_ref, slab_ref, acc_ref, *,
                             tile_h, width):
    """One (image, row-tile) grid step: 3x3 same-conv (no bias) + residual add.

    xpad_ref : (1, H+2, W+2, Cp) bf16  halo+lane padded input, resident per image
    w_ref    : (3, 3*Cp, Cp)     bf16  weights, dw taps packed along K, resident
    o_ref    : (1, tile_h*W, Cp) bf16  lane-dense flattened output tile
    slab_ref : (tile_h+2, W, 3*Cp) bf16 VMEM scratch (3 dw-shifted slabs)
    acc_ref  : (tile_h*W, Cp)    f32  VMEM accumulator
    """
    cp = o_ref.shape[-1]
    rows = tile_h * width
    r0 = pl.multiple_of(pl.program_id(1) * tile_h, tile_h)

    # Stage the 3 dw-shifted slabs once per row tile: 3 relayout copies instead
    # of 9 unaligned per-tap slices, and no casts (input is already bf16).
    for dw in range(3):
        slab_ref[:, :, pl.ds(dw * cp, cp)] = (
            xpad_ref[0, pl.ds(r0, tile_h + 2), pl.ds(dw, width), :])

    # 3x3 conv as 3 MXU matmuls with K = 3*Cp (dw taps fused into the
    # contraction dim); f32 accumulation in VMEM scratch.
    for dh in range(3):
        patch = slab_ref[pl.ds(dh, tile_h), :, :].reshape(rows, 3 * cp)
        contrib = jnp.dot(patch, w_ref[dh], preferred_element_type=jnp.float32)
        if dh == 0:
            acc_ref[...] = contrib
        else:
            acc_ref[...] += contrib

    # Residual branch == interior of the padded input (MSRB stack is identity
    # for now).  It is already sitting in the dw=1 slab -> no extra stream and
    # no unaligned re-read.
    res = slab_ref[pl.ds(1, tile_h), :, pl.ds(cp, cp)].reshape(rows, cp)
    o_ref[0] = (acc_ref[...] + res.astype(jnp.float32)).astype(o_ref.dtype)


def conv3x3_plus_residual(xpad, w_packed, height, width, tile_h):
    """out[n, h*W+w, :] = xpad[n, 1+h, 1+w, :] + conv3x3(xpad)[n, h, w, :]."""
    n, hp, wp, cp = xpad.shape
    assert hp == height + 2 and wp == width + 2
    assert height % tile_h == 0
    n_row_tiles = height // tile_h
    rows = tile_h * width

    kernel = functools.partial(_conv3x3_residual_kernel,
                               tile_h=tile_h, width=width)

    # VMEM budget from the actual buffers (double-buffered pipelined operands),
    # plus headroom for Mosaic internal scratch; stays well under v7x's 64 MiB.
    vmem_bytes = (2 * hp * wp * cp * 2            # resident bf16 image
                  + 2 * 3 * 3 * cp * cp * 2       # packed weights
                  + 2 * rows * cp * 2             # bf16 output tile
                  + (tile_h + 2) * width * 3 * cp * 2   # slab scratch
                  + rows * cp * 4)                # f32 accumulator
    vmem_limit = min(max(int(vmem_bytes * 1.5) + (8 << 20), 32 << 20), 100 << 20)

    return pl.pallas_call(
        kernel,
        out_shape=jax.ShapeDtypeStruct((n, height * width, cp), jnp.bfloat16),
        grid=(n, n_row_tiles),
        in_specs=[
            # Padded image: fetched once per image, resident across row tiles.
            pl.BlockSpec((1, hp, wp, cp), lambda i, j: (i, 0, 0, 0)),
            # Packed weights: constant index map -> resident, no re-DMA.
            pl.BlockSpec((3, 3 * cp, cp), lambda i, j: (0, 0, 0)),
        ],
        out_specs=pl.BlockSpec((1, rows, cp), lambda i, j: (i, j, 0)),
        scratch_shapes=[
            pltpu.VMEM((tile_h + 2, width, 3 * cp), jnp.bfloat16),  # dw slabs
            pltpu.VMEM((rows, cp), jnp.float32),                    # accumulator
        ],
        compiler_params=pltpu.CompilerParams(
            # Batch-only megacore sharding: avoids each TC holding its own copy
            # of the resident image on v7x.
            dimension_semantics=("parallel", "arbitrary"),
            vmem_limit_bytes=vmem_limit),
    )(xpad, w_packed)


def init_params(key, num_features):
    """Synthetic parameters matching nn.Conv2d(C, C, 3, padding=1, bias=False)."""
    cp = _round_up(num_features, LANE)
    w_oihw = 0.05 * jax.random.normal(
        key, (num_features, num_features, 3, 3), dtype=jnp.float32)
    w_hwio = jnp.transpose(w_oihw, (2, 3, 1, 0))            # (3, 3, Cin, Cout)
    pad = cp - num_features
    w_padded = jnp.pad(w_hwio, ((0, 0), (0, 0), (0, pad), (0, pad)))
    # Pack the 3 dw taps along the contraction dim -> (3, 3*Cp, Cp) so each dh
    # of the conv is a single K=3*Cp MXU matmul; pre-cast to bf16 once.
    w_packed = w_padded.reshape(3, 3 * cp, cp).astype(jnp.bfloat16)
    return {
        "conv_out_oihw": w_oihw,          # PyTorch layout (reference conv)
        "conv_out_packed": w_packed,      # kernel layout
    }


def residual_recurrent_group_forward(x_nchw, params, number_msrb_blocks=2):
    """JAX/Pallas equivalent of ResidualRecurrentGroup.forward (NCHW in/out)."""
    # TODO(synk): apply `number_msrb_blocks` MultiScaleResidualBlocks here once
    #             that module's definition is available (fused into the kernel).
    del number_msrb_blocks
    n, c, h, w = x_nchw.shape
    cp = _round_up(c, LANE)
    th = _pick_tile_h(h, w)

    x = jnp.transpose(x_nchw, (0, 2, 3, 1))                    # NCHW -> NHWC
    # Single fused pad (+1 spatial halo, zero lane-pad to Cp) stored in bf16:
    # halves HBM traffic vs f32 and removes all in-kernel casts.
    xpad = jnp.pad(x.astype(jnp.bfloat16),
                   ((0, 0), (1, 1), (1, 1), (0, cp - c)))

    out_flat = conv3x3_plus_residual(xpad, params["conv_out_packed"], h, w, th)
    # Epilogue (fused under jit): drop lane pad, back to input dtype, NCHW.
    out = out_flat.reshape(n, h, w, cp)[..., :c].astype(x_nchw.dtype)
    return jnp.transpose(out, (0, 3, 1, 2))                    # NHWC -> NCHW


if __name__ == "__main__":
    num_features = 4
    batch, height, width = 2, 16, 16

    key = jax.random.PRNGKey(0)
    k_x, k_w = jax.random.split(key)
    x = jax.random.normal(k_x, (batch, num_features, height, width),
                          dtype=jnp.float32)
    params = init_params(k_w, num_features)

    fwd = jax.jit(functools.partial(residual_recurrent_group_forward,
                                    number_msrb_blocks=2))
    out = jax.block_until_ready(fwd(x, params))

    # Pure-JAX reference for the implemented path: x + conv3x3(x).
    ref_conv = jax.lax.conv_general_dilated(
        x, params["conv_out_oihw"], window_strides=(1, 1), padding="SAME",
        dimension_numbers=("NCHW", "OIHW", "NCHW"))
    ref = x + ref_conv

    assert out.shape == x.shape and out.dtype == x.dtype
    # bf16 activations/weights (f32 accumulation) vs f32 reference.
    assert jnp.allclose(out, ref, rtol=2e-2, atol=2e-2), "mismatch vs reference"
    print("KERNEL_OK")
</pallas_src>

<mosaic_0001>
module attributes {stable_mosaic.version = 11 : i64} {
  func.func @_conv3x3_residual_kernel(%arg0: i32, %arg1: i32, %arg2: memref<1x18x18x128xbf16, #tpu.memory_space<vmem>>, %arg3: memref<3x384x128xbf16, #tpu.memory_space<vmem>>, %arg4: memref<1x256x128xbf16, #tpu.memory_space<vmem>>, %arg5: memref<18x16x384xbf16, #tpu.memory_space<vmem>>, %arg6: memref<256x128xf32, #tpu.memory_space<vmem>>) attributes {dimension_semantics = [#tpu.dimension_semantics<parallel>, #tpu.dimension_semantics<arbitrary>], iteration_bounds = array<i64: 2, 1>, scalar_prefetch = 0 : i64, scratch_operands = 2 : i64, tpu.core_type = #tpu.core_type<tc>, window_params = [{transform_indices = @transform_0, window_bounds = array<i64: 1, 18, 18, 128>}, {pipeline_mode = #tpu.pipeline_mode<synchronous>, transform_indices = @transform_1, window_bounds = array<i64: 3, 384, 128>}, {transform_indices = @transform_2, window_bounds = array<i64: 1, 256, 128>}]} {
    %c16_i32 = arith.constant 16 : i32
    %0 = arith.muli %arg1, %c16_i32 : i32
    %1 = tpu.assume_multiple %0, 16 : i32
    %c0 = arith.constant 0 : index
    %2 = arith.index_cast %1 : i32 to index
    %c0_0 = arith.constant 0 : index
    %c0_1 = arith.constant 0 : index
    %3 = vector.load %arg2[%c0, %2, %c0_0, %c0_1] : memref<1x18x18x128xbf16, #tpu.memory_space<vmem>>, vector<1x18x16x128xbf16>
    %4 = vector.shape_cast %3 : vector<1x18x16x128xbf16> to vector<18x16x128xbf16>
    %c0_2 = arith.constant 0 : index
    %c0_3 = arith.constant 0 : index
    %c0_4 = arith.constant 0 : index
    %5 = vector.load %arg5[%c0_2, %c0_3, %c0_4] : memref<18x16x384xbf16, #tpu.memory_space<vmem>>, vector<18x16x128xbf16>
    tpu.vector_store %arg5[%c0_2, %c0_3, %c0_4], %4 {strides = array<i32>} : memref<18x16x384xbf16, #tpu.memory_space<vmem>>, vector<18x16x128xbf16>,
    %c0_5 = arith.constant 0 : index
    %6 = arith.index_cast %1 : i32 to index
    %c1 = arith.constant 1 : index
    %c0_6 = arith.constant 0 : index
    %7 = vector.load %arg2[%c0_5, %6, %c1, %c0_6] : memref<1x18x18x128xbf16, #tpu.memory_space<vmem>>, vector<1x18x16x128xbf16>
    %8 = vector.shape_cast %7 : vector<1x18x16x128xbf16> to vector<18x16x128xbf16>
    %c0_7 = arith.constant 0 : index
    %c0_8 = arith.constant 0 : index
    %c128 = arith.constant 128 : index
    %9 = vector.load %arg5[%c0_7, %c0_8, %c128] : memref<18x16x384xbf16, #tpu.memory_space<vmem>>, vector<18x16x128xbf16>
    tpu.vector_store %arg5[%c0_7, %c0_8, %c128], %8 {strides = array<i32>} : memref<18x16x384xbf16, #tpu.memory_space<vmem>>, vector<18x16x128xbf16>,
    %c0_9 = arith.constant 0 : index
    %10 = arith.index_cast %1 : i32 to index
    %c2 = arith.constant 2 : index
    %c0_10 = arith.constant 0 : index
    %11 = vector.load %arg2[%c0_9, %10, %c2, %c0_10] : memref<1x18x18x128xbf16, #tpu.memory_space<vmem>>, vector<1x18x16x128xbf16>
    %12 = vector.shape_cast %11 : vector<1x18x16x128xbf16> to vector<18x16x128xbf16>
    %c0_11 = arith.constant 0 : index
    %c0_12 = arith.constant 0 : index
    %c256 = arith.constant 256 : index
    %13 = vector.load %arg5[%c0_11, %c0_12, %c256] : memref<18x16x384xbf16, #tpu.memory_space<vmem>>, vector<18x16x128xbf16>
    tpu.vector_store %arg5[%c0_11, %c0_12, %c256], %12 {strides = array<i32>} : memref<18x16x384xbf16, #tpu.memory_space<vmem>>, vector<18x16x128xbf16>,
    %c0_13 = arith.constant 0 : index
    %c0_14 = arith.constant 0 : index
    %c0_15 = arith.constant 0 : index
    %14 = vector.load %arg5[%c0_13, %c0_14, %c0_15] : memref<18x16x384xbf16, #tpu.memory_space<vmem>>, vector<16x16x384xbf16>
    %15 = vector.shape_cast %14 : vector<16x16x384xbf16> to vector<256x384xbf16>
    %c0_16 = arith.constant 0 : index
    %c0_17 = arith.constant 0 : index
    %c0_18 = arith.constant 0 : index
    %16 = vector.load %arg3[%c0_16, %c0_17, %c0_18] : memref<3x384x128xbf16, #tpu.memory_space<vmem>>, vector<1x384x128xbf16>
    %17 = vector.shape_cast %16 : vector<1x384x128xbf16> to vector<384x128xbf16>
    %cst = arith.constant dense<0.000000e+00> : vector<256x128xf32>
    %18 = tpu.matmul %15, %17, %cst {dimension_numbers = #tpu.dot_dimension_numbers<[1], [0], [0], [1], [0, 0, 1, 1], [], []>} : vector<256x384xbf16>, vector<384x128xbf16>, vector<256x128xf32> -> vector<256x128xf32>
    %c0_19 = arith.constant 0 : index
    %c0_20 = arith.constant 0 : index
    %19 = vector.load %arg6[%c0_19, %c0_20] : memref<256x128xf32, #tpu.memory_space<vmem>>, vector<256x128xf32>
    tpu.vector_store %arg6[%c0_19, %c0_20], %18 {strides = array<i32>} : memref<256x128xf32, #tpu.memory_space<vmem>>, vector<256x128xf32>,
    %c1_21 = arith.constant 1 : index
    %c0_22 = arith.constant 0 : index
    %c0_23 = arith.constant 0 : index
    %20 = vector.load %arg5[%c1_21, %c0_22, %c0_23] : memref<18x16x384xbf16, #tpu.memory_space<vmem>>, vector<16x16x384xbf16>
    %21 = vector.shape_cast %20 : vector<16x16x384xbf16> to vector<256x384xbf16>
    %c1_24 = arith.constant 1 : index
    %c0_25 = arith.constant 0 : index
    %c0_26 = arith.constant 0 : index
    %22 = vector.load %arg3[%c1_24, %c0_25, %c0_26] : memref<3x384x128xbf16, #tpu.memory_space<vmem>>, vector<1x384x128xbf16>
    %23 = vector.shape_cast %22 : vector<1x384x128xbf16> to vector<384x128xbf16>
    %cst_27 = arith.constant dense<0.000000e+00> : vector<256x128xf32>
    %24 = tpu.matmul %21, %23, %cst_27 {dimension_numbers = #tpu.dot_dimension_numbers<[1], [0], [0], [1], [0, 0, 1, 1], [], []>} : vector<256x384xbf16>, vector<384x128xbf16>, vector<256x128xf32> -> vector<256x128xf32>
    %c0_28 = arith.constant 0 : index
    %c0_29 = arith.constant 0 : index
    %25 = vector.load %arg6[%c0_28, %c0_29] : memref<256x128xf32, #tpu.memory_space<vmem>>, vector<256x128xf32>
    %26 = arith.addf %25, %24 : vector<256x128xf32>
    %c0_30 = arith.constant 0 : index
    %c0_31 = arith.constant 0 : index
    %27 = vector.load %arg6[%c0_30, %c0_31] : memref<256x128xf32, #tpu.memory_space<vmem>>, vector<256x128xf32>
    tpu.vector_store %arg6[%c0_30, %c0_31], %26 {strides = array<i32>} : memref<256x128xf32, #tpu.memory_space<vmem>>, vector<256x128xf32>,
    %c2_32 = arith.constant 2 : index
    %c0_33 = arith.constant 0 : index
    %c0_34 = arith.constant 0 : index
    %28 = vector.load %arg5[%c2_32, %c0_33, %c0_34] : memref<18x16x384xbf16, #tpu.memory_space<vmem>>, vector<16x16x384xbf16>
    %29 = vector.shape_cast %28 : vector<16x16x384xbf16> to vector<256x384xbf16>
    %c2_35 = arith.constant 2 : index
    %c0_36 = arith.constant 0 : index
    %c0_37 = arith.constant 0 : index
    %30 = vector.load %arg3[%c2_35, %c0_36, %c0_37] : memref<3x384x128xbf16, #tpu.memory_space<vmem>>, vector<1x384x128xbf16>
    %31 = vector.shape_cast %30 : vector<1x384x128xbf16> to vector<384x128xbf16>
    %cst_38 = arith.constant dense<0.000000e+00> : vector<256x128xf32>
    %32 = tpu.matmul %29, %31, %cst_38 {dimension_numbers = #tpu.dot_dimension_numbers<[1], [0], [0], [1], [0, 0, 1, 1], [], []>} : vector<256x384xbf16>, vector<384x128xbf16>, vector<256x128xf32> -> vector<256x128xf32>
    %c0_39 = arith.constant 0 : index
    %c0_40 = arith.constant 0 : index
    %33 = vector.load %arg6[%c0_39, %c0_40] : memref<256x128xf32, #tpu.memory_space<vmem>>, vector<256x128xf32>
    %34 = arith.addf %33, %32 : vector<256x128xf32>
    %c0_41 = arith.constant 0 : index
    %c0_42 = arith.constant 0 : index
    %35 = vector.load %arg6[%c0_41, %c0_42] : memref<256x128xf32, #tpu.memory_space<vmem>>, vector<256x128xf32>
    tpu.vector_store %arg6[%c0_41, %c0_42], %34 {strides = array<i32>} : memref<256x128xf32, #tpu.memory_space<vmem>>, vector<256x128xf32>,
    %c1_43 = arith.constant 1 : index
    %c0_44 = arith.constant 0 : index
    %c128_45 = arith.constant 128 : index
    %36 = vector.load %arg5[%c1_43, %c0_44, %c128_45] : memref<18x16x384xbf16, #tpu.memory_space<vmem>>, vector<16x16x128xbf16>
    %37 = vector.shape_cast %36 : vector<16x16x128xbf16> to vector<256x128xbf16>
    %c0_46 = arith.constant 0 : index
    %c0_47 = arith.constant 0 : index
    %38 = vector.load %arg6[%c0_46, %c0_47] : memref<256x128xf32, #tpu.memory_space<vmem>>, vector<256x128xf32>
    %39 = arith.extf %37 : vector<256x128xbf16> to vector<256x128xf32>
    %40 = arith.addf %38, %39 : vector<256x128xf32>
    %41 = arith.truncf %40 : vector<256x128xf32> to vector<256x128xbf16>
    %c0_48 = arith.constant 0 : index
    %c0_49 = arith.constant 0 : index
    %c0_50 = arith.constant 0 : index
    %42 = vector.load %arg4[%c0_48, %c0_49, %c0_50] : memref<1x256x128xbf16, #tpu.memory_space<vmem>>, vector<1x256x128xbf16>
    %43 = vector.shape_cast %42 : vector<1x256x128xbf16> to vector<256x128xbf16>
    %44 = vector.shape_cast %41 : vector<256x128xbf16> to vector<1x256x128xbf16>
    tpu.vector_store %arg4[%c0_48, %c0_49, %c0_50], %44 {strides = array<i32>} : memref<1x256x128xbf16, #tpu.memory_space<vmem>>, vector<1x256x128xbf16>,
    return
  }
  func.func @transform_0(%arg0: i32, %arg1: i32) -> (i32, i32, i32, i32) {
    %c0_i32 = arith.constant 0 : i32
    %c0_i32_0 = arith.constant 0 : i32
    %c0_i32_1 = arith.constant 0 : i32
    %c0_i32_2 = arith.constant 0 : i32
    return %arg0, %c0_i32, %c0_i32_0, %c0_i32_1 : i32, i32, i32, i32
  }
  func.func @transform_1(%arg0: i32, %arg1: i32) -> (i32, i32, i32) {
    %c0_i32 = arith.constant 0 : i32
    %c0_i32_0 = arith.constant 0 : i32
    %c0_i32_1 = arith.constant 0 : i32
    %c0_i32_2 = arith.constant 0 : i32
    return %c0_i32, %c0_i32_0, %c0_i32_1 : i32, i32, i32
  }
  func.func @transform_2(%arg0: i32, %arg1: i32) -> (i32, i32, i32) {
    %c0_i32 = arith.constant 0 : i32
    %c0_i32_0 = arith.constant 0 : i32
    return %arg0, %arg1, %c0_i32 : i32, i32, i32
  }
}

</mosaic_0001>

<llo_original>
// kernel: residual_recurrent_group_forward.1
$region0: #{residual_recurrent_group_forward.1}
  #allocation0 [shape = 'u32[]', space=smem, size = 0x4, offset = 0x4, fixed_abs, tag = 'smem constant byte address 0x4 - core index']
  #allocation1 [shape = 'u32[144,128]{1,0:T(1,128)}', space=vmem, size = 0x12000, scoped, tag = 'internal scratch']
  #allocation2 [shape = 'bf16[18,16,384]{2,1,0:T(16,128)(2,1)}', space=vmem, size = 0x36000, scoped, tag = 'scratch operand']
  #allocation3 [shape = 'f32[256,128]{1,0:T(8,128)}', space=vmem, size = 0x20000, scoped, tag = 'scratch operand']
  %s0 = inlined_call_operand.vmem [shape: bf16[2,18,18,128], index: 0, kind: input, shape index: {}]
  %s1 = inlined_call_operand.vmem [shape: bf16[3,384,128], index: 1, kind: input, shape index: {}]
  %s2 = inlined_call_operand.vmem [shape: bf16[2,256,128], index: 2, kind: output, shape index: {}]
  %s3 = sld [smem:[#allocation0]]
  $region41: #{residual_recurrent_group_forward.1} parent=0
    _
  %s5 = ssub.s32 1, %s3
  %s6 = scalar_select 0, %s5, %s3
  loop: start=0, step=1, limit=4
  $region2: #{residual_recurrent_group_forward.1} parent=0 // loop_pre_header
    _
  $region3: #{residual_recurrent_group_forward.1} parent=0 // loop_header
    %s8 = sphi 0, %s12
    %p9 = scmp.ge.s32.totalorder %s8, 4
    %s15 = sphi 0, %s27
    %s16 = sphi 0, %s23
    %s17 = sphi 0, %s15
    %s18 = sphi 0, %s16
    %s19 = sphi 0, %s17
    %s20 = sphi 0, %s18
    %s30 = sphi 0, %s32
    %s33 = sphi 0, %s30
    %s34 = sphi 0, %s33
    %s50 = sphi 0, %s34
    %s54 = sphi 0, %s54
    %s56 = sphi 0, %s54
    %s57 = sphi 0, %s56
    %s71 = sphi 0, %s57
    %s79 = sphi 0, %s81
    %s82 = sphi 0, %s79
    %s83 = sphi 0, %s82
    %s99 = sphi 0, %s83
  $region4: #{residual_recurrent_group_forward.1} parent=0 // loop_header_branch
    %11 = sbr.rel (%p9) target = $region8
  $region5: #{residual_recurrent_group_forward.1} parent=0 // loop_body
    %s13 = ssub.s32 %s8, 1
    %s14 = ssub.s32 %s8, 2
    %s21 = sadd.s32 1, %s16
    %p22 = scmp.ge.s32.totalorder %s21, 1
    %s23 = scalar_select %p22, 0, %s21
    %s24 = sadd.s32 1, %s15
    %s25 = scalar_select %p22, %s24, %s15
    %p26 = scmp.ge.s32.totalorder %s25, 2
    %s27 = scalar_select %p26, 0, %s25
    %s28 = ssub.s32 %s15, %s27
    %p29 = scmp.eq.s32.totalorder %s28, 0
    %s31 = sadd.s32 %s30, 1
    %s32 = scalar_select %p29, %s30, %s31
    %p35 = pneg %p29
    %p36 = scmp.eq.s32.totalorder %s8, 1
    %p37 = por %p35, %p36
    %p38 = scmp.ne.s32.totalorder %s30, %s33
    %p39 = scmp.eq.s32.totalorder %s8, 0
    %p40 = por %p38, %p39
    %p41 = scmp.ne.s32.totalorder %s30, %s33
    %p42 = scmp.eq.s32.totalorder %s13, 1
    %p43 = por %p41, %p42
    %p44 = scmp.ne.s32.totalorder %s33, %s34
    %p45 = scmp.eq.s32.totalorder %s13, 0
    %p46 = por %p44, %p45
    %p47 = scmp.ne.s32.totalorder %s33, %s34
    %p48 = scmp.eq.s32.totalorder %s14, 1
    %p49 = por %p47, %p48
    %p51 = scmp.ne.s32.totalorder %s34, %s50
    %p52 = scmp.eq.s32.totalorder %s14, 0
    %p53 = por %p51, %p52
    %s55 = sadd.s32 %s54, 1
    %p58 = scmp.eq.s32.totalorder %s8, 1
    %p59 = scmp.ne.s32.totalorder %s54, %s56
    %p60 = scmp.eq.s32.totalorder %s8, 0
    %p61 = por %p59, %p60
    %p62 = scmp.ne.s32.totalorder %s54, %s56
    %p63 = scmp.eq.s32.totalorder %s13, 1
    %p64 = por %p62, %p63
    %p65 = scmp.ne.s32.totalorder %s56, %s57
    %p66 = scmp.eq.s32.totalorder %s13, 0
    %p67 = por %p65, %p66
    %p68 = scmp.ne.s32.totalorder %s56, %s57
    %p69 = scmp.eq.s32.totalorder %s14, 1
    %p70 = por %p68, %p69
    %p72 = scmp.ne.s32.totalorder %s57, %s71
    %p73 = scmp.eq.s32.totalorder %s14, 0
    %p74 = por %p72, %p73
    %s75 = ssub.s32 %s15, %s27
    %s76 = ssub.s32 %s16, %s23
    %s77 = sor.u32 %s75, %s76
    %p78 = scmp.eq.s32.totalorder %s77, 0
    %s80 = sadd.s32 %s79, 1
    %s81 = scalar_select %p78, %s79, %s80
    %p84 = pneg %p78
    %p85 = scmp.eq.s32.totalorder %s8, 1
    %p86 = por %p84, %p85
    %p87 = scmp.ne.s32.totalorder %s79, %s82
    %p88 = scmp.eq.s32.totalorder %s8, 0
    %p89 = por %p87, %p88
    %p90 = scmp.ne.s32.totalorder %s79, %s82
    %p91 = scmp.eq.s32.totalorder %s13, 1
    %p92 = por %p90, %p91
    %p93 = scmp.ne.s32.totalorder %s82, %s83
    %p94 = scmp.eq.s32.totalorder %s13, 0
    %p95 = por %p93, %p94
    %p96 = scmp.ne.s32.totalorder %s82, %s83
    %p97 = scmp.eq.s32.totalorder %s14, 1
    %p98 = por %p96, %p97
    %p100 = scmp.ne.s32.totalorder %s83, %s99
    %p101 = scmp.eq.s32.totalorder %s14, 0
    %p102 = por %p100, %p101
    %p103 = scmp.le.s32.totalorder 1, %s8
    %p104 = scmp.lt.s32.totalorder %s8, 3
    %p105 = pnand %p103, %p104
    %p106 = pneg %p105
    // Predicated region
    $region9: #{residual_recurrent_group_forward.1} parent=5 // pred_check
      _
    $region10: #{residual_recurrent_group_forward.1} parent=5 // pred_check_branch
      %108 = sbr.rel (%p105) target = $region12
    $region11: #{residual_recurrent_group_forward.1} parent=5 // pred_region
      %s109 = ssub.s32 %s8, 1
      // Predicated region
      $region13: #{residual_recurrent_group_forward.1} parent=11 // pred_check
        %p110 = pneg %p67
      $region14: #{residual_recurrent_group_forward.1} parent=11 // pred_check_branch
        %112 = sbr.rel (%p110) target = $region16
      $region15: #{residual_recurrent_group_forward.1} parent=11 // pred_region
        _
      $region16: #{residual_recurrent_group_forward.1} parent=11 // pred_fallthru
        _
    $region12: #{residual_recurrent_group_forward.1} parent=5 // pred_fallthru
      _
    %p113 = scmp.lt.s32.totalorder %s8, 2
    // Predicated region
    $region17: #{residual_recurrent_group_forward.1} parent=5 // pred_check
      %p114 = pneg %p113
    $region18: #{residual_recurrent_group_forward.1} parent=5 // pred_check_branch
      %116 = sbr.rel (%p114) target = $region20
    $region19: #{residual_recurrent_group_forward.1} parent=5 // pred_region
      // Predicated region
      $region21: #{residual_recurrent_group_forward.1} parent=19 // pred_check
        %p117 = pneg %p40
      $region22: #{residual_recurrent_group_forward.1} parent=19 // pred_check_branch
        %119 = sbr.rel (%p117) target = $region24
      $region23: #{residual_recurrent_group_forward.1} parent=19 // pred_region
        %p120 = scmp.lt.s32.totalorder %s15, 1
        %s121 = scalar_select %p120, %s15, 1
        %s122 = smul.addr %s121, 54
        %s123 = smul.addr %s122, 4
        %s124 = scalar_lea.vmem %s0, %s123
      $region24: #{residual_recurrent_group_forward.1} parent=19 // pred_fallthru
        _
    $region20: #{residual_recurrent_group_forward.1} parent=5 // pred_fallthru
      _
    %p125 = scmp.le.s32.totalorder 1, %s8
    %p126 = scmp.lt.s32.totalorder %s8, 3
    %p127 = pnand %p125, %p126
    %p128 = pneg %p127
    // Predicated region
    $region25: #{residual_recurrent_group_forward.1} parent=5 // pred_check
      _
    $region26: #{residual_recurrent_group_forward.1} parent=5 // pred_check_branch
      %130 = sbr.rel (%p127) target = $region28
    $region27: #{residual_recurrent_group_forward.1} parent=5 // pred_region
      %s131 = ssub.s32 %s8, 1
      %p132 = scmp.lt.s32.totalorder %s17, 1
      %s133 = scalar_select %p132, %s17, 1
      %s134 = smul.addr %s133, 54
      %s135 = smul.addr %s134, 4
      %s136 = scalar_lea.vmem %s0, %s135
      %p137 = pneg %p46
      %p138 = pneg %p43
      %p139 = pneg %p67
      %p140 = pneg %p64
      %p141 = pneg %p95
      %p142 = pneg %p92
      %s143 = smul.u32 32, %s18
      %p144 = scmp.lt.s32.totalorder %s17, 1
      %s145 = scalar_select %p144, %s17, 1
      %p146 = scmp.lt.s32.totalorder %s143, 31
      %s147 = scalar_select %p146, %s143, 31
      %s148 = smul.addr %s145, 32
      %s149 = sadd.s32 %s147, %s148
      %s150 = smul.addr %s149, 4
      %s151 = scalar_lea.vmem %s2, %s150
      %p152 = scmp.lt.s32.totalorder %s17, 1
      %s153 = scalar_select %p152, %s17, 1
      %s154 = smul.addr %s153, 54
      %s155 = smul.addr %s154, 4
      %s156 = scalar_lea.vmem %s0, %s155
      %s157 = smul.u32 32, %s18
      %p158 = scmp.lt.s32.totalorder %s17, 1
      %s159 = scalar_select %p158, %s17, 1
      %p160 = scmp.lt.s32.totalorder %s157, 31
      %s161 = scalar_select %p160, %s157, 31
      %s162 = smul.addr %s159, 32
      %s163 = sadd.s32 %s161, %s162
      %s164 = smul.addr %s163, 4
      %s165 = scalar_lea.vmem %s2, %s164
      %s166 = smul.u32 32, %s18
      %s168 = smul.u32 %s18, 16
      %s169 = smul.u32 %s168, 3
      %s170 = smul.addr %s169, 4
      %s171 = scalar_lea.vmem %s156, %s170
      %v172 = vld [vmem:[%s171] sm:$0xf]
      %v173 = vld [vmem:[%s171 + $0x4] sm:$0xf]
      %v174 = vld [vmem:[%s171 + $0xc] sm:$0xf]
      %v175 = vld [vmem:[%s171 + $0x10] sm:$0xf]
      %v176 = vld [vmem:[%s171 + $0x18] sm:$0xf]
      %v177 = vld [vmem:[%s171 + $0x1c] sm:$0xf]
      %v178 = vld [vmem:[%s171 + $0x24] sm:$0xf]
      %v179 = vld [vmem:[%s171 + $0x28] sm:$0xf]
      %v180 = vld [vmem:[%s171 + $0x30] sm:$0xf]
      %v181 = vld [vmem:[%s171 + $0x34] sm:$0xf]
      %v182 = vld [vmem:[%s171 + $0x3c] sm:$0xf]
      %v183 = vld [vmem:[%s171 + $0x40] sm:$0xf]
      %v184 = vld [vmem:[%s171 + $0x48] sm:$0xf]
      %v185 = vld [vmem:[%s171 + $0x4c] sm:$0xf]
      %v186 = vld [vmem:[%s171 + $0x54] sm:$0xf]
      %v187 = vld [vmem:[%s171 + $0x58] sm:$0xf]
      %v188 = vld [vmem:[%s171 + $0x60] sm:$0xf]
      %v189 = vld [vmem:[%s171 + $0x64] sm:$0xf]
      %v190 = vld [vmem:[%s171 + $0x6c] sm:$0xf]
      %v191 = vld [vmem:[%s171 + $0x70] sm:$0xf]
      %v192 = vld [vmem:[%s171 + $0x78] sm:$0xf]
      %v193 = vld [vmem:[%s171 + $0x7c] sm:$0xf]
      %v194 = vld [vmem:[%s171 + $0x84] sm:$0xf]
      %v195 = vld [vmem:[%s171 + $0x88] sm:$0xf]
      %v196 = vld [vmem:[%s171 + $0x90] sm:$0xf]
      %v197 = vld [vmem:[%s171 + $0x94] sm:$0xf]
      %v198 = vld [vmem:[%s171 + $0x9c] sm:$0xf]
      %v199 = vld [vmem:[%s171 + $0xa0] sm:$0xf]
      %v200 = vld [vmem:[%s171 + $0xa8] sm:$0xf]
      %v201 = vld [vmem:[%s171 + $0xac] sm:$0xf]
      %v202 = vld [vmem:[%s171 + $0xb4] sm:$0xf]
      %v203 = vld [vmem:[%s171 + $0xb8] sm:$0xf]
      %v204 = vld [vmem:[%s171 + $0xc0] sm:$0xf]
      %v205 = vld [vmem:[%s171 + $0xc4] sm:$0xf]
      %v206 = vld [vmem:[%s171 + $0xcc] sm:$0xf]
      %v207 = vld [vmem:[%s171 + $0xd0] sm:$0xf]
      %v244 = vunpack.c.l.b16 %v172
      %v245 = vunpack.c.l.b16 %v173
      %v246 = vunpack.c.l.b16 %v174
      %v247 = vunpack.c.l.b16 %v175
      %v248 = vunpack.c.l.b16 %v176
      %v249 = vunpack.c.l.b16 %v177
      %v250 = vunpack.c.l.b16 %v178
      %v251 = vunpack.c.l.b16 %v179
      %v252 = vunpack.c.l.b16 %v180
      %v253 = vunpack.c.l.b16 %v181
      %v254 = vunpack.c.l.b16 %v182
      %v255 = vunpack.c.l.b16 %v183
      %v256 = vunpack.c.l.b16 %v184
      %v257 = vunpack.c.l.b16 %v185
      %v258 = vunpack.c.l.b16 %v186
      %v259 = vunpack.c.l.b16 %v187
      %v260 = vunpack.c.l.b16 %v188
      %v261 = vunpack.c.l.b16 %v189
      %v262 = vunpack.c.l.b16 %v190
      %v263 = vunpack.c.l.b16 %v191
      %v264 = vunpack.c.l.b16 %v192
      %v265 = vunpack.c.l.b16 %v193
      %v266 = vunpack.c.l.b16 %v194
      %v267 = vunpack.c.l.b16 %v195
      %v268 = vunpack.c.l.b16 %v196
      %v269 = vunpack.c.l.b16 %v197
      %v270 = vunpack.c.l.b16 %v198
      %v271 = vunpack.c.l.b16 %v199
      %v272 = vunpack.c.l.b16 %v200
      %v273 = vunpack.c.l.b16 %v201
      %v274 = vunpack.c.l.b16 %v202
      %v275 = vunpack.c.l.b16 %v203
      %v276 = vunpack.c.l.b16 %v204
      %v277 = vunpack.c.l.b16 %v205
      %v278 = vunpack.c.l.b16 %v206
      %v279 = vunpack.c.l.b16 %v207
      %v280 = vpack.c.b16 %v245, %v244
      %v281 = vpack.c.b16 %v247, %v246
      %v282 = vpack.c.b16 %v249, %v248
      %v283 = vpack.c.b16 %v251, %v250
      %v284 = vpack.c.b16 %v253, %v252
      %v285 = vpack.c.b16 %v255, %v254
      %v286 = vpack.c.b16 %v257, %v256
      %v287 = vpack.c.b16 %v259, %v258
      %v288 = vpack.c.b16 %v261, %v260
      %v289 = vpack.c.b16 %v263, %v262
      %v290 = vpack.c.b16 %v265, %v264
      %v291 = vpack.c.b16 %v267, %v266
      %v292 = vpack.c.b16 %v269, %v268
      %v293 = vpack.c.b16 %v271, %v270
      %v294 = vpack.c.b16 %v273, %v272
      %v295 = vpack.c.b16 %v275, %v274
      %v296 = vpack.c.b16 %v277, %v276
      %v297 = vpack.c.b16 %v279, %v278
      %316 = vst [vmem:[#allocation2] sm:$0xff] %v280
      %317 = vst [vmem:[#allocation2 + $0x18] sm:$0xff] %v281
      %318 = vst [vmem:[#allocation2 + $0x30] sm:$0xff] %v282
      %319 = vst [vmem:[#allocation2 + $0x48] sm:$0xff] %v283
      %320 = vst [vmem:[#allocation2 + $0x60] sm:$0xff] %v284
      %321 = vst [vmem:[#allocation2 + $0x78] sm:$0xff] %v285
      %322 = vst [vmem:[#allocation2 + $0x90] sm:$0xff] %v286
      %323 = vst [vmem:[#allocation2 + $0xa8] sm:$0xff] %v287
      %324 = vst [vmem:[#allocation2 + $0xc0] sm:$0xff] %v288
      %325 = vst [vmem:[#allocation2 + $0xd8] sm:$0xff] %v289
      %326 = vst [vmem:[#allocation2 + $0xf0] sm:$0xff] %v290
      %327 = vst [vmem:[#allocation2 + $0x108] sm:$0xff] %v291
      %328 = vst [vmem:[#allocation2 + $0x120] sm:$0xff] %v292
      %329 = vst [vmem:[#allocation2 + $0x138] sm:$0xff] %v293
      %330 = vst [vmem:[#allocation2 + $0x150] sm:$0xff] %v294
      %331 = vst [vmem:[#allocation2 + $0x168] sm:$0xff] %v295
      %332 = vst [vmem:[#allocation2 + $0x180] sm:$0xff] %v296
      %333 = vst [vmem:[#allocation2 + $0x198] sm:$0xff] %v297
      %v334 = vld [vmem:[%s171] sm:$0xf]
      %v335 = vld [vmem:[%s171 + $0x4] sm:$0xf]
      %v336 = vld [vmem:[%s171 + $0x8] sm:$0x1]
      %v337 = vld [vmem:[%s171 + $0xc] sm:$0xf]
      %v338 = vld [vmem:[%s171 + $0x10] sm:$0xf]
      %v339 = vld [vmem:[%s171 + $0x14] sm:$0x1]
      %v340 = vld [vmem:[%s171 + $0x18] sm:$0xf]
      %v341 = vld [vmem:[%s171 + $0x1c] sm:$0xf]
      %v342 = vld [vmem:[%s171 + $0x20] sm:$0x1]
      %v343 = vld [vmem:[%s171 + $0x24] sm:$0xf]
      %v344 = vld [vmem:[%s171 + $0x28] sm:$0xf]
      %v345 = vld [vmem:[%s171 + $0x2c] sm:$0x1]
      %v346 = vld [vmem:[%s171 + $0x30] sm:$0xf]
      %v347 = vld [vmem:[%s171 + $0x34] sm:$0xf]
      %v348 = vld [vmem:[%s171 + $0x38] sm:$0x1]
      %v349 = vld [vmem:[%s171 + $0x3c] sm:$0xf]
      %v350 = vld [vmem:[%s171 + $0x40] sm:$0xf]
      %v351 = vld [vmem:[%s171 + $0x44] sm:$0x1]
      %v352 = vld [vmem:[%s171 + $0x48] sm:$0xf]
      %v353 = vld [vmem:[%s171 + $0x4c] sm:$0xf]
      %v354 = vld [vmem:[%s171 + $0x50] sm:$0x1]
      %v355 = vld [vmem:[%s171 + $0x54] sm:$0xf]
      %v356 = vld [vmem:[%s171 + $0x58] sm:$0xf]
      %v357 = vld [vmem:[%s171 + $0x5c] sm:$0x1]
      %v358 = vld [vmem:[%s171 + $0x60] sm:$0xf]
      %v359 = vld [vmem:[%s171 + $0x64] sm:$0xf]
      %v360 = vld [vmem:[%s171 + $0x68] sm:$0x1]
      %v361 = vld [vmem:[%s171 + $0x6c] sm:$0xf]
      %v362 = vld [vmem:[%s171 + $0x70] sm:$0xf]
      %v363 = vld [vmem:[%s171 + $0x74] sm:$0x1]
      %v364 = vld [vmem:[%s171 + $0x78] sm:$0xf]
      %v365 = vld [vmem:[%s171 + $0x7c] sm:$0xf]
      %v366 = vld [vmem:[%s171 + $0x80] sm:$0x1]
      %v367 = vld [vmem:[%s171 + $0x84] sm:$0xf]
      %v368 = vld [vmem:[%s171 + $0x88] sm:$0xf]
      %v369 = vld [vmem:[%s171 + $0x8c] sm:$0x1]
      %v370 = vld [vmem:[%s171 + $0x90] sm:$0xf]
      %v371 = vld [vmem:[%s171 + $0x94] sm:$0xf]
      %v372 = vld [vmem:[%s171 + $0x98] sm:$0x1]
      %v373 = vld [vmem:[%s171 + $0x9c] sm:$0xf]
      %v374 = vld [vmem:[%s171 + $0xa0] sm:$0xf]
      %v375 = vld [vmem:[%s171 + $0xa4] sm:$0x1]
      %v376 = vld [vmem:[%s171 + $0xa8] sm:$0xf]
      %v377 = vld [vmem:[%s171 + $0xac] sm:$0xf]
      %v378 = vld [vmem:[%s171 + $0xb0] sm:$0x1]
      %v379 = vld [vmem:[%s171 + $0xb4] sm:$0xf]
      %v380 = vld [vmem:[%s171 + $0xb8] sm:$0xf]
      %v381 = vld [vmem:[%s171 + $0xbc] sm:$0x1]
      %v382 = vld [vmem:[%s171 + $0xc0] sm:$0xf]
      %v383 = vld [vmem:[%s171 + $0xc4] sm:$0xf]
      %v384 = vld [vmem:[%s171 + $0xc8] sm:$0x1]
      %v385 = vld [vmem:[%s171 + $0xcc] sm:$0xf]
      %v386 = vld [vmem:[%s171 + $0xd0] sm:$0xf]
      %v387 = vld [vmem:[%s171 + $0xd4] sm:$0x1]
      %v442 = vunpack.c.l.b16 %v334
      %v443 = vunpack.c.l.b16 %v335
      %v444 = vunpack.c.l.b16 %v336
      %v445 = vunpack.c.l.b16 %v337
      %v446 = vunpack.c.l.b16 %v338
      %v447 = vunpack.c.l.b16 %v339
      %v448 = vunpack.c.l.b16 %v340
      %v449 = vunpack.c.l.b16 %v341
      %v450 = vunpack.c.l.b16 %v342
      %v451 = vunpack.c.l.b16 %v343
      %v452 = vunpack.c.l.b16 %v344
      %v453 = vunpack.c.l.b16 %v345
      %v454 = vunpack.c.l.b16 %v346
      %v455 = vunpack.c.l.b16 %v347
      %v456 = vunpack.c.l.b16 %v348
      %v457 = vunpack.c.l.b16 %v349
      %v458 = vunpack.c.l.b16 %v350
      %v459 = vunpack.c.l.b16 %v351
      %v460 = vunpack.c.l.b16 %v352
      %v461 = vunpack.c.l.b16 %v353
      %v462 = vunpack.c.l.b16 %v354
      %v463 = vunpack.c.l.b16 %v355
      %v464 = vunpack.c.l.b16 %v356
      %v465 = vunpack.c.l.b16 %v357
      %v466 = vunpack.c.l.b16 %v358
      %v467 = vunpack.c.l.b16 %v359
      %v468 = vunpack.c.l.b16 %v360
      %v469 = vunpack.c.l.b16 %v361
      %v470 = vunpack.c.l.b16 %v362
      %v471 = vunpack.c.l.b16 %v363
      %v472 = vunpack.c.l.b16 %v364
      %v473 = vunpack.c.l.b16 %v365
      %v474 = vunpack.c.l.b16 %v366
      %v475 = vunpack.c.l.b16 %v367
      %v476 = vunpack.c.l.b16 %v368
      %v477 = vunpack.c.l.b16 %v369
      %v478 = vunpack.c.l.b16 %v370
      %v479 = vunpack.c.l.b16 %v371
      %v480 = vunpack.c.l.b16 %v372
      %v481 = vunpack.c.l.b16 %v373
      %v482 = vunpack.c.l.b16 %v374
      %v483 = vunpack.c.l.b16 %v375
      %v484 = vunpack.c.l.b16 %v376
      %v485 = vunpack.c.l.b16 %v377
      %v486 = vunpack.c.l.b16 %v378
      %v487 = vunpack.c.l.b16 %v379
      %v488 = vunpack.c.l.b16 %v380
      %v489 = vunpack.c.l.b16 %v381
      %v490 = vunpack.c.l.b16 %v382
      %v491 = vunpack.c.l.b16 %v383
      %v492 = vunpack.c.l.b16 %v384
      %v493 = vunpack.c.l.b16 %v385
      %v494 = vunpack.c.l.b16 %v386
      %v495 = vunpack.c.l.b16 %v387
      %v496 = vpack.c.b16 %v443, %v442
      %v497 = vpack.c.b16 %v444, %v444
      %v498 = vpack.c.b16 %v446, %v445
      %v499 = vpack.c.b16 %v447, %v447
      %v500 = vpack.c.b16 %v449, %v448
      %v501 = vpack.c.b16 %v450, %v450
      %v502 = vpack.c.b16 %v452, %v451
      %v503 = vpack.c.b16 %v453, %v453
      %v504 = vpack.c.b16 %v455, %v454
      %v505 = vpack.c.b16 %v456, %v456
      %v506 = vpack.c.b16 %v458, %v457
      %v507 = vpack.c.b16 %v459, %v459
      %v508 = vpack.c.b16 %v461, %v460
      %v509 = vpack.c.b16 %v462, %v462
      %v510 = vpack.c.b16 %v464, %v463
      %v511 = vpack.c.b16 %v465, %v465
      %v512 = vpack.c.b16 %v467, %v466
      %v513 = vpack.c.b16 %v468, %v468
      %v514 = vpack.c.b16 %v470, %v469
      %v515 = vpack.c.b16 %v471, %v471
      %v516 = vpack.c.b16 %v473, %v472
      %v517 = vpack.c.b16 %v474, %v474
      %v518 = vpack.c.b16 %v476, %v475
      %v519 = vpack.c.b16 %v477, %v477
      %v520 = vpack.c.b16 %v479, %v478
      %v521 = vpack.c.b16 %v480, %v480
      %v522 = vpack.c.b16 %v482, %v481
      %v523 = vpack.c.b16 %v483, %v483
      %v524 = vpack.c.b16 %v485, %v484
      %v525 = vpack.c.b16 %v486, %v486
      %v526 = vpack.c.b16 %v488, %v487
      %v527 = vpack.c.b16 %v489, %v489
      %v528 = vpack.c.b16 %v491, %v490
      %v529 = vpack.c.b16 %v492, %v492
      %v530 = vpack.c.b16 %v494, %v493
      %v531 = vpack.c.b16 %v495, %v495
      %vm532 = vsmask.f32 7424
      %v534 = vshrl.u32 %v496, 16
      %v536 = vshll.u32 %v496, 16
      %v538 = vrot.slane %v536, 1
      %v539 = vor.u32 %v534, %v538
      %v541 = vshll.u32 %v497, 16
      %v543 = vrot.slane %v541, 1
      %v544 = vsel %vm532, %v539, %v543
      %v546 = vshrl.u32 %v498, 16
      %v548 = vshll.u32 %v498, 16
      %v550 = vrot.slane %v548, 1
      %v551 = vor.u32 %v546, %v550
      %v553 = vshll.u32 %v499, 16
      %v555 = vrot.slane %v553, 1
      %v556 = vsel %vm532, %v551, %v555
      %v558 = vshrl.u32 %v500, 16
      %v560 = vshll.u32 %v500, 16
      %v562 = vrot.slane %v560, 1
      %v563 = vor.u32 %v558, %v562
      %v565 = vshll.u32 %v501, 16
      %v567 = vrot.slane %v565, 1
      %v568 = vsel %vm532, %v563, %v567
      %v570 = vshrl.u32 %v502, 16
      %v572 = vshll.u32 %v502, 16
      %v574 = vrot.slane %v572, 1
      %v575 = vor.u32 %v570, %v574
      %v577 = vshll.u32 %v503, 16
      %v579 = vrot.slane %v577, 1
      %v580 = vsel %vm532, %v575, %v579
      %v582 = vshrl.u32 %v504, 16
      %v584 = vshll.u32 %v504, 16
      %v586 = vrot.slane %v584, 1
      %v587 = vor.u32 %v582, %v586
      %v589 = vshll.u32 %v505, 16
      %v591 = vrot.slane %v589, 1
      %v592 = vsel %vm532, %v587, %v591
      %v594 = vshrl.u32 %v506, 16
      %v596 = vshll.u32 %v506, 16
      %v598 = vrot.slane %v596, 1
      %v599 = vor.u32 %v594, %v598
      %v601 = vshll.u32 %v507, 16
      %v603 = vrot.slane %v601, 1
      %v604 = vsel %vm532, %v599, %v603
      %v606 = vshrl.u32 %v508, 16
      %v608 = vshll.u32 %v508, 16
      %v610 = vrot.slane %v608, 1
      %v611 = vor.u32 %v606, %v610
      %v613 = vshll.u32 %v509, 16
      %v615 = vrot.slane %v613, 1
      %v616 = vsel %vm532, %v611, %v615
      %v618 = vshrl.u32 %v510, 16
      %v620 = vshll.u32 %v510, 16
      %v622 = vrot.slane %v620, 1
      %v623 = vor.u32 %v618, %v622
      %v625 = vshll.u32 %v511, 16
      %v627 = vrot.slane %v625, 1
      %v628 = vsel %vm532, %v623, %v627
      %v630 = vshrl.u32 %v512, 16
      %v632 = vshll.u32 %v512, 16
      %v634 = vrot.slane %v632, 1
      %v635 = vor.u32 %v630, %v634
      %v637 = vshll.u32 %v513, 16
      %v639 = vrot.slane %v637, 1
      %v640 = vsel %vm532, %v635, %v639
      %v642 = vshrl.u32 %v514, 16
      %v644 = vshll.u32 %v514, 16
      %v646 = vrot.slane %v644, 1
      %v647 = vor.u32 %v642, %v646
      %v649 = vshll.u32 %v515, 16
      %v651 = vrot.slane %v649, 1
      %v652 = vsel %vm532, %v647, %v651
      %v654 = vshrl.u32 %v516, 16
      %v656 = vshll.u32 %v516, 16
      %v658 = vrot.slane %v656, 1
      %v659 = vor.u32 %v654, %v658
      %v661 = vshll.u32 %v517, 16
      %v663 = vrot.slane %v661, 1
      %v664 = vsel %vm532, %v659, %v663
      %v666 = vshrl.u32 %v518, 16
      %v668 = vshll.u32 %v518, 16
      %v670 = vrot.slane %v668, 1
      %v671 = vor.u32 %v666, %v670
      %v673 = vshll.u32 %v519, 16
      %v675 = vrot.slane %v673, 1
      %v676 = vsel %vm532, %v671, %v675
      %v678 = vshrl.u32 %v520, 16
      %v680 = vshll.u32 %v520, 16
      %v682 = vrot.slane %v680, 1
      %v683 = vor.u32 %v678, %v682
      %v685 = vshll.u32 %v521, 16
      %v687 = vrot.slane %v685, 1
      %v688 = vsel %vm532, %v683, %v687
      %v690 = vshrl.u32 %v522, 16
      %v692 = vshll.u32 %v522, 16
      %v694 = vrot.slane %v692, 1
      %v695 = vor.u32 %v690, %v694
      %v697 = vshll.u32 %v523, 16
      %v699 = vrot.slane %v697, 1
      %v700 = vsel %vm532, %v695, %v699
      %v702 = vshrl.u32 %v524, 16
      %v704 = vshll.u32 %v524, 16
      %v706 = vrot.slane %v704, 1
      %v707 = vor.u32 %v702, %v706
      %v709 = vshll.u32 %v525, 16
      %v711 = vrot.slane %v709, 1
      %v712 = vsel %vm532, %v707, %v711
      %v714 = vshrl.u32 %v526, 16
      %v716 = vshll.u32 %v526, 16
      %v718 = vrot.slane %v716, 1
      %v719 = vor.u32 %v714, %v718
      %v721 = vshll.u32 %v527, 16
      %v723 = vrot.slane %v721, 1
      %v724 = vsel %vm532, %v719, %v723
      %v726 = vshrl.u32 %v528, 16
      %v728 = vshll.u32 %v528, 16
      %v730 = vrot.slane %v728, 1
      %v731 = vor.u32 %v726, %v730
      %v733 = vshll.u32 %v529, 16
      %v735 = vrot.slane %v733, 1
      %v736 = vsel %vm532, %v731, %v735
      %v738 = vshrl.u32 %v530, 16
      %v740 = vshll.u32 %v530, 16
      %v742 = vrot.slane %v740, 1
      %v743 = vor.u32 %v738, %v742
      %v745 = vshll.u32 %v531, 16
      %v747 = vrot.slane %v745, 1
      %v748 = vsel %vm532, %v743, %v747
      %767 = vst [vmem:[#allocation2 + $0x8] sm:$0xff] %v544
      %768 = vst [vmem:[#allocation2 + $0x20] sm:$0xff] %v556
      %769 = vst [vmem:[#allocation2 + $0x38] sm:$0xff] %v568
      %770 = vst [vmem:[#allocation2 + $0x50] sm:$0xff] %v580
      %771 = vst [vmem:[#allocation2 + $0x68] sm:$0xff] %v592
      %772 = vst [vmem:[#allocation2 + $0x80] sm:$0xff] %v604
      %773 = vst [vmem:[#allocation2 + $0x98] sm:$0xff] %v616
      %774 = vst [vmem:[#allocation2 + $0xb0] sm:$0xff] %v628
      %775 = vst [vmem:[#allocation2 + $0xc8] sm:$0xff] %v640
      %776 = vst [vmem:[#allocation2 + $0xe0] sm:$0xff] %v652
      %777 = vst [vmem:[#allocation2 + $0xf8] sm:$0xff] %v664
      %778 = vst [vmem:[#allocation2 + $0x110] sm:$0xff] %v676
      %779 = vst [vmem:[#allocation2 + $0x128] sm:$0xff] %v688
      %780 = vst [vmem:[#allocation2 + $0x140] sm:$0xff] %v700
      %781 = vst [vmem:[#allocation2 + $0x158] sm:$0xff] %v712
      %782 = vst [vmem:[#allocation2 + $0x170] sm:$0xff] %v724
      %783 = vst [vmem:[#allocation2 + $0x188] sm:$0xff] %v736
      %784 = vst [vmem:[#allocation2 + $0x1a0] sm:$0xff] %v748
      %v785 = vld [vmem:[%s171] sm:$0xe]
      %v786 = vld [vmem:[%s171 + $0x4] sm:$0xf]
      %v787 = vld [vmem:[%s171 + $0x8] sm:$0x1]
      %v788 = vld [vmem:[%s171 + $0xc] sm:$0xe]
      %v789 = vld [vmem:[%s171 + $0x10] sm:$0xf]
      %v790 = vld [vmem:[%s171 + $0x14] sm:$0x1]
      %v791 = vld [vmem:[%s171 + $0x18] sm:$0xe]
      %v792 = vld [vmem:[%s171 + $0x1c] sm:$0xf]
      %v793 = vld [vmem:[%s171 + $0x20] sm:$0x1]
      %v794 = vld [vmem:[%s171 + $0x24] sm:$0xe]
      %v795 = vld [vmem:[%s171 + $0x28] sm:$0xf]
      %v796 = vld [vmem:[%s171 + $0x2c] sm:$0x1]
      %v797 = vld [vmem:[%s171 + $0x30] sm:$0xe]
      %v798 = vld [vmem:[%s171 + $0x34] sm:$0xf]
      %v799 = vld [vmem:[%s171 + $0x38] sm:$0x1]
      %v800 = vld [vmem:[%s171 + $0x3c] sm:$0xe]
      %v801 = vld [vmem:[%s171 + $0x40] sm:$0xf]
      %v802 = vld [vmem:[%s171 + $0x44] sm:$0x1]
      %v803 = vld [vmem:[%s171 + $0x48] sm:$0xe]
      %v804 = vld [vmem:[%s171 + $0x4c] sm:$0xf]
      %v805 = vld [vmem:[%s171 + $0x50] sm:$0x1]
      %v806 = vld [vmem:[%s171 + $0x54] sm:$0xe]
      %v807 = vld [vmem:[%s171 + $0x58] sm:$0xf]
      %v808 = vld [vmem:[%s171 + $0x5c] sm:$0x1]
      %v809 = vld [vmem:[%s171 + $0x60] sm:$0xe]
      %v810 = vld [vmem:[%s171 + $0x64] sm:$0xf]
      %v811 = vld [vmem:[%s171 + $0x68] sm:$0x1]
      %v812 = vld [vmem:[%s171 + $0x6c] sm:$0xe]
      %v813 = vld [vmem:[%s171 + $0x70] sm:$0xf]
      %v814 = vld [vmem:[%s171 + $0x74] sm:$0x1]
      %v815 = vld [vmem:[%s171 + $0x78] sm:$0xe]
      %v816 = vld [vmem:[%s171 + $0x7c] sm:$0xf]
      %v817 = vld [vmem:[%s171 + $0x80] sm:$0x1]
      %v818 = vld [vmem:[%s171 + $0x84] sm:$0xe]
      %v819 = vld [vmem:[%s171 + $0x88] sm:$0xf]
      %v820 = vld [vmem:[%s171 + $0x8c] sm:$0x1]
      %v821 = vld [vmem:[%s171 + $0x90] sm:$0xe]
      %v822 = vld [vmem:[%s171 + $0x94] sm:$0xf]
      %v823 = vld [vmem:[%s171 + $0x98] sm:$0x1]
      %v824 = vld [vmem:[%s171 + $0x9c] sm:$0xe]
      %v825 = vld [vmem:[%s171 + $0xa0] sm:$0xf]
      %v826 = vld [vmem:[%s171 + $0xa4] sm:$0x1]
      %v827 = vld [vmem:[%s171 + $0xa8] sm:$0xe]
      %v828 = vld [vmem:[%s171 + $0xac] sm:$0xf]
      %v829 = vld [vmem:[%s171 + $0xb0] sm:$0x1]
      %v830 = vld [vmem:[%s171 + $0xb4] sm:$0xe]
      %v831 = vld [vmem:[%s171 + $0xb8] sm:$0xf]
      %v832 = vld [vmem:[%s171 + $0xbc] sm:$0x1]
      %v833 = vld [vmem:[%s171 + $0xc0] sm:$0xe]
      %v834 = vld [vmem:[%s171 + $0xc4] sm:$0xf]
      %v835 = vld [vmem:[%s171 + $0xc8] sm:$0x1]
      %v836 = vld [vmem:[%s171 + $0xcc] sm:$0xe]
      %v837 = vld [vmem:[%s171 + $0xd0] sm:$0xf]
      %v838 = vld [vmem:[%s171 + $0xd4] sm:$0x1]
      %v893 = vunpack.c.l.b16 %v785
      %v894 = vunpack.c.l.b16 %v786
      %v895 = vunpack.c.l.b16 %v787
      %v896 = vunpack.c.l.b16 %v788
      %v897 = vunpack.c.l.b16 %v789
      %v898 = vunpack.c.l.b16 %v790
      %v899 = vunpack.c.l.b16 %v791
      %v900 = vunpack.c.l.b16 %v792
      %v901 = vunpack.c.l.b16 %v793
      %v902 = vunpack.c.l.b16 %v794
      %v903 = vunpack.c.l.b16 %v795
      %v904 = vunpack.c.l.b16 %v796
      %v905 = vunpack.c.l.b16 %v797
      %v906 = vunpack.c.l.b16 %v798
      %v907 = vunpack.c.l.b16 %v799
      %v908 = vunpack.c.l.b16 %v800
      %v909 = vunpack.c.l.b16 %v801
      %v910 = vunpack.c.l.b16 %v802
      %v911 = vunpack.c.l.b16 %v803
      %v912 = vunpack.c.l.b16 %v804
      %v913 = vunpack.c.l.b16 %v805
      %v914 = vunpack.c.l.b16 %v806
      %v915 = vunpack.c.l.b16 %v807
      %v916 = vunpack.c.l.b16 %v808
      %v917 = vunpack.c.l.b16 %v809
      %v918 = vunpack.c.l.b16 %v810
      %v919 = vunpack.c.l.b16 %v811
      %v920 = vunpack.c.l.b16 %v812
      %v921 = vunpack.c.l.b16 %v813
      %v922 = vunpack.c.l.b16 %v814
      %v923 = vunpack.c.l.b16 %v815
      %v924 = vunpack.c.l.b16 %v816
      %v925 = vunpack.c.l.b16 %v817
      %v926 = vunpack.c.l.b16 %v818
      %v927 = vunpack.c.l.b16 %v819
      %v928 = vunpack.c.l.b16 %v820
      %v929 = vunpack.c.l.b16 %v821
      %v930 = vunpack.c.l.b16 %v822
      %v931 = vunpack.c.l.b16 %v823
      %v932 = vunpack.c.l.b16 %v824
      %v933 = vunpack.c.l.b16 %v825
      %v934 = vunpack.c.l.b16 %v826
      %v935 = vunpack.c.l.b16 %v827
      %v936 = vunpack.c.l.b16 %v828
      %v937 = vunpack.c.l.b16 %v829
      %v938 = vunpack.c.l.b16 %v830
      %v939 = vunpack.c.l.b16 %v831
      %v940 = vunpack.c.l.b16 %v832
      %v941 = vunpack.c.l.b16 %v833
      %v942 = vunpack.c.l.b16 %v834
      %v943 = vunpack.c.l.b16 %v835
      %v944 = vunpack.c.l.b16 %v836
      %v945 = vunpack.c.l.b16 %v837
      %v946 = vunpack.c.l.b16 %v838
      %v947 = vpack.c.b16 %v894, %v893
      %v948 = vpack.c.b16 %v895, %v895
      %v949 = vpack.c.b16 %v897, %v896
      %v950 = vpack.c.b16 %v898, %v898
      %v951 = vpack.c.b16 %v900, %v899
      %v952 = vpack.c.b16 %v901, %v901
      %v953 = vpack.c.b16 %v903, %v902
      %v954 = vpack.c.b16 %v904, %v904
      %v955 = vpack.c.b16 %v906, %v905
      %v956 = vpack.c.b16 %v907, %v907
      %v957 = vpack.c.b16 %v909, %v908
      %v958 = vpack.c.b16 %v910, %v910
      %v959 = vpack.c.b16 %v912, %v911
      %v960 = vpack.c.b16 %v913, %v913
      %v961 = vpack.c.b16 %v915, %v914
      %v962 = vpack.c.b16 %v916, %v916
      %v963 = vpack.c.b16 %v918, %v917
      %v964 = vpack.c.b16 %v919, %v919
      %v965 = vpack.c.b16 %v921, %v920
      %v966 = vpack.c.b16 %v922, %v922
      %v967 = vpack.c.b16 %v924, %v923
      %v968 = vpack.c.b16 %v925, %v925
      %v969 = vpack.c.b16 %v927, %v926
      %v970 = vpack.c.b16 %v928, %v928
      %v971 = vpack.c.b16 %v930, %v929
      %v972 = vpack.c.b16 %v931, %v931
      %v973 = vpack.c.b16 %v933, %v932
      %v974 = vpack.c.b16 %v934, %v934
      %v975 = vpack.c.b16 %v936, %v935
      %v976 = vpack.c.b16 %v937, %v937
      %v977 = vpack.c.b16 %v939, %v938
      %v978 = vpack.c.b16 %v940, %v940
      %v979 = vpack.c.b16 %v942, %v941
      %v980 = vpack.c.b16 %v943, %v943
      %v981 = vpack.c.b16 %v945, %v944
      %v982 = vpack.c.b16 %v946, %v946
      %vm983 = vcmask 1046528
      %v984 = vrot.slane %v947, 1
      %v985 = vrot.slane %v948, 1
      %v986 = vsel %vm983, %v984, %v985
      %v987 = vrot.slane %v949, 1
      %v988 = vrot.slane %v950, 1
      %v989 = vsel %vm983, %v987, %v988
      %v990 = vrot.slane %v951, 1
      %v991 = vrot.slane %v952, 1
      %v992 = vsel %vm983, %v990, %v991
      %v993 = vrot.slane %v953, 1
      %v994 = vrot.slane %v954, 1
      %v995 = vsel %vm983, %v993, %v994
      %v996 = vrot.slane %v955, 1
      %v997 = vrot.slane %v956, 1
      %v998 = vsel %vm983, %v996, %v997
      %v999 = vrot.slane %v957, 1
      %v1000 = vrot.slane %v958, 1
      %v1001 = vsel %vm983, %v999, %v1000
      %v1002 = vrot.slane %v959, 1
      %v1003 = vrot.slane %v960, 1
      %v1004 = vsel %vm983, %v1002, %v1003
      %v1005 = vrot.slane %v961, 1
      %v1006 = vrot.slane %v962, 1
      %v1007 = vsel %vm983, %v1005, %v1006
      %v1008 = vrot.slane %v963, 1
      %v1009 = vrot.slane %v964, 1
      %v1010 = vsel %vm983, %v1008, %v1009
      %v1011 = vrot.slane %v965, 1
      %v1012 = vrot.slane %v966, 1
      %v1013 = vsel %vm983, %v1011, %v1012
      %v1014 = vrot.slane %v967, 1
      %v1015 = vrot.slane %v968, 1
      %v1016 = vsel %vm983, %v1014, %v1015
      %v1017 = vrot.slane %v969, 1
      %v1018 = vrot.slane %v970, 1
      %v1019 = vsel %vm983, %v1017, %v1018
      %v1020 = vrot.slane %v971, 1
      %v1021 = vrot.slane %v972, 1
      %v1022 = vsel %vm983, %v1020, %v1021
      %v1023 = vrot.slane %v973, 1
      %v1024 = vrot.slane %v974, 1
      %v1025 = vsel %vm983, %v1023, %v1024
      %v1026 = vrot.slane %v975, 1
      %v1027 = vrot.slane %v976, 1
      %v1028 = vsel %vm983, %v1026, %v1027
      %v1029 = vrot.slane %v977, 1
      %v1030 = vrot.slane %v978, 1
      %v1031 = vsel %vm983, %v1029, %v1030
      %v1032 = vrot.slane %v979, 1
      %v1033 = vrot.slane %v980, 1
      %v1034 = vsel %vm983, %v1032, %v1033
      %v1035 = vrot.slane %v981, 1
      %v1036 = vrot.slane %v982, 1
      %v1037 = vsel %vm983, %v1035, %v1036
      %1056 = vst [vmem:[#allocation2 + $0x10] sm:$0xff] %v986
      %1057 = vst [vmem:[#allocation2 + $0x28] sm:$0xff] %v989
      %1058 = vst [vmem:[#allocation2 + $0x40] sm:$0xff] %v992
      %1059 = vst [vmem:[#allocation2 + $0x58] sm:$0xff] %v995
      %1060 = vst [vmem:[#allocation2 + $0x70] sm:$0xff] %v998
      %1061 = vst [vmem:[#allocation2 + $0x88] sm:$0xff] %v1001
      %1062 = vst [vmem:[#allocation2 + $0xa0] sm:$0xff] %v1004
      %1063 = vst [vmem:[#allocation2 + $0xb8] sm:$0xff] %v1007
      %1064 = vst [vmem:[#allocation2 + $0xd0] sm:$0xff] %v1010
      %1065 = vst [vmem:[#allocation2 + $0xe8] sm:$0xff] %v1013
      %1066 = vst [vmem:[#allocation2 + $0x100] sm:$0xff] %v1016
      %1067 = vst [vmem:[#allocation2 + $0x118] sm:$0xff] %v1019
      %1068 = vst [vmem:[#allocation2 + $0x130] sm:$0xff] %v1022
      %1069 = vst [vmem:[#allocation2 + $0x148] sm:$0xff] %v1025
      %1070 = vst [vmem:[#allocation2 + $0x160] sm:$0xff] %v1028
      %1071 = vst [vmem:[#allocation2 + $0x178] sm:$0xff] %v1031
      %1072 = vst [vmem:[#allocation2 + $0x190] sm:$0xff] %v1034
      %1073 = vst [vmem:[#allocation2 + $0x1a8] sm:$0xff] %v1037
      %v1074 = vld [vmem:[#allocation2] sm:$0xff]
      %v1075 = vld [vmem:[#allocation2 + $0x8] sm:$0xff]
      %v1076 = vld [vmem:[#allocation2 + $0x10] sm:$0xff]
      %v1077 = vld [vmem:[#allocation2 + $0x18] sm:$0xff]
      %v1078 = vld [vmem:[#allocation2 + $0x20] sm:$0xff]
      %v1079 = vld [vmem:[#allocation2 + $0x28] sm:$0xff]
      %v1080 = vld [vmem:[#allocation2 + $0x30] sm:$0xff]
      %v1081 = vld [vmem:[#allocation2 + $0x38] sm:$0xff]
      %v1082 = vld [vmem:[#allocation2 + $0x40] sm:$0xff]
      %v1083 = vld [vmem:[#allocation2 + $0x48] sm:$0xff]
      %v1084 = vld [vmem:[#allocation2 + $0x50] sm:$0xff]
      %v1085 = vld [vmem:[#allocation2 + $0x58] sm:$0xff]
      %v1086 = vld [vmem:[#allocation2 + $0x60] sm:$0xff]
      %v1087 = vld [vmem:[#allocation2 + $0x68] sm:$0xff]
      %v1088 = vld [vmem:[#allocation2 + $0x70] sm:$0xff]
      %v1089 = vld [vmem:[#allocation2 + $0x78] sm:$0xff]
      %v1090 = vld [vmem:[#allocation2 + $0x80] sm:$0xff]
      %v1091 = vld [vmem:[#allocation2 + $0x88] sm:$0xff]
      %v1092 = vld [vmem:[#allocation2 + $0x90] sm:$0xff]
      %v1093 = vld [vmem:[#allocation2 + $0x98] sm:$0xff]
      %v1094 = vld [vmem:[#allocation2 + $0xa0] sm:$0xff]
      %v1095 = vld [vmem:[#allocation2 + $0xa8] sm:$0xff]
      %v1096 = vld [vmem:[#allocation2 + $0xb0] sm:$0xff]
      %v1097 = vld [vmem:[#allocation2 + $0xb8] sm:$0xff]
      %v1098 = vld [vmem:[#allocation2 + $0xc0] sm:$0xff]
      %v1099 = vld [vmem:[#allocation2 + $0xc8] sm:$0xff]
      %v1100 = vld [vmem:[#allocation2 + $0xd0] sm:$0xff]
      %v1101 = vld [vmem:[#allocation2 + $0xd8] sm:$0xff]
      %v1102 = vld [vmem:[#allocation2 + $0xe0] sm:$0xff]
      %v1103 = vld [vmem:[#allocation2 + $0xe8] sm:$0xff]
      %v1104 = vld [vmem:[#allocation2 + $0xf0] sm:$0xff]
      %v1105 = vld [vmem:[#allocation2 + $0xf8] sm:$0xff]
      %v1106 = vld [vmem:[#allocation2 + $0x100] sm:$0xff]
      %v1107 = vld [vmem:[#allocation2 + $0x108] sm:$0xff]
      %v1108 = vld [vmem:[#allocation2 + $0x110] sm:$0xff]
      %v1109 = vld [vmem:[#allocation2 + $0x118] sm:$0xff]
      %v1110 = vld [vmem:[#allocation2 + $0x120] sm:$0xff]
      %v1111 = vld [vmem:[#allocation2 + $0x128] sm:$0xff]
      %v1112 = vld [vmem:[#allocation2 + $0x130] sm:$0xff]
      %v1113 = vld [vmem:[#allocation2 + $0x138] sm:$0xff]
      %v1114 = vld [vmem:[#allocation2 + $0x140] sm:$0xff]
      %v1115 = vld [vmem:[#allocation2 + $0x148] sm:$0xff]
      %v1116 = vld [vmem:[#allocation2 + $0x150] sm:$0xff]
      %v1117 = vld [vmem:[#allocation2 + $0x158] sm:$0xff]
      %v1118 = vld [vmem:[#allocation2 + $0x160] sm:$0xff]
      %v1119 = vld [vmem:[#allocation2 + $0x168] sm:$0xff]
      %v1120 = vld [vmem:[#allocation2 + $0x170] sm:$0xff]
      %v1121 = vld [vmem:[#allocation2 + $0x178] sm:$0xff]
      %v1122 = vld [vmem:[%s1] sm:$0xf]
      %v1123 = vld [vmem:[%s1 + $0x4] sm:$0xf]
      %v1124 = vld [vmem:[%s1 + $0x8] sm:$0xf]
      %v1125 = vld [vmem:[%s1 + $0xc] sm:$0xf]
      %v1126 = vld [vmem:[%s1 + $0x10] sm:$0xf]
      %v1127 = vld [vmem:[%s1 + $0x14] sm:$0xf]
      %v1128 = vld [vmem:[%s1 + $0x18] sm:$0xf]
      %v1129 = vld [vmem:[%s1 + $0x1c] sm:$0xf]
      %v1130 = vld [vmem:[%s1 + $0x20] sm:$0xf]
      %v1131 = vld [vmem:[%s1 + $0x24] sm:$0xf]
      %v1132 = vld [vmem:[%s1 + $0x28] sm:$0xf]
      %v1133 = vld [vmem:[%s1 + $0x2c] sm:$0xf]
      %v1134 = vld [vmem:[%s1 + $0x30] sm:$0xf]
      %v1135 = vld [vmem:[%s1 + $0x34] sm:$0xf]
      %v1136 = vld [vmem:[%s1 + $0x38] sm:$0xf]
      %v1137 = vld [vmem:[%s1 + $0x3c] sm:$0xf]
      %v1138 = vld [vmem:[%s1 + $0x40] sm:$0xf]
      %v1139 = vld [vmem:[%s1 + $0x44] sm:$0xf]
      %v1140 = vld [vmem:[%s1 + $0x48] sm:$0xf]
      %v1141 = vld [vmem:[%s1 + $0x4c] sm:$0xf]
      %v1142 = vld [vmem:[%s1 + $0x50] sm:$0xf]
      %v1143 = vld [vmem:[%s1 + $0x54] sm:$0xf]
      %v1144 = vld [vmem:[%s1 + $0x58] sm:$0xf]
      %v1145 = vld [vmem:[%s1 + $0x5c] sm:$0xf]
      %v1146 = vld [vmem:[%s1 + $0x60] sm:$0xf]
      %v1147 = vld [vmem:[%s1 + $0x64] sm:$0xf]
      %v1148 = vld [vmem:[%s1 + $0x68] sm:$0xf]
      %v1149 = vld [vmem:[%s1 + $0x6c] sm:$0xf]
      %v1150 = vld [vmem:[%s1 + $0x70] sm:$0xf]
      %v1151 = vld [vmem:[%s1 + $0x74] sm:$0xf]
      %v1152 = vld [vmem:[%s1 + $0x78] sm:$0xf]
      %v1153 = vld [vmem:[%s1 + $0x7c] sm:$0xf]
      %v1154 = vld [vmem:[%s1 + $0x80] sm:$0xf]
      %v1155 = vld [vmem:[%s1 + $0x84] sm:$0xf]
      %v1156 = vld [vmem:[%s1 + $0x88] sm:$0xf]
      %v1157 = vld [vmem:[%s1 + $0x8c] sm:$0xf]
      %v1158 = vld [vmem:[%s1 + $0x90] sm:$0xf]
      %v1159 = vld [vmem:[%s1 + $0x94] sm:$0xf]
      %v1160 = vld [vmem:[%s1 + $0x98] sm:$0xf]
      %v1161 = vld [vmem:[%s1 + $0x9c] sm:$0xf]
      %v1162 = vld [vmem:[%s1 + $0xa0] sm:$0xf]
      %v1163 = vld [vmem:[%s1 + $0xa4] sm:$0xf]
      %v1164 = vld [vmem:[%s1 + $0xa8] sm:$0xf]
      %v1165 = vld [vmem:[%s1 + $0xac] sm:$0xf]
      %v1166 = vld [vmem:[%s1 + $0xb0] sm:$0xf]
      %v1167 = vld [vmem:[%s1 + $0xb4] sm:$0xf]
      %v1168 = vld [vmem:[%s1 + $0xb8] sm:$0xf]
      %v1169 = vld [vmem:[%s1 + $0xbc] sm:$0xf]
      %v1218 = vunpack.c.l.b16 %v1122
      %v1219 = vunpack.c.l.b16 %v1123
      %v1220 = vunpack.c.l.b16 %v1124
      %v1221 = vunpack.c.l.b16 %v1125
      %v1222 = vunpack.c.l.b16 %v1126
      %v1223 = vunpack.c.l.b16 %v1127
      %v1224 = vunpack.c.l.b16 %v1128
      %v1225 = vunpack.c.l.b16 %v1129
      %v1226 = vunpack.c.l.b16 %v1130
      %v1227 = vunpack.c.l.b16 %v1131
      %v1228 = vunpack.c.l.b16 %v1132
      %v1229 = vunpack.c.l.b16 %v1133
      %v1230 = vunpack.c.l.b16 %v1134
      %v1231 = vunpack.c.l.b16 %v1135
      %v1232 = vunpack.c.l.b16 %v1136
      %v1233 = vunpack.c.l.b16 %v1137
      %v1234 = vunpack.c.l.b16 %v1138
      %v1235 = vunpack.c.l.b16 %v1139
      %v1236 = vunpack.c.l.b16 %v1140
      %v1237 = vunpack.c.l.b16 %v1141
      %v1238 = vunpack.c.l.b16 %v1142
      %v1239 = vunpack.c.l.b16 %v1143
      %v1240 = vunpack.c.l.b16 %v1144
      %v1241 = vunpack.c.l.b16 %v1145
      %v1242 = vunpack.c.l.b16 %v1146
      %v1243 = vunpack.c.l.b16 %v1147
      %v1244 = vunpack.c.l.b16 %v1148
      %v1245 = vunpack.c.l.b16 %v1149
      %v1246 = vunpack.c.l.b16 %v1150
      %v1247 = vunpack.c.l.b16 %v1151
      %v1248 = vunpack.c.l.b16 %v1152
      %v1249 = vunpack.c.l.b16 %v1153
      %v1250 = vunpack.c.l.b16 %v1154
      %v1251 = vunpack.c.l.b16 %v1155
      %v1252 = vunpack.c.l.b16 %v1156
      %v1253 = vunpack.c.l.b16 %v1157
      %v1254 = vunpack.c.l.b16 %v1158
      %v1255 = vunpack.c.l.b16 %v1159
      %v1256 = vunpack.c.l.b16 %v1160
      %v1257 = vunpack.c.l.b16 %v1161
      %v1258 = vunpack.c.l.b16 %v1162
      %v1259 = vunpack.c.l.b16 %v1163
      %v1260 = vunpack.c.l.b16 %v1164
      %v1261 = vunpack.c.l.b16 %v1165
      %v1262 = vunpack.c.l.b16 %v1166
      %v1263 = vunpack.c.l.b16 %v1167
      %v1264 = vunpack.c.l.b16 %v1168
      %v1265 = vunpack.c.l.b16 %v1169
      %v1266 = vpack.c.b16 %v1219, %v1218
      %v1267 = vpack.c.b16 %v1221, %v1220
      %v1268 = vpack.c.b16 %v1223, %v1222
      %v1269 = vpack.c.b16 %v1225, %v1224
      %v1270 = vpack.c.b16 %v1227, %v1226
      %v1271 = vpack.c.b16 %v1229, %v1228
      %v1272 = vpack.c.b16 %v1231, %v1230
      %v1273 = vpack.c.b16 %v1233, %v1232
      %v1274 = vpack.c.b16 %v1235, %v1234
      %v1275 = vpack.c.b16 %v1237, %v1236
      %v1276 = vpack.c.b16 %v1239, %v1238
      %v1277 = vpack.c.b16 %v1241, %v1240
      %v1278 = vpack.c.b16 %v1243, %v1242
      %v1279 = vpack.c.b16 %v1245, %v1244
      %v1280 = vpack.c.b16 %v1247, %v1246
      %v1281 = vpack.c.b16 %v1249, %v1248
      %v1282 = vpack.c.b16 %v1251, %v1250
      %v1283 = vpack.c.b16 %v1253, %v1252
      %v1284 = vpack.c.b16 %v1255, %v1254
      %v1285 = vpack.c.b16 %v1257, %v1256
      %v1286 = vpack.c.b16 %v1259, %v1258
      %v1287 = vpack.c.b16 %v1261, %v1260
      %v1288 = vpack.c.b16 %v1263, %v1262
      %v1289 = vpack.c.b16 %v1265, %v1264
      %1314 = vmatprep.subr.bf16.mxu0 0
      %1315 = vmatpush1.bf16.msra.mxu0 %v1266
      %1316 = vmatprep.subr.bf16.mxu0 0
      %1317 = vmatpush1.bf16.msra.mxu0 %v1267
      %1318 = vmatprep.subr.bf16.mxu0 0
      %1319 = vmatpush1.bf16.msra.mxu0 %v1268
      %1320 = vmatprep.subr.bf16.mxu0 0
      %1321 = vmatpush1.bf16.msra.mxu0 %v1269
      %1322 = vmatprep.subr.bf16.mxu0 0
      %1323 = vmatpush1.bf16.msra.mxu0 %v1270
      %1324 = vmatprep.subr.bf16.mxu0 0
      %1325 = vmatpush1.bf16.msra.mxu0 %v1271
      %1326 = vmatprep.subr.bf16.mxu0 0
      %1327 = vmatpush1.bf16.msra.mxu0 %v1272
      %1328 = vmatprep.subr.bf16.mxu0 0
      %1329 = vmatpush1.bf16.msra.mxu0 %v1273
      %1330 = vmatprep.subr.bf16.mxu0 0
      %1331 = vmatpush1.bf16.msra.mxu0 %v1274
      %1332 = vmatprep.subr.bf16.mxu0 0
      %1333 = vmatpush1.bf16.msra.mxu0 %v1275
      %1334 = vmatprep.subr.bf16.mxu0 0
      %1335 = vmatpush1.bf16.msra.mxu0 %v1276
      %1336 = vmatprep.subr.bf16.mxu0 0
      %1337 = vmatpush1.bf16.msra.mxu0 %v1277
      %1338 = vmatprep.subr.bf16.mxu0 0
      %1339 = vmatpush1.bf16.msra.mxu0 %v1278
      %1340 = vmatprep.subr.bf16.mxu0 0
      %1341 = vmatpush1.bf16.msra.mxu0 %v1279
      %1342 = vmatprep.subr.bf16.mxu0 0
      %1343 = vmatpush1.bf16.msra.mxu0 %v1280
      %1344 = vmatprep.subr.bf16.mxu0 0
      %1345 = vmatpush1.bf16.msra.mxu0 %v1281
      %1346 = vmatprep.mubr.bf16.mxu0 %v1075
      %1347 = vmatmul.mubr.bf16.gmra.mrb[0].mxu0 %v1074
      %v1348 = vpop.f32.mrb[0].mxu0
      %v1349 = vadd.f32 0.0, %v1348
      %v1350 = vpop.f32.mrb[0].mxu0
      %v1351 = vpop.f32.mrb[0].mxu0
      %v1352 = vadd.f32 0.0, %v1351
      %v1353 = vpop.f32.mrb[0].mxu0
      %1354 = vmatprep.mubr.bf16.mxu0 %v1078
      %1355 = vmatmul.mubr.bf16.gmra.mrb[0].mxu0 %v1077
      %v1356 = vpop.f32.mrb[0].mxu0
      %v1357 = vadd.f32 0.0, %v1356
      %v1358 = vpop.f32.mrb[0].mxu0
      %v1359 = vpop.f32.mrb[0].mxu0
      %v1360 = vadd.f32 0.0, %v1359
      %v1361 = vpop.f32.mrb[0].mxu0
      %1362 = vmatprep.mubr.bf16.mxu0 %v1081
      %1363 = vmatmul.mubr.bf16.gmra.mrb[0].mxu0 %v1080
      %v1364 = vpop.f32.mrb[0].mxu0
      %v1365 = vadd.f32 0.0, %v1364
      %v1366 = vpop.f32.mrb[0].mxu0
      %v1367 = vpop.f32.mrb[0].mxu0
      %v1368 = vadd.f32 0.0, %v1367
      %v1369 = vpop.f32.mrb[0].mxu0
      %1370 = vmatprep.mubr.bf16.mxu0 %v1084
      %1371 = vmatmul.mubr.bf16.gmra.mrb[0].mxu0 %v1083
      %v1372 = vpop.f32.mrb[0].mxu0
      %v1373 = vadd.f32 0.0, %v1372
      %v1374 = vpop.f32.mrb[0].mxu0
      %v1375 = vpop.f32.mrb[0].mxu0
      %v1376 = vadd.f32 0.0, %v1375
      %v1377 = vpop.f32.mrb[0].mxu0
      %1378 = vmatprep.mubr.bf16.mxu0 %v1087
      %1379 = vmatmul.mubr.bf16.gmra.mrb[0].mxu0 %v1086
      %v1380 = vpop.f32.mrb[0].mxu0
      %v1381 = vadd.f32 0.0, %v1380
      %v1382 = vpop.f32.mrb[0].mxu0
      %v1383 = vpop.f32.mrb[0].mxu0
      %v1384 = vadd.f32 0.0, %v1383
      %v1385 = vpop.f32.mrb[0].mxu0
      %1386 = vmatprep.mubr.bf16.mxu0 %v1090
      %1387 = vmatmul.mubr.bf16.gmra.mrb[0].mxu0 %v1089
      %v1388 = vpop.f32.mrb[0].mxu0
      %v1389 = vadd.f32 0.0, %v1388
      %v1390 = vpop.f32.mrb[0].mxu0
      %v1391 = vpop.f32.mrb[0].mxu0
      %v1392 = vadd.f32 0.0, %v1391
      %v1393 = vpop.f32.mrb[0].mxu0
      %1394 = vmatprep.mubr.bf16.mxu0 %v1093
      %1395 = vmatmul.mubr.bf16.gmra.mrb[0].mxu0 %v1092
      %v1396 = vpop.f32.mrb[0].mxu0
      %v1397 = vadd.f32 0.0, %v1396
      %v1398 = vpop.f32.mrb[0].mxu0
      %v1399 = vpop.f32.mrb[0].mxu0
      %v1400 = vadd.f32 0.0, %v1399
      %v1401 = vpop.f32.mrb[0].mxu0
      %1402 = vmatprep.mubr.bf16.mxu0 %v1096
      %1403 = vmatmul.mubr.bf16.gmra.mrb[0].mxu0 %v1095
      %v1404 = vpop.f32.mrb[0].mxu0
      %v1405 = vadd.f32 0.0, %v1404
      %v1406 = vpop.f32.mrb[0].mxu0
      %v1407 = vpop.f32.mrb[0].mxu0
      %v1408 = vadd.f32 0.0, %v1407
      %v1409 = vpop.f32.mrb[0].mxu0
      %1410 = vmatprep.mubr.bf16.mxu0 %v1099
      %1411 = vmatmul.mubr.bf16.gmra.mrb[0].mxu0 %v1098
      %v1412 = vpop.f32.mrb[0].mxu0
      %v1413 = vadd.f32 0.0, %v1412
      %v1414 = vpop.f32.mrb[0].mxu0
      %v1415 = vpop.f32.mrb[0].mxu0
      %v1416 = vadd.f32 0.0, %v1415
      %v1417 = vpop.f32.mrb[0].mxu0
      %1418 = vmatprep.mubr.bf16.mxu0 %v1102
      %1419 = vmatmul.mubr.bf16.gmra.mrb[0].mxu0 %v1101
      %v1420 = vpop.f32.mrb[0].mxu0
      %v1421 = vadd.f32 0.0, %v1420
      %v1422 = vpop.f32.mrb[0].mxu0
      %v1423 = vpop.f32.mrb[0].mxu0
      %v1424 = vadd.f32 0.0, %v1423
      %v1425 = vpop.f32.mrb[0].mxu0
      %1426 = vmatprep.mubr.bf16.mxu0 %v1105
      %1427 = vmatmul.mubr.bf16.gmra.mrb[0].mxu0 %v1104
      %v1428 = vpop.f32.mrb[0].mxu0
      %v1429 = vadd.f32 0.0, %v1428
      %v1430 = vpop.f32.mrb[0].mxu0
      %v1431 = vpop.f32.mrb[0].mxu0
      %v1432 = vadd.f32 0.0, %v1431
      %v1433 = vpop.f32.mrb[0].mxu0
      %1434 = vmatprep.mubr.bf16.mxu0 %v1108
      %1435 = vmatmul.mubr.bf16.gmra.mrb[0].mxu0 %v1107
      %v1436 = vpop.f32.mrb[0].mxu0
      %v1437 = vadd.f32 0.0, %v1436
      %v1438 = vpop.f32.mrb[0].mxu0
      %v1439 = vpop.f32.mrb[0].mxu0
      %v1440 = vadd.f32 0.0, %v1439
      %v1441 = vpop.f32.mrb[0].mxu0
      %1442 = vmatprep.mubr.bf16.mxu0 %v1111
      %1443 = vmatmul.mubr.bf16.gmra.mrb[0].mxu0 %v1110
      %v1444 = vpop.f32.mrb[0].mxu0
      %v1445 = vadd.f32 0.0, %v1444
      %v1446 = vpop.f32.mrb[0].mxu0
      %v1447 = vpop.f32.mrb[0].mxu0
      %v1448 = vadd.f32 0.0, %v1447
      %v1449 = vpop.f32.mrb[0].mxu0
      %1450 = vmatprep.mubr.bf16.mxu0 %v1114
      %1451 = vmatmul.mubr.bf16.gmra.mrb[0].mxu0 %v1113
      %v1452 = vpop.f32.mrb[0].mxu0
      %v1453 = vadd.f32 0.0, %v1452
      %v1454 = vpop.f32.mrb[0].mxu0
      %v1455 = vpop.f32.mrb[0].mxu0
      %v1456 = vadd.f32 0.0, %v1455
      %v1457 = vpop.f32.mrb[0].mxu0
      %1458 = vmatprep.mubr.bf16.mxu0 %v1117
      %1459 = vmatmul.mubr.bf16.gmra.mrb[0].mxu0 %v1116
      %v1460 = vpop.f32.mrb[0].mxu0
      %v1461 = vadd.f32 0.0, %v1460
      %v1462 = vpop.f32.mrb[0].mxu0
      %v1463 = vpop.f32.mrb[0].mxu0
      %v1464 = vadd.f32 0.0, %v1463
      %v1465 = vpop.f32.mrb[0].mxu0
      %1466 = vmatprep.mubr.bf16.mxu0 %v1120
      %1467 = vmatmul.mubr.bf16.gmra.mrb[0].mxu0 %v1119
      %v1468 = vpop.f32.mrb[0].mxu0
      %v1469 = vadd.f32 0.0, %v1468
      %v1470 = vpop.f32.mrb[0].mxu0
      %v1471 = vpop.f32.mrb[0].mxu0
      %v1472 = vadd.f32 0.0, %v1471
      %v1473 = vpop.f32.mrb[0].mxu0
      %1474 = vdwg.mxu0
      %1475 = vmatprep.subr.bf16.mxu0 0
      %1476 = vmatpush1.bf16.msra.mxu0 %v1282
      %1477 = vmatprep.subr.bf16.mxu0 0
      %1478 = vmatpush1.bf16.msra.mxu0 %v1283
      %1479 = vmatprep.subr.bf16.mxu0 0
      %1480 = vmatpush1.bf16.msra.mxu0 %v1284
      %1481 = vmatprep.subr.bf16.mxu0 0
      %1482 = vmatpush1.bf16.msra.mxu0 %v1285
      %1483 = vmatprep.subr.bf16.mxu0 0
      %1484 = vmatpush1.bf16.msra.mxu0 %v1286
      %1485 = vmatprep.subr.bf16.mxu0 0
      %1486 = vmatpush1.bf16.msra.mxu0 %v1287
      %1487 = vmatprep.subr.bf16.mxu0 0
      %1488 = vmatpush1.bf16.msra.mxu0 %v1288
      %1489 = vmatprep.subr.bf16.mxu0 0
      %1490 = vmatpush1.bf16.msra.mxu0 %v1289
      %1491 = vmatprep.subr.bf16.mxu0 0
      %1492 = vmatpush1.bf16.msra.mxu0 0
      %1493 = vmatprep.subr.bf16.mxu0 0
      %1494 = vmatpush1.bf16.msra.mxu0 0
      %1495 = vmatprep.subr.bf16.mxu0 0
      %1496 = vmatpush1.bf16.msra.mxu0 0
      %1497 = vmatprep.subr.bf16.mxu0 0
      %1498 = vmatpush1.bf16.msra.mxu0 0
      %1499 = vmatprep.subr.bf16.mxu0 0
      %1500 = vmatpush1.bf16.msra.mxu0 0
      %1501 = vmatprep.subr.bf16.mxu0 0
      %1502 = vmatpush1.bf16.msra.mxu0 0
      %1503 = vmatprep.subr.bf16.mxu0 0
      %1504 = vmatpush1.bf16.msra.mxu0 0
      %1505 = vmatprep.subr.bf16.mxu0 0
      %1506 = vmatpush1.bf16.msra.mxu0 0
      %1507 = vmatprep.mubr.bf16.mxu0 0
      %1508 = vmatmul.mubr.bf16.gmra.mrb[0].mxu0 %v1076
      %v1509 = vpop.f32.mrb[0].mxu0
      %v1510 = vadd.f32 %v1349, %v1509
      %v1511 = vpop.f32.mrb[0].mxu0
      %v1512 = vpop.f32.mrb[0].mxu0
      %v1513 = vadd.f32 %v1352, %v1512
      %v1514 = vpop.f32.mrb[0].mxu0
      %1515 = vmatprep.mubr.bf16.mxu0 0
      %1516 = vmatmul.mubr.bf16.gmra.mrb[0].mxu0 %v1079
      %v1517 = vpop.f32.mrb[0].mxu0
      %v1518 = vadd.f32 %v1357, %v1517
      %v1519 = vpop.f32.mrb[0].mxu0
      %v1520 = vpop.f32.mrb[0].mxu0
      %v1521 = vadd.f32 %v1360, %v1520
      %v1522 = vpop.f32.mrb[0].mxu0
      %1523 = vmatprep.mubr.bf16.mxu0 0
      %1524 = vmatmul.mubr.bf16.gmra.mrb[0].mxu0 %v1082
      %v1525 = vpop.f32.mrb[0].mxu0
      %v1526 = vadd.f32 %v1365, %v1525
      %v1527 = vpop.f32.mrb[0].mxu0
      %v1528 = vpop.f32.mrb[0].mxu0
      %v1529 = vadd.f32 %v1368, %v1528
      %v1530 = vpop.f32.mrb[0].mxu0
      %1531 = vmatprep.mubr.bf16.mxu0 0
      %1532 = vmatmul.mubr.bf16.gmra.mrb[0].mxu0 %v1085
      %v1533 = vpop.f32.mrb[0].mxu0
      %v1534 = vadd.f32 %v1373, %v1533
      %v1535 = vpop.f32.mrb[0].mxu0
      %v1536 = vpop.f32.mrb[0].mxu0
      %v1537 = vadd.f32 %v1376, %v1536
      %v1538 = vpop.f32.mrb[0].mxu0
      %1539 = vmatprep.mubr.bf16.mxu0 0
      %1540 = vmatmul.mubr.bf16.gmra.mrb[0].mxu0 %v1088
      %v1541 = vpop.f32.mrb[0].mxu0
      %v1542 = vadd.f32 %v1381, %v1541
      %v1543 = vpop.f32.mrb[0].mxu0
      %v1544 = vpop.f32.mrb[0].mxu0
      %v1545 = vadd.f32 %v1384, %v1544
      %v1546 = vpop.f32.mrb[0].mxu0
      %1547 = vmatprep.mubr.bf16.mxu0 0
      %1548 = vmatmul.mubr.bf16.gmra.mrb[0].mxu0 %v1091
      %v1549 = vpop.f32.mrb[0].mxu0
      %v1550 = vadd.f32 %v1389, %v1549
      %v1551 = vpop.f32.mrb[0].mxu0
      %v1552 = vpop.f32.mrb[0].mxu0
      %v1553 = vadd.f32 %v1392, %v1552
      %v1554 = vpop.f32.mrb[0].mxu0
      %1555 = vmatprep.mubr.bf16.mxu0 0
      %1556 = vmatmul.mubr.bf16.gmra.mrb[0].mxu0 %v1094
      %v1557 = vpop.f32.mrb[0].mxu0
      %v1558 = vadd.f32 %v1397, %v1557
      %v1559 = vpop.f32.mrb[0].mxu0
      %v1560 = vpop.f32.mrb[0].mxu0
      %v1561 = vadd.f32 %v1400, %v1560
      %v1562 = vpop.f32.mrb[0].mxu0
      %1563 = vmatprep.mubr.bf16.mxu0 0
      %1564 = vmatmul.mubr.bf16.gmra.mrb[0].mxu0 %v1097
      %v1565 = vpop.f32.mrb[0].mxu0
      %v1566 = vadd.f32 %v1405, %v1565
      %v1567 = vpop.f32.mrb[0].mxu0
      %v1568 = vpop.f32.mrb[0].mxu0
      %v1569 = vadd.f32 %v1408, %v1568
      %v1570 = vpop.f32.mrb[0].mxu0
      %1571 = vmatprep.mubr.bf16.mxu0 0
      %1572 = vmatmul.mubr.bf16.gmra.mrb[0].mxu0 %v1100
      %v1573 = vpop.f32.mrb[0].mxu0
      %v1574 = vadd.f32 %v1413, %v1573
      %v1575 = vpop.f32.mrb[0].mxu0
      %v1576 = vpop.f32.mrb[0].mxu0
      %v1577 = vadd.f32 %v1416, %v1576
      %v1578 = vpop.f32.mrb[0].mxu0
      %1579 = vmatprep.mubr.bf16.mxu0 0
      %1580 = vmatmul.mubr.bf16.gmra.mrb[0].mxu0 %v1103
      %v1581 = vpop.f32.mrb[0].mxu0
      %v1582 = vadd.f32 %v1421, %v1581
      %v1583 = vpop.f32.mrb[0].mxu0
      %v1584 = vpop.f32.mrb[0].mxu0
      %v1585 = vadd.f32 %v1424, %v1584
      %v1586 = vpop.f32.mrb[0].mxu0
      %1587 = vmatprep.mubr.bf16.mxu0 0
      %1588 = vmatmul.mubr.bf16.gmra.mrb[0].mxu0 %v1106
      %v1589 = vpop.f32.mrb[0].mxu0
      %v1590 = vadd.f32 %v1429, %v1589
      %v1591 = vpop.f32.mrb[0].mxu0
      %v1592 = vpop.f32.mrb[0].mxu0
      %v1593 = vadd.f32 %v1432, %v1592
      %v1594 = vpop.f32.mrb[0].mxu0
      %1595 = vmatprep.mubr.bf16.mxu0 0
      %1596 = vmatmul.mubr.bf16.gmra.mrb[0].mxu0 %v1109
      %v1597 = vpop.f32.mrb[0].mxu0
      %v1598 = vadd.f32 %v1437, %v1597
      %v1599 = vpop.f32.mrb[0].mxu0
      %v1600 = vpop.f32.mrb[0].mxu0
      %v1601 = vadd.f32 %v1440, %v1600
      %v1602 = vpop.f32.mrb[0].mxu0
      %1603 = vmatprep.mubr.bf16.mxu0 0
      %1604 = vmatmul.mubr.bf16.gmra.mrb[0].mxu0 %v1112
      %v1605 = vpop.f32.mrb[0].mxu0
      %v1606 = vadd.f32 %v1445, %v1605
      %v1607 = vpop.f32.mrb[0].mxu0
      %v1608 = vpop.f32.mrb[0].mxu0
      %v1609 = vadd.f32 %v1448, %v1608
      %v1610 = vpop.f32.mrb[0].mxu0
      %1611 = vmatprep.mubr.bf16.mxu0 0
      %1612 = vmatmul.mubr.bf16.gmra.mrb[0].mxu0 %v1115
      %v1613 = vpop.f32.mrb[0].mxu0
      %v1614 = vadd.f32 %v1453, %v1613
      %v1615 = vpop.f32.mrb[0].mxu0
      %v1616 = vpop.f32.mrb[0].mxu0
      %v1617 = vadd.f32 %v1456, %v1616
      %v1618 = vpop.f32.mrb[0].mxu0
      %1619 = vmatprep.mubr.bf16.mxu0 0
      %1620 = vmatmul.mubr.bf16.gmra.mrb[0].mxu0 %v1118
      %v1621 = vpop.f32.mrb[0].mxu0
      %v1622 = vadd.f32 %v1461, %v1621
      %v1623 = vpop.f32.mrb[0].mxu0
      %v1624 = vpop.f32.mrb[0].mxu0
      %v1625 = vadd.f32 %v1464, %v1624
      %v1626 = vpop.f32.mrb[0].mxu0
      %1627 = vmatprep.mubr.bf16.mxu0 0
      %1628 = vmatmul.mubr.bf16.gmra.mrb[0].mxu0 %v1121
      %v1629 = vpop.f32.mrb[0].mxu0
      %v1630 = vadd.f32 %v1469, %v1629
      %v1631 = vpop.f32.mrb[0].mxu0
      %v1632 = vpop.f32.mrb[0].mxu0
      %v1633 = vadd.f32 %v1472, %v1632
      %v1634 = vpop.f32.mrb[0].mxu0
      %1635 = vdwg.mxu0
      %1636 = vst [vmem:[#allocation3] sm:$0xff] %v1510
      %1637 = vst [vmem:[#allocation3 + $0x8] sm:$0xff] %v1513
      %1638 = vst [vmem:[#allocation3 + $0x10] sm:$0xff] %v1518
      %1639 = vst [vmem:[#allocation3 + $0x18] sm:$0xff] %v1521
      %1640 = vst [vmem:[#allocation3 + $0x20] sm:$0xff] %v1526
      %1641 = vst [vmem:[#allocation3 + $0x28] sm:$0xff] %v1529
      %1642 = vst [vmem:[#allocation3 + $0x30] sm:$0xff] %v1534
      %1643 = vst [vmem:[#allocation3 + $0x38] sm:$0xff] %v1537
      %1644 = vst [vmem:[#allocation3 + $0x40] sm:$0xff] %v1542
      %1645 = vst [vmem:[#allocation3 + $0x48] sm:$0xff] %v1545
      %1646 = vst [vmem:[#allocation3 + $0x50] sm:$0xff] %v1550
      %1647 = vst [vmem:[#allocation3 + $0x58] sm:$0xff] %v1553
      %1648 = vst [vmem:[#allocation3 + $0x60] sm:$0xff] %v1558
      %1649 = vst [vmem:[#allocation3 + $0x68] sm:$0xff] %v1561
      %1650 = vst [vmem:[#allocation3 + $0x70] sm:$0xff] %v1566
      %1651 = vst [vmem:[#allocation3 + $0x78] sm:$0xff] %v1569
      %1652 = vst [vmem:[#allocation3 + $0x80] sm:$0xff] %v1574
      %1653 = vst [vmem:[#allocation3 + $0x88] sm:$0xff] %v1577
      %1654 = vst [vmem:[#allocation3 + $0x90] sm:$0xff] %v1582
      %1655 = vst [vmem:[#allocation3 + $0x98] sm:$0xff] %v1585
      %1656 = vst [vmem:[#allocation3 + $0xa0] sm:$0xff] %v1590
      %1657 = vst [vmem:[#allocation3 + $0xa8] sm:$0xff] %v1593
      %1658 = vst [vmem:[#allocation3 + $0xb0] sm:$0xff] %v1598
      %1659 = vst [vmem:[#allocation3 + $0xb8] sm:$0xff] %v1601
      %1660 = vst [vmem:[#allocation3 + $0xc0] sm:$0xff] %v1606
      %1661 = vst [vmem:[#allocation3 + $0xc8] sm:$0xff] %v1609
      %1662 = vst [vmem:[#allocation3 + $0xd0] sm:$0xff] %v1614
      %1663 = vst [vmem:[#allocation3 + $0xd8] sm:$0xff] %v1617
      %1664 = vst [vmem:[#allocation3 + $0xe0] sm:$0xff] %v1622
      %1665 = vst [vmem:[#allocation3 + $0xe8] sm:$0xff] %v1625
      %1666 = vst [vmem:[#allocation3 + $0xf0] sm:$0xff] %v1630
      %1667 = vst [vmem:[#allocation3 + $0xf8] sm:$0xff] %v1633
      %s1668 = scalar_lea.vmem [#allocation2], 24
      %v1669 = vld [vmem:[%s1668] sm:$0xff]
      %v1670 = vld [vmem:[%s1668 + $0x8] sm:$0xff]
      %v1671 = vld [vmem:[%s1668 + $0x10] sm:$0xff]
      %v1672 = vld [vmem:[%s1668 + $0x18] sm:$0xff]
      %v1673 = vld [vmem:[%s1668 + $0x20] sm:$0xff]
      %v1674 = vld [vmem:[%s1668 + $0x28] sm:$0xff]
      %v1675 = vld [vmem:[%s1668 + $0x30] sm:$0xff]
      %v1676 = vld [vmem:[%s1668 + $0x38] sm:$0xff]
      %v1677 = vld [vmem:[%s1668 + $0x40] sm:$0xff]
      %v1678 = vld [vmem:[%s1668 + $0x48] sm:$0xff]
      %v1679 = vld [vmem:[%s1668 + $0x50] sm:$0xff]
      %v1680 = vld [vmem:[%s1668 + $0x58] sm:$0xff]
      %v1681 = vld [vmem:[%s1668 + $0x60] sm:$0xff]
      %v1682 = vld [vmem:[%s1668 + $0x68] sm:$0xff]
      %v1683 = vld [vmem:[%s1668 + $0x70] sm:$0xff]
      %v1684 = vld [vmem:[%s1668 + $0x78] sm:$0xff]
      %v1685 = vld [vmem:[%s1668 + $0x80] sm:$0xff]
      %v1686 = vld [vmem:[%s1668 + $0x88] sm:$0xff]
      %v1687 = vld [vmem:[%s1668 + $0x90] sm:$0xff]
      %v1688 = vld [vmem:[%s1668 + $0x98] sm:$0xff]
      %v1689 = vld [vmem:[%s1668 + $0xa0] sm:$0xff]
      %v1690 = vld [vmem:[%s1668 + $0xa8] sm:$0xff]
      %v1691 = vld [vmem:[%s1668 + $0xb0] sm:$0xff]
      %v1692 = vld [vmem:[%s1668 + $0xb8] sm:$0xff]
      %v1693 = vld [vmem:[%s1668 + $0xc0] sm:$0xff]
      %v1694 = vld [vmem:[%s1668 + $0xc8] sm:$0xff]
      %v1695 = vld [vmem:[%s1668 + $0xd0] sm:$0xff]
      %v1696 = vld [vmem:[%s1668 + $0xd8] sm:$0xff]
      %v1697 = vld [vmem:[%s1668 + $0xe0] sm:$0xff]
      %v1698 = vld [vmem:[%s1668 + $0xe8] sm:$0xff]
      %v1699 = vld [vmem:[%s1668 + $0xf0] sm:$0xff]
      %v1700 = vld [vmem:[%s1668 + $0xf8] sm:$0xff]
      %v1701 = vld [vmem:[%s1668 + $0x100] sm:$0xff]
      %v1702 = vld [vmem:[%s1668 + $0x108] sm:$0xff]
      %v1703 = vld [vmem:[%s1668 + $0x110] sm:$0xff]
      %v1704 = vld [vmem:[%s1668 + $0x118] sm:$0xff]
      %v1705 = vld [vmem:[%s1668 + $0x120] sm:$0xff]
      %v1706 = vld [vmem:[%s1668 + $0x128] sm:$0xff]
      %v1707 = vld [vmem:[%s1668 + $0x130] sm:$0xff]
      %v1708 = vld [vmem:[%s1668 + $0x138] sm:$0xff]
      %v1709 = vld [vmem:[%s1668 + $0x140] sm:$0xff]
      %v1710 = vld [vmem:[%s1668 + $0x148] sm:$0xff]
      %v1711 = vld [vmem:[%s1668 + $0x150] sm:$0xff]
      %v1712 = vld [vmem:[%s1668 + $0x158] sm:$0xff]
      %v1713 = vld [vmem:[%s1668 + $0x160] sm:$0xff]
      %v1714 = vld [vmem:[%s1668 + $0x168] sm:$0xff]
      %v1715 = vld [vmem:[%s1668 + $0x170] sm:$0xff]
      %v1716 = vld [vmem:[%s1668 + $0x178] sm:$0xff]
      %s1717 = scalar_lea.vmem %s1, 192
      %v1718 = vld [vmem:[%s1717] sm:$0xf]
      %v1719 = vld [vmem:[%s1717 + $0x4] sm:$0xf]
      %v1720 = vld [vmem:[%s1717 + $0x8] sm:$0xf]
      %v1721 = vld [vmem:[%s1717 + $0xc] sm:$0xf]
      %v1722 = vld [vmem:[%s1717 + $0x10] sm:$0xf]
      %v1723 = vld [vmem:[%s1717 + $0x14] sm:$0xf]
      %v1724 = vld [vmem:[%s1717 + $0x18] sm:$0xf]
      %v1725 = vld [vmem:[%s1717 + $0x1c] sm:$0xf]
      %v1726 = vld [vmem:[%s1717 + $0x20] sm:$0xf]
      %v1727 = vld [vmem:[%s1717 + $0x24] sm:$0xf]
      %v1728 = vld [vmem:[%s1717 + $0x28] sm:$0xf]
      %v1729 = vld [vmem:[%s1717 + $0x2c] sm:$0xf]
      %v1730 = vld [vmem:[%s1717 + $0x30] sm:$0xf]
      %v1731 = vld [vmem:[%s1717 + $0x34] sm:$0xf]
      %v1732 = vld [vmem:[%s1717 + $0x38] sm:$0xf]
      %v1733 = vld [vmem:[%s1717 + $0x3c] sm:$0xf]
      %v1734 = vld [vmem:[%s1717 + $0x40] sm:$0xf]
      %v1735 = vld [vmem:[%s1717 + $0x44] sm:$0xf]
      %v1736 = vld [vmem:[%s1717 + $0x48] sm:$0xf]
      %v1737 = vld [vmem:[%s1717 + $0x4c] sm:$0xf]
      %v1738 = vld [vmem:[%s1717 + $0x50] sm:$0xf]
      %v1739 = vld [vmem:[%s1717 + $0x54] sm:$0xf]
      %v1740 = vld [vmem:[%s1717 + $0x58] sm:$0xf]
      %v1741 = vld [vmem:[%s1717 + $0x5c] sm:$0xf]
      %v1742 = vld [vmem:[%s1717 + $0x60] sm:$0xf]
      %v1743 = vld [vmem:[%s1717 + $0x64] sm:$0xf]
      %v1744 = vld [vmem:[%s1717 + $0x68] sm:$0xf]
      %v1745 = vld [vmem:[%s1717 + $0x6c] sm:$0xf]
      %v1746 = vld [vmem:[%s1717 + $0x70] sm:$0xf]
      %v1747 = vld [vmem:[%s1717 + $0x74] sm:$0xf]
      %v1748 = vld [vmem:[%s1717 + $0x78] sm:$0xf]
      %v1749 = vld [vmem:[%s1717 + $0x7c] sm:$0xf]
      %v1750 = vld [vmem:[%s1717 + $0x80] sm:$0xf]
      %v1751 = vld [vmem:[%s1717 + $0x84] sm:$0xf]
      %v1752 = vld [vmem:[%s1717 + $0x88] sm:$0xf]
      %v1753 = vld [vmem:[%s1717 + $0x8c] sm:$0xf]
      %v1754 = vld [vmem:[%s1717 + $0x90] sm:$0xf]
      %v1755 = vld [vmem:[%s1717 + $0x94] sm:$0xf]
      %v1756 = vld [vmem:[%s1717 + $0x98] sm:$0xf]
      %v1757 = vld [vmem:[%s1717 + $0x9c] sm:$0xf]
      %v1758 = vld [vmem:[%s1717 + $0xa0] sm:$0xf]
      %v1759 = vld [vmem:[%s1717 + $0xa4] sm:$0xf]
      %v1760 = vld [vmem:[%s1717 + $0xa8] sm:$0xf]
      %v1761 = vld [vmem:[%s1717 + $0xac] sm:$0xf]
      %v1762 = vld [vmem:[%s1717 + $0xb0] sm:$0xf]
      %v1763 = vld [vmem:[%s1717 + $0xb4] sm:$0xf]
      %v1764 = vld [vmem:[%s1717 + $0xb8] sm:$0xf]
      %v1765 = vld [vmem:[%s1717 + $0xbc] sm:$0xf]
      %v1814 = vunpack.c.l.b16 %v1718
      %v1815 = vunpack.c.l.b16 %v1719
      %v1816 = vunpack.c.l.b16 %v1720
      %v1817 = vunpack.c.l.b16 %v1721
      %v1818 = vunpack.c.l.b16 %v1722
      %v1819 = vunpack.c.l.b16 %v1723
      %v1820 = vunpack.c.l.b16 %v1724
      %v1821 = vunpack.c.l.b16 %v1725
      %v1822 = vunpack.c.l.b16 %v1726
      %v1823 = vunpack.c.l.b16 %v1727
      %v1824 = vunpack.c.l.b16 %v1728
      %v1825 = vunpack.c.l.b16 %v1729
      %v1826 = vunpack.c.l.b16 %v1730
      %v1827 = vunpack.c.l.b16 %v1731
      %v1828 = vunpack.c.l.b16 %v1732
      %v1829 = vunpack.c.l.b16 %v1733
      %v1830 = vunpack.c.l.b16 %v1734
      %v1831 = vunpack.c.l.b16 %v1735
      %v1832 = vunpack.c.l.b16 %v1736
      %v1833 = vunpack.c.l.b16 %v1737
      %v1834 = vunpack.c.l.b16 %v1738
      %v1835 = vunpack.c.l.b16 %v1739
      %v1836 = vunpack.c.l.b16 %v1740
      %v1837 = vunpack.c.l.b16 %v1741
      %v1838 = vunpack.c.l.b16 %v1742
      %v1839 = vunpack.c.l.b16 %v1743
      %v1840 = vunpack.c.l.b16 %v1744
      %v1841 = vunpack.c.l.b16 %v1745
      %v1842 = vunpack.c.l.b16 %v1746
      %v1843 = vunpack.c.l.b16 %v1747
      %v1844 = vunpack.c.l.b16 %v1748
      %v1845 = vunpack.c.l.b16 %v1749
      %v1846 = vunpack.c.l.b16 %v1750
      %v1847 = vunpack.c.l.b16 %v1751
      %v1848 = vunpack.c.l.b16 %v1752
      %v1849 = vunpack.c.l.b16 %v1753
      %v1850 = vunpack.c.l.b16 %v1754
      %v1851 = vunpack.c.l.b16 %v1755
      %v1852 = vunpack.c.l.b16 %v1756
      %v1853 = vunpack.c.l.b16 %v1757
      %v1854 = vunpack.c.l.b16 %v1758
      %v1855 = vunpack.c.l.b16 %v1759
      %v1856 = vunpack.c.l.b16 %v1760
      %v1857 = vunpack.c.l.b16 %v1761
      %v1858 = vunpack.c.l.b16 %v1762
      %v1859 = vunpack.c.l.b16 %v1763
      %v1860 = vunpack.c.l.b16 %v1764
      %v1861 = vunpack.c.l.b16 %v1765
      %v1862 = vpack.c.b16 %v1815, %v1814
      %v1863 = vpack.c.b16 %v1817, %v1816
      %v1864 = vpack.c.b16 %v1819, %v1818
      %v1865 = vpack.c.b16 %v1821, %v1820
      %v1866 = vpack.c.b16 %v1823, %v1822
      %v1867 = vpack.c.b16 %v1825, %v1824
      %v1868 = vpack.c.b16 %v1827, %v1826
      %v1869 = vpack.c.b16 %v1829, %v1828
      %v1870 = vpack.c.b16 %v1831, %v1830
      %v1871 = vpack.c.b16 %v1833, %v1832
      %v1872 = vpack.c.b16 %v1835, %v1834
      %v1873 = vpack.c.b16 %v1837, %v1836
      %v1874 = vpack.c.b16 %v1839, %v1838
      %v1875 = vpack.c.b16 %v1841, %v1840
      %v1876 = vpack.c.b16 %v1843, %v1842
      %v1877 = vpack.c.b16 %v1845, %v1844
      %v1878 = vpack.c.b16 %v1847, %v1846
      %v1879 = vpack.c.b16 %v1849, %v1848
      %v1880 = vpack.c.b16 %v1851, %v1850
      %v1881 = vpack.c.b16 %v1853, %v1852
      %v1882 = vpack.c.b16 %v1855, %v1854
      %v1883 = vpack.c.b16 %v1857, %v1856
      %v1884 = vpack.c.b16 %v1859, %v1858
      %v1885 = vpack.c.b16 %v1861, %v1860
      %1910 = vmatprep.subr.bf16.mxu0 0
      %1911 = vmatpush1.bf16.msra.mxu0 %v1862
      %1912 = vmatprep.subr.bf16.mxu0 0
      %1913 = vmatpush1.bf16.msra.mxu0 %v1863
      %1914 = vmatprep.subr.bf16.mxu0 0
      %1915 = vmatpush1.bf16.msra.mxu0 %v1864
      %1916 = vmatprep.subr.bf16.mxu0 0
      %1917 = vmatpush1.bf16.msra.mxu0 %v1865
      %1918 = vmatprep.subr.bf16.mxu0 0
      %1919 = vmatpush1.bf16.msra.mxu0 %v1866
      %1920 = vmatprep.subr.bf16.mxu0 0
      %1921 = vmatpush1.bf16.msra.mxu0 %v1867
      %1922 = vmatprep.subr.bf16.mxu0 0
      %1923 = vmatpush1.bf16.msra.mxu0 %v1868
      %1924 = vmatprep.subr.bf16.mxu0 0
      %1925 = vmatpush1.bf16.msra.mxu0 %v1869
      %1926 = vmatprep.subr.bf16.mxu0 0
      %1927 = vmatpush1.bf16.msra.mxu0 %v1870
      %1928 = vmatprep.subr.bf16.mxu0 0
      %1929 = vmatpush1.bf16.msra.mxu0 %v1871
      %1930 = vmatprep.subr.bf16.mxu0 0
      %1931 = vmatpush1.bf16.msra.mxu0 %v1872
      %1932 = vmatprep.subr.bf16.mxu0 0
      %1933 = vmatpush1.bf16.msra.mxu0 %v1873
      %1934 = vmatprep.subr.bf16.mxu0 0
      %1935 = vmatpush1.bf16.msra.mxu0 %v1874
      %1936 = vmatprep.subr.bf16.mxu0 0
      %1937 = vmatpush1.bf16.msra.mxu0 %v1875
      %1938 = vmatprep.subr.bf16.mxu0 0
      %1939 = vmatpush1.bf16.msra.mxu0 %v1876
      %1940 = vmatprep.subr.bf16.mxu0 0
      %1941 = vmatpush1.bf16.msra.mxu0 %v1877
      %1942 = vmatprep.mubr.bf16.mxu0 %v1670
      %1943 = vmatmul.mubr.bf16.gmra.mrb[0].mxu0 %v1669
      %v1944 = vpop.f32.mrb[0].mxu0
      %v1945 = vadd.f32 0.0, %v1944
      %v1946 = vpop.f32.mrb[0].mxu0
      %v1947 = vpop.f32.mrb[0].mxu0
      %v1948 = vadd.f32 0.0, %v1947
      %v1949 = vpop.f32.mrb[0].mxu0
      %1950 = vmatprep.mubr.bf16.mxu0 %v1673
      %1951 = vmatmul.mubr.bf16.gmra.mrb[0].mxu0 %v1672
      %v1952 = vpop.f32.mrb[0].mxu0
      %v1953 = vadd.f32 0.0, %v1952
      %v1954 = vpop.f32.mrb[0].mxu0
      %v1955 = vpop.f32.mrb[0].mxu0
      %v1956 = vadd.f32 0.0, %v1955
      %v1957 = vpop.f32.mrb[0].mxu0
      %1958 = vmatprep.mubr.bf16.mxu0 %v1676
      %1959 = vmatmul.mubr.bf16.gmra.mrb[0].mxu0 %v1675
      %v1960 = vpop.f32.mrb[0].mxu0
      %v1961 = vadd.f32 0.0, %v1960
      %v1962 = vpop.f32.mrb[0].mxu0
      %v1963 = vpop.f32.mrb[0].mxu0
      %v1964 = vadd.f32 0.0, %v1963
      %v1965 = vpop.f32.mrb[0].mxu0
      %1966 = vmatprep.mubr.bf16.mxu0 %v1679
      %1967 = vmatmul.mubr.bf16.gmra.mrb[0].mxu0 %v1678
      %v1968 = vpop.f32.mrb[0].mxu0
      %v1969 = vadd.f32 0.0, %v1968
      %v1970 = vpop.f32.mrb[0].mxu0
      %v1971 = vpop.f32.mrb[0].mxu0
      %v1972 = vadd.f32 0.0, %v1971
      %v1973 = vpop.f32.mrb[0].mxu0
      %1974 = vmatprep.mubr.bf16.mxu0 %v1682
      %1975 = vmatmul.mubr.bf16.gmra.mrb[0].mxu0 %v1681
      %v1976 = vpop.f32.mrb[0].mxu0
      %v1977 = vadd.f32 0.0, %v1976
      %v1978 = vpop.f32.mrb[0].mxu0
      %v1979 = vpop.f32.mrb[0].mxu0
      %v1980 = vadd.f32 0.0, %v1979
      %v1981 = vpop.f32.mrb[0].mxu0
      %1982 = vmatprep.mubr.bf16.mxu0 %v1685
      %1983 = vmatmul.mubr.bf16.gmra.mrb[0].mxu0 %v1684
      %v1984 = vpop.f32.mrb[0].mxu0
      %v1985 = vadd.f32 0.0, %v1984
      %v1986 = vpop.f32.mrb[0].mxu0
      %v1987 = vpop.f32.mrb[0].mxu0
      %v1988 = vadd.f32 0.0, %v1987
      %v1989 = vpop.f32.mrb[0].mxu0
      %1990 = vmatprep.mubr.bf16.mxu0 %v1688
      %1991 = vmatmul.mubr.bf16.gmra.mrb[0].mxu0 %v1687
      %v1992 = vpop.f32.mrb[0].mxu0
      %v1993 = vadd.f32 0.0, %v1992
      %v1994 = vpop.f32.mrb[0].mxu0
      %v1995 = vpop.f32.mrb[0].mxu0
      %v1996 = vadd.f32 0.0, %v1995
      %v1997 = vpop.f32.mrb[0].mxu0
      %1998 = vmatprep.mubr.bf16.mxu0 %v1691
      %1999 = vmatmul.mubr.bf16.gmra.mrb[0].mxu0 %v1690
      %v2000 = vpop.f32.mrb[0].mxu0
      %v2001 = vadd.f32 0.0, %v2000
      %v2002 = vpop.f32.mrb[0].mxu0
      %v2003 = vpop.f32.mrb[0].mxu0
      %v2004 = vadd.f32 0.0, %v2003
      %v2005 = vpop.f32.mrb[0].mxu0
      %2006 = vmatprep.mubr.bf16.mxu0 %v1694
      %2007 = vmatmul.mubr.bf16.gmra.mrb[0].mxu0 %v1693
      %v2008 = vpop.f32.mrb[0].mxu0
      %v2009 = vadd.f32 0.0, %v2008
      %v2010 = vpop.f32.mrb[0].mxu0
      %v2011 = vpop.f32.mrb[0].mxu0
      %v2012 = vadd.f32 0.0, %v2011
      %v2013 = vpop.f32.mrb[0].mxu0
      %2014 = vmatprep.mubr.bf16.mxu0 %v1697
      %2015 = vmatmul.mubr.bf16.gmra.mrb[0].mxu0 %v1696
      %v2016 = vpop.f32.mrb[0].mxu0
      %v2017 = vadd.f32 0.0, %v2016
      %v2018 = vpop.f32.mrb[0].mxu0
      %v2019 = vpop.f32.mrb[0].mxu0
      %v2020 = vadd.f32 0.0, %v2019
      %v2021 = vpop.f32.mrb[0].mxu0
      %2022 = vmatprep.mubr.bf16.mxu0 %v1700
      %2023 = vmatmul.mubr.bf16.gmra.mrb[0].mxu0 %v1699
      %v2024 = vpop.f32.mrb[0].mxu0
      %v2025 = vadd.f32 0.0, %v2024
      %v2026 = vpop.f32.mrb[0].mxu0
      %v2027 = vpop.f32.mrb[0].mxu0
      %v2028 = vadd.f32 0.0, %v2027
      %v2029 = vpop.f32.mrb[0].mxu0
      %2030 = vmatprep.mubr.bf16.mxu0 %v1703
      %2031 = vmatmul.mubr.bf16.gmra.mrb[0].mxu0 %v1702
      %v2032 = vpop.f32.mrb[0].mxu0
      %v2033 = vadd.f32 0.0, %v2032
      %v2034 = vpop.f32.mrb[0].mxu0
      %v2035 = vpop.f32.mrb[0].mxu0
      %v2036 = vadd.f32 0.0, %v2035
      %v2037 = vpop.f32.mrb[0].mxu0
      %2038 = vmatprep.mubr.bf16.mxu0 %v1706
      %2039 = vmatmul.mubr.bf16.gmra.mrb[0].mxu0 %v1705
      %v2040 = vpop.f32.mrb[0].mxu0
      %v2041 = vadd.f32 0.0, %v2040
      %v2042 = vpop.f32.mrb[0].mxu0
      %v2043 = vpop.f32.mrb[0].mxu0
      %v2044 = vadd.f32 0.0, %v2043
      %v2045 = vpop.f32.mrb[0].mxu0
      %2046 = vmatprep.mubr.bf16.mxu0 %v1709
      %2047 = vmatmul.mubr.bf16.gmra.mrb[0].mxu0 %v1708
      %v2048 = vpop.f32.mrb[0].mxu0
      %v2049 = vadd.f32 0.0, %v2048
      %v2050 = vpop.f32.mrb[0].mxu0
      %v2051 = vpop.f32.mrb[0].mxu0
      %v2052 = vadd.f32 0.0, %v2051
      %v2053 = vpop.f32.mrb[0].mxu0
      %2054 = vmatprep.mubr.bf16.mxu0 %v1712
      %2055 = vmatmul.mubr.bf16.gmra.mrb[0].mxu0 %v1711
      %v2056 = vpop.f32.mrb[0].mxu0
      %v2057 = vadd.f32 0.0, %v2056
      %v2058 = vpop.f32.mrb[0].mxu0
      %v2059 = vpop.f32.mrb[0].mxu0
      %v2060 = vadd.f32 0.0, %v2059
      %v2061 = vpop.f32.mrb[0].mxu0
      %2062 = vmatprep.mubr.bf16.mxu0 %v1715
      %2063 = vmatmul.mubr.bf16.gmra.mrb[0].mxu0 %v1714
      %v2064 = vpop.f32.mrb[0].mxu0
      %v2065 = vadd.f32 0.0, %v2064
      %v2066 = vpop.f32.mrb[0].mxu0
      %v2067 = vpop.f32.mrb[0].mxu0
      %v2068 = vadd.f32 0.0, %v2067
      %v2069 = vpop.f32.mrb[0].mxu0
      %2070 = vdwg.mxu0
      %2071 = vmatprep.subr.bf16.mxu0 0
      %2072 = vmatpush1.bf16.msra.mxu0 %v1878
      %2073 = vmatprep.subr.bf16.mxu0 0
      %2074 = vmatpush1.bf16.msra.mxu0 %v1879
      %2075 = vmatprep.subr.bf16.mxu0 0
      %2076 = vmatpush1.bf16.msra.mxu0 %v1880
      %2077 = vmatprep.subr.bf16.mxu0 0
      %2078 = vmatpush1.bf16.msra.mxu0 %v1881
      %2079 = vmatprep.subr.bf16.mxu0 0
      %2080 = vmatpush1.bf16.msra.mxu0 %v1882
      %2081 = vmatprep.subr.bf16.mxu0 0
      %2082 = vmatpush1.bf16.msra.mxu0 %v1883
      %2083 = vmatprep.subr.bf16.mxu0 0
      %2084 = vmatpush1.bf16.msra.mxu0 %v1884
      %2085 = vmatprep.subr.bf16.mxu0 0
      %2086 = vmatpush1.bf16.msra.mxu0 %v1885
      %2087 = vmatprep.subr.bf16.mxu0 0
      %2088 = vmatpush1.bf16.msra.mxu0 0
      %2089 = vmatprep.subr.bf16.mxu0 0
      %2090 = vmatpush1.bf16.msra.mxu0 0
      %2091 = vmatprep.subr.bf16.mxu0 0
      %2092 = vmatpush1.bf16.msra.mxu0 0
      %2093 = vmatprep.subr.bf16.mxu0 0
      %2094 = vmatpush1.bf16.msra.mxu0 0
      %2095 = vmatprep.subr.bf16.mxu0 0
      %2096 = vmatpush1.bf16.msra.mxu0 0
      %2097 = vmatprep.subr.bf16.mxu0 0
      %2098 = vmatpush1.bf16.msra.mxu0 0
      %2099 = vmatprep.subr.bf16.mxu0 0
      %2100 = vmatpush1.bf16.msra.mxu0 0
      %2101 = vmatprep.subr.bf16.mxu0 0
      %2102 = vmatpush1.bf16.msra.mxu0 0
      %2103 = vmatprep.mubr.bf16.mxu0 0
      %2104 = vmatmul.mubr.bf16.gmra.mrb[0].mxu0 %v1671
      %v2105 = vpop.f32.mrb[0].mxu0
      %v2106 = vadd.f32 %v1945, %v2105
      %v2107 = vpop.f32.mrb[0].mxu0
      %v2108 = vpop.f32.mrb[0].mxu0
      %v2109 = vadd.f32 %v1948, %v2108
      %v2110 = vpop.f32.mrb[0].mxu0
      %2111 = vmatprep.mubr.bf16.mxu0 0
      %2112 = vmatmul.mubr.bf16.gmra.mrb[0].mxu0 %v1674
      %v2113 = vpop.f32.mrb[0].mxu0
      %v2114 = vadd.f32 %v1953, %v2113
      %v2115 = vpop.f32.mrb[0].mxu0
      %v2116 = vpop.f32.mrb[0].mxu0
      %v2117 = vadd.f32 %v1956, %v2116
      %v2118 = vpop.f32.mrb[0].mxu0
      %2119 = vmatprep.mubr.bf16.mxu0 0
      %2120 = vmatmul.mubr.bf16.gmra.mrb[0].mxu0 %v1677
      %v2121 = vpop.f32.mrb[0].mxu0
      %v2122 = vadd.f32 %v1961, %v2121
      %v2123 = vpop.f32.mrb[0].mxu0
      %v2124 = vpop.f32.mrb[0].mxu0
      %v2125 = vadd.f32 %v1964, %v2124
      %v2126 = vpop.f32.mrb[0].mxu0
      %2127 = vmatprep.mubr.bf16.mxu0 0
      %2128 = vmatmul.mubr.bf16.gmra.mrb[0].mxu0 %v1680
      %v2129 = vpop.f32.mrb[0].mxu0
      %v2130 = vadd.f32 %v1969, %v2129
      %v2131 = vpop.f32.mrb[0].mxu0
      %v2132 = vpop.f32.mrb[0].mxu0
      %v2133 = vadd.f32 %v1972, %v2132
      %v2134 = vpop.f32.mrb[0].mxu0
      %2135 = vmatprep.mubr.bf16.mxu0 0
      %2136 = vmatmul.mubr.bf16.gmra.mrb[0].mxu0 %v1683
      %v2137 = vpop.f32.mrb[0].mxu0
      %v2138 = vadd.f32 %v1977, %v2137
      %v2139 = vpop.f32.mrb[0].mxu0
      %v2140 = vpop.f32.mrb[0].mxu0
      %v2141 = vadd.f32 %v1980, %v2140
      %v2142 = vpop.f32.mrb[0].mxu0
      %2143 = vmatprep.mubr.bf16.mxu0 0
      %2144 = vmatmul.mubr.bf16.gmra.mrb[0].mxu0 %v1686
      %v2145 = vpop.f32.mrb[0].mxu0
      %v2146 = vadd.f32 %v1985, %v2145
      %v2147 = vpop.f32.mrb[0].mxu0
      %v2148 = vpop.f32.mrb[0].mxu0
      %v2149 = vadd.f32 %v1988, %v2148
      %v2150 = vpop.f32.mrb[0].mxu0
      %2151 = vmatprep.mubr.bf16.mxu0 0
      %2152 = vmatmul.mubr.bf16.gmra.mrb[0].mxu0 %v1689
      %v2153 = vpop.f32.mrb[0].mxu0
      %v2154 = vadd.f32 %v1993, %v2153
      %v2155 = vpop.f32.mrb[0].mxu0
      %v2156 = vpop.f32.mrb[0].mxu0
      %v2157 = vadd.f32 %v1996, %v2156
      %v2158 = vpop.f32.mrb[0].mxu0
      %2159 = vmatprep.mubr.bf16.mxu0 0
      %2160 = vmatmul.mubr.bf16.gmra.mrb[0].mxu0 %v1692
      %v2161 = vpop.f32.mrb[0].mxu0
      %v2162 = vadd.f32 %v2001, %v2161
      %v2163 = vpop.f32.mrb[0].mxu0
      %v2164 = vpop.f32.mrb[0].mxu0
      %v2165 = vadd.f32 %v2004, %v2164
      %v2166 = vpop.f32.mrb[0].mxu0
      %2167 = vmatprep.mubr.bf16.mxu0 0
      %2168 = vmatmul.mubr.bf16.gmra.mrb[0].mxu0 %v1695
      %v2169 = vpop.f32.mrb[0].mxu0
      %v2170 = vadd.f32 %v2009, %v2169
      %v2171 = vpop.f32.mrb[0].mxu0
      %v2172 = vpop.f32.mrb[0].mxu0
      %v2173 = vadd.f32 %v2012, %v2172
      %v2174 = vpop.f32.mrb[0].mxu0
      %2175 = vmatprep.mubr.bf16.mxu0 0
      %2176 = vmatmul.mubr.bf16.gmra.mrb[0].mxu0 %v1698
      %v2177 = vpop.f32.mrb[0].mxu0
      %v2178 = vadd.f32 %v2017, %v2177
      %v2179 = vpop.f32.mrb[0].mxu0
      %v2180 = vpop.f32.mrb[0].mxu0
      %v2181 = vadd.f32 %v2020, %v2180
      %v2182 = vpop.f32.mrb[0].mxu0
      %2183 = vmatprep.mubr.bf16.mxu0 0
      %2184 = vmatmul.mubr.bf16.gmra.mrb[0].mxu0 %v1701
      %v2185 = vpop.f32.mrb[0].mxu0
      %v2186 = vadd.f32 %v2025, %v2185
      %v2187 = vpop.f32.mrb[0].mxu0
      %v2188 = vpop.f32.mrb[0].mxu0
      %v2189 = vadd.f32 %v2028, %v2188
      %v2190 = vpop.f32.mrb[0].mxu0
      %2191 = vmatprep.mubr.bf16.mxu0 0
      %2192 = vmatmul.mubr.bf16.gmra.mrb[0].mxu0 %v1704
      %v2193 = vpop.f32.mrb[0].mxu0
      %v2194 = vadd.f32 %v2033, %v2193
      %v2195 = vpop.f32.mrb[0].mxu0
      %v2196 = vpop.f32.mrb[0].mxu0
      %v2197 = vadd.f32 %v2036, %v2196
      %v2198 = vpop.f32.mrb[0].mxu0
      %2199 = vmatprep.mubr.bf16.mxu0 0
      %2200 = vmatmul.mubr.bf16.gmra.mrb[0].mxu0 %v1707
      %v2201 = vpop.f32.mrb[0].mxu0
      %v2202 = vadd.f32 %v2041, %v2201
      %v2203 = vpop.f32.mrb[0].mxu0
      %v2204 = vpop.f32.mrb[0].mxu0
      %v2205 = vadd.f32 %v2044, %v2204
      %v2206 = vpop.f32.mrb[0].mxu0
      %2207 = vmatprep.mubr.bf16.mxu0 0
      %2208 = vmatmul.mubr.bf16.gmra.mrb[0].mxu0 %v1710
      %v2209 = vpop.f32.mrb[0].mxu0
      %v2210 = vadd.f32 %v2049, %v2209
      %v2211 = vpop.f32.mrb[0].mxu0
      %v2212 = vpop.f32.mrb[0].mxu0
      %v2213 = vadd.f32 %v2052, %v2212
      %v2214 = vpop.f32.mrb[0].mxu0
      %2215 = vmatprep.mubr.bf16.mxu0 0
      %2216 = vmatmul.mubr.bf16.gmra.mrb[0].mxu0 %v1713
      %v2217 = vpop.f32.mrb[0].mxu0
      %v2218 = vadd.f32 %v2057, %v2217
      %v2219 = vpop.f32.mrb[0].mxu0
      %v2220 = vpop.f32.mrb[0].mxu0
      %v2221 = vadd.f32 %v2060, %v2220
      %v2222 = vpop.f32.mrb[0].mxu0
      %2223 = vmatprep.mubr.bf16.mxu0 0
      %2224 = vmatmul.mubr.bf16.gmra.mrb[0].mxu0 %v1716
      %v2225 = vpop.f32.mrb[0].mxu0
      %v2226 = vadd.f32 %v2065, %v2225
      %v2227 = vpop.f32.mrb[0].mxu0
      %v2228 = vpop.f32.mrb[0].mxu0
      %v2229 = vadd.f32 %v2068, %v2228
      %v2230 = vpop.f32.mrb[0].mxu0
      %2231 = vdwg.mxu0
      %v2232 = vld [vmem:[#allocation3] sm:$0xff]
      %v2233 = vld [vmem:[#allocation3 + $0x8] sm:$0xff]
      %v2234 = vld [vmem:[#allocation3 + $0x10] sm:$0xff]
      %v2235 = vld [vmem:[#allocation3 + $0x18] sm:$0xff]
      %v2236 = vld [vmem:[#allocation3 + $0x20] sm:$0xff]
      %v2237 = vld [vmem:[#allocation3 + $0x28] sm:$0xff]
      %v2238 = vld [vmem:[#allocation3 + $0x30] sm:$0xff]
      %v2239 = vld [vmem:[#allocation3 + $0x38] sm:$0xff]
      %v2240 = vld [vmem:[#allocation3 + $0x40] sm:$0xff]
      %v2241 = vld [vmem:[#allocation3 + $0x48] sm:$0xff]
      %v2242 = vld [vmem:[#allocation3 + $0x50] sm:$0xff]
      %v2243 = vld [vmem:[#allocation3 + $0x58] sm:$0xff]
      %v2244 = vld [vmem:[#allocation3 + $0x60] sm:$0xff]
      %v2245 = vld [vmem:[#allocation3 + $0x68] sm:$0xff]
      %v2246 = vld [vmem:[#allocation3 + $0x70] sm:$0xff]
      %v2247 = vld [vmem:[#allocation3 + $0x78] sm:$0xff]
      %v2248 = vld [vmem:[#allocation3 + $0x80] sm:$0xff]
      %v2249 = vld [vmem:[#allocation3 + $0x88] sm:$0xff]
      %v2250 = vld [vmem:[#allocation3 + $0x90] sm:$0xff]
      %v2251 = vld [vmem:[#allocation3 + $0x98] sm:$0xff]
      %v2252 = vld [vmem:[#allocation3 + $0xa0] sm:$0xff]
      %v2253 = vld [vmem:[#allocation3 + $0xa8] sm:$0xff]
      %v2254 = vld [vmem:[#allocation3 + $0xb0] sm:$0xff]
      %v2255 = vld [vmem:[#allocation3 + $0xb8] sm:$0xff]
      %v2256 = vld [vmem:[#allocation3 + $0xc0] sm:$0xff]
      %v2257 = vld [vmem:[#allocation3 + $0xc8] sm:$0xff]
      %v2258 = vld [vmem:[#allocation3 + $0xd0] sm:$0xff]
      %v2259 = vld [vmem:[#allocation3 + $0xd8] sm:$0xff]
      %v2260 = vld [vmem:[#allocation3 + $0xe0] sm:$0xff]
      %v2261 = vld [vmem:[#allocation3 + $0xe8] sm:$0xff]
      %v2262 = vld [vmem:[#allocation3 + $0xf0] sm:$0xff]
      %v2263 = vld [vmem:[#allocation3 + $0xf8] sm:$0xff]
      %v2264 = vadd.f32 %v2232, %v2106
      %v2265 = vadd.f32 %v2233, %v2109
      %v2266 = vadd.f32 %v2234, %v2114
      %v2267 = vadd.f32 %v2235, %v2117
      %v2268 = vadd.f32 %v2236, %v2122
      %v2269 = vadd.f32 %v2237, %v2125
      %v2270 = vadd.f32 %v2238, %v2130
      %v2271 = vadd.f32 %v2239, %v2133
      %v2272 = vadd.f32 %v2240, %v2138
      %v2273 = vadd.f32 %v2241, %v2141
      %v2274 = vadd.f32 %v2242, %v2146
      %v2275 = vadd.f32 %v2243, %v2149
      %v2276 = vadd.f32 %v2244, %v2154
      %v2277 = vadd.f32 %v2245, %v2157
      %v2278 = vadd.f32 %v2246, %v2162
      %v2279 = vadd.f32 %v2247, %v2165
      %v2280 = vadd.f32 %v2248, %v2170
      %v2281 = vadd.f32 %v2249, %v2173
      %v2282 = vadd.f32 %v2250, %v2178
      %v2283 = vadd.f32 %v2251, %v2181
      %v2284 = vadd.f32 %v2252, %v2186
      %v2285 = vadd.f32 %v2253, %v2189
      %v2286 = vadd.f32 %v2254, %v2194
      %v2287 = vadd.f32 %v2255, %v2197
      %v2288 = vadd.f32 %v2256, %v2202
      %v2289 = vadd.f32 %v2257, %v2205
      %v2290 = vadd.f32 %v2258, %v2210
      %v2291 = vadd.f32 %v2259, %v2213
      %v2292 = vadd.f32 %v2260, %v2218
      %v2293 = vadd.f32 %v2261, %v2221
      %v2294 = vadd.f32 %v2262, %v2226
      %v2295 = vadd.f32 %v2263, %v2229
      %2296 = vst [vmem:[#allocation3] sm:$0xff] %v2264
      %2297 = vst [vmem:[#allocation3 + $0x8] sm:$0xff] %v2265
      %2298 = vst [vmem:[#allocation3 + $0x10] sm:$0xff] %v2266
      %2299 = vst [vmem:[#allocation3 + $0x18] sm:$0xff] %v2267
      %2300 = vst [vmem:[#allocation3 + $0x20] sm:$0xff] %v2268
      %2301 = vst [vmem:[#allocation3 + $0x28] sm:$0xff] %v2269
      %2302 = vst [vmem:[#allocation3 + $0x30] sm:$0xff] %v2270
      %2303 = vst [vmem:[#allocation3 + $0x38] sm:$0xff] %v2271
      %2304 = vst [vmem:[#allocation3 + $0x40] sm:$0xff] %v2272
      %2305 = vst [vmem:[#allocation3 + $0x48] sm:$0xff] %v2273
      %2306 = vst [vmem:[#allocation3 + $0x50] sm:$0xff] %v2274
      %2307 = vst [vmem:[#allocation3 + $0x58] sm:$0xff] %v2275
      %2308 = vst [vmem:[#allocation3 + $0x60] sm:$0xff] %v2276
      %2309 = vst [vmem:[#allocation3 + $0x68] sm:$0xff] %v2277
      %2310 = vst [vmem:[#allocation3 + $0x70] sm:$0xff] %v2278
      %2311 = vst [vmem:[#allocation3 + $0x78] sm:$0xff] %v2279
      %2312 = vst [vmem:[#allocation3 + $0x80] sm:$0xff] %v2280
      %2313 = vst [vmem:[#allocation3 + $0x88] sm:$0xff] %v2281
      %2314 = vst [vmem:[#allocation3 + $0x90] sm:$0xff] %v2282
      %2315 = vst [vmem:[#allocation3 + $0x98] sm:$0xff] %v2283
      %2316 = vst [vmem:[#allocation3 + $0xa0] sm:$0xff] %v2284
      %2317 = vst [vmem:[#allocation3 + $0xa8] sm:$0xff] %v2285
      %2318 = vst [vmem:[#allocation3 + $0xb0] sm:$0xff] %v2286
      %2319 = vst [vmem:[#allocation3 + $0xb8] sm:$0xff] %v2287
      %2320 = vst [vmem:[#allocation3 + $0xc0] sm:$0xff] %v2288
      %2321 = vst [vmem:[#allocation3 + $0xc8] sm:$0xff] %v2289
      %2322 = vst [vmem:[#allocation3 + $0xd0] sm:$0xff] %v2290
      %2323 = vst [vmem:[#allocation3 + $0xd8] sm:$0xff] %v2291
      %2324 = vst [vmem:[#allocation3 + $0xe0] sm:$0xff] %v2292
      %2325 = vst [vmem:[#allocation3 + $0xe8] sm:$0xff] %v2293
      %2326 = vst [vmem:[#allocation3 + $0xf0] sm:$0xff] %v2294
      %2327 = vst [vmem:[#allocation3 + $0xf8] sm:$0xff] %v2295
      %s2328 = scalar_lea.vmem [#allocation2], 48
      %v2329 = vld [vmem:[%s2328] sm:$0xff]
      %v2330 = vld [vmem:[%s2328 + $0x8] sm:$0xff]
      %v2331 = vld [vmem:[%s2328 + $0x10] sm:$0xff]
      %v2332 = vld [vmem:[%s2328 + $0x18] sm:$0xff]
      %v2333 = vld [vmem:[%s2328 + $0x20] sm:$0xff]
      %v2334 = vld [vmem:[%s2328 + $0x28] sm:$0xff]
      %v2335 = vld [vmem:[%s2328 + $0x30] sm:$0xff]
      %v2336 = vld [vmem:[%s2328 + $0x38] sm:$0xff]
      %v2337 = vld [vmem:[%s2328 + $0x40] sm:$0xff]
      %v2338 = vld [vmem:[%s2328 + $0x48] sm:$0xff]
      %v2339 = vld [vmem:[%s2328 + $0x50] sm:$0xff]
      %v2340 = vld [vmem:[%s2328 + $0x58] sm:$0xff]
      %v2341 = vld [vmem:[%s2328 + $0x60] sm:$0xff]
      %v2342 = vld [vmem:[%s2328 + $0x68] sm:$0xff]
      %v2343 = vld [vmem:[%s2328 + $0x70] sm:$0xff]
      %v2344 = vld [vmem:[%s2328 + $0x78] sm:$0xff]
      %v2345 = vld [vmem:[%s2328 + $0x80] sm:$0xff]
      %v2346 = vld [vmem:[%s2328 + $0x88] sm:$0xff]
      %v2347 = vld [vmem:[%s2328 + $0x90] sm:$0xff]
      %v2348 = vld [vmem:[%s2328 + $0x98] sm:$0xff]
      %v2349 = vld [vmem:[%s2328 + $0xa0] sm:$0xff]
      %v2350 = vld [vmem:[%s2328 + $0xa8] sm:$0xff]
      %v2351 = vld [vmem:[%s2328 + $0xb0] sm:$0xff]
      %v2352 = vld [vmem:[%s2328 + $0xb8] sm:$0xff]
      %v2353 = vld [vmem:[%s2328 + $0xc0] sm:$0xff]
      %v2354 = vld [vmem:[%s2328 + $0xc8] sm:$0xff]
      %v2355 = vld [vmem:[%s2328 + $0xd0] sm:$0xff]
      %v2356 = vld [vmem:[%s2328 + $0xd8] sm:$0xff]
      %v2357 = vld [vmem:[%s2328 + $0xe0] sm:$0xff]
      %v2358 = vld [vmem:[%s2328 + $0xe8] sm:$0xff]
      %v2359 = vld [vmem:[%s2328 + $0xf0] sm:$0xff]
      %v2360 = vld [vmem:[%s2328 + $0xf8] sm:$0xff]
      %v2361 = vld [vmem:[%s2328 + $0x100] sm:$0xff]
      %v2362 = vld [vmem:[%s2328 + $0x108] sm:$0xff]
      %v2363 = vld [vmem:[%s2328 + $0x110] sm:$0xff]
      %v2364 = vld [vmem:[%s2328 + $0x118] sm:$0xff]
      %v2365 = vld [vmem:[%s2328 + $0x120] sm:$0xff]
      %v2366 = vld [vmem:[%s2328 + $0x128] sm:$0xff]
      %v2367 = vld [vmem:[%s2328 + $0x130] sm:$0xff]
      %v2368 = vld [vmem:[%s2328 + $0x138] sm:$0xff]
      %v2369 = vld [vmem:[%s2328 + $0x140] sm:$0xff]
      %v2370 = vld [vmem:[%s2328 + $0x148] sm:$0xff]
      %v2371 = vld [vmem:[%s2328 + $0x150] sm:$0xff]
      %v2372 = vld [vmem:[%s2328 + $0x158] sm:$0xff]
      %v2373 = vld [vmem:[%s2328 + $0x160] sm:$0xff]
      %v2374 = vld [vmem:[%s2328 + $0x168] sm:$0xff]
      %v2375 = vld [vmem:[%s2328 + $0x170] sm:$0xff]
      %v2376 = vld [vmem:[%s2328 + $0x178] sm:$0xff]
      %s2377 = scalar_lea.vmem %s1, 384
      %v2378 = vld [vmem:[%s2377] sm:$0xf]
      %v2379 = vld [vmem:[%s2377 + $0x4] sm:$0xf]
      %v2380 = vld [vmem:[%s2377 + $0x8] sm:$0xf]
      %v2381 = vld [vmem:[%s2377 + $0xc] sm:$0xf]
      %v2382 = vld [vmem:[%s2377 + $0x10] sm:$0xf]
      %v2383 = vld [vmem:[%s2377 + $0x14] sm:$0xf]
      %v2384 = vld [vmem:[%s2377 + $0x18] sm:$0xf]
      %v2385 = vld [vmem:[%s2377 + $0x1c] sm:$0xf]
      %v2386 = vld [vmem:[%s2377 + $0x20] sm:$0xf]
      %v2387 = vld [vmem:[%s2377 + $0x24] sm:$0xf]
      %v2388 = vld [vmem:[%s2377 + $0x28] sm:$0xf]
      %v2389 = vld [vmem:[%s2377 + $0x2c] sm:$0xf]
      %v2390 = vld [vmem:[%s2377 + $0x30] sm:$0xf]
      %v2391 = vld [vmem:[%s2377 + $0x34] sm:$0xf]
      %v2392 = vld [vmem:[%s2377 + $0x38] sm:$0xf]
      %v2393 = vld [vmem:[%s2377 + $0x3c] sm:$0xf]
      %v2394 = vld [vmem:[%s2377 + $0x40] sm:$0xf]
      %v2395 = vld [vmem:[%s2377 + $0x44] sm:$0xf]
      %v2396 = vld [vmem:[%s2377 + $0x48] sm:$0xf]
      %v2397 = vld [vmem:[%s2377 + $0x4c] sm:$0xf]
      %v2398 = vld [vmem:[%s2377 + $0x50] sm:$0xf]
      %v2399 = vld [vmem:[%s2377 + $0x54] sm:$0xf]
      %v2400 = vld [vmem:[%s2377 + $0x58] sm:$0xf]
      %v2401 = vld [vmem:[%s2377 + $0x5c] sm:$0xf]
      %v2402 = vld [vmem:[%s2377 + $0x60] sm:$0xf]
      %v2403 = vld [vmem:[%s2377 + $0x64] sm:$0xf]
      %v2404 = vld [vmem:[%s2377 + $0x68] sm:$0xf]
      %v2405 = vld [vmem:[%s2377 + $0x6c] sm:$0xf]
      %v2406 = vld [vmem:[%s2377 + $0x70] sm:$0xf]
      %v2407 = vld [vmem:[%s2377 + $0x74] sm:$0xf]
      %v2408 = vld [vmem:[%s2377 + $0x78] sm:$0xf]
      %v2409 = vld [vmem:[%s2377 + $0x7c] sm:$0xf]
      %v2410 = vld [vmem:[%s2377 + $0x80] sm:$0xf]
      %v2411 = vld [vmem:[%s2377 + $0x84] sm:$0xf]
      %v2412 = vld [vmem:[%s2377 + $0x88] sm:$0xf]
      %v2413 = vld [vmem:[%s2377 + $0x8c] sm:$0xf]
      %v2414 = vld [vmem:[%s2377 + $0x90] sm:$0xf]
      %v2415 = vld [vmem:[%s2377 + $0x94] sm:$0xf]
      %v2416 = vld [vmem:[%s2377 + $0x98] sm:$0xf]
      %v2417 = vld [vmem:[%s2377 + $0x9c] sm:$0xf]
      %v2418 = vld [vmem:[%s2377 + $0xa0] sm:$0xf]
      %v2419 = vld [vmem:[%s2377 + $0xa4] sm:$0xf]
      %v2420 = vld [vmem:[%s2377 + $0xa8] sm:$0xf]
      %v2421 = vld [vmem:[%s2377 + $0xac] sm:$0xf]
      %v2422 = vld [vmem:[%s2377 + $0xb0] sm:$0xf]
      %v2423 = vld [vmem:[%s2377 + $0xb4] sm:$0xf]
      %v2424 = vld [vmem:[%s2377 + $0xb8] sm:$0xf]
      %v2425 = vld [vmem:[%s2377 + $0xbc] sm:$0xf]
      %v2474 = vunpack.c.l.b16 %v2378
      %v2475 = vunpack.c.l.b16 %v2379
      %v2476 = vunpack.c.l.b16 %v2380
      %v2477 = vunpack.c.l.b16 %v2381
      %v2478 = vunpack.c.l.b16 %v2382
      %v2479 = vunpack.c.l.b16 %v2383
      %v2480 = vunpack.c.l.b16 %v2384
      %v2481 = vunpack.c.l.b16 %v2385
      %v2482 = vunpack.c.l.b16 %v2386
      %v2483 = vunpack.c.l.b16 %v2387
      %v2484 = vunpack.c.l.b16 %v2388
      %v2485 = vunpack.c.l.b16 %v2389
      %v2486 = vunpack.c.l.b16 %v2390
      %v2487 = vunpack.c.l.b16 %v2391
      %v2488 = vunpack.c.l.b16 %v2392
      %v2489 = vunpack.c.l.b16 %v2393
      %v2490 = vunpack.c.l.b16 %v2394
      %v2491 = vunpack.c.l.b16 %v2395
      %v2492 = vunpack.c.l.b16 %v2396
      %v2493 = vunpack.c.l.b16 %v2397
      %v2494 = vunpack.c.l.b16 %v2398
      %v2495 = vunpack.c.l.b16 %v2399
      %v2496 = vunpack.c.l.b16 %v2400
      %v2497 = vunpack.c.l.b16 %v2401
      %v2498 = vunpack.c.l.b16 %v2402
      %v2499 = vunpack.c.l.b16 %v2403
      %v2500 = vunpack.c.l.b16 %v2404
      %v2501 = vunpack.c.l.b16 %v2405
      %v2502 = vunpack.c.l.b16 %v2406
      %v2503 = vunpack.c.l.b16 %v2407
      %v2504 = vunpack.c.l.b16 %v2408
      %v2505 = vunpack.c.l.b16 %v2409
      %v2506 = vunpack.c.l.b16 %v2410
      %v2507 = vunpack.c.l.b16 %v2411
      %v2508 = vunpack.c.l.b16 %v2412
      %v2509 = vunpack.c.l.b16 %v2413
      %v2510 = vunpack.c.l.b16 %v2414
      %v2511 = vunpack.c.l.b16 %v2415
      %v2512 = vunpack.c.l.b16 %v2416
      %v2513 = vunpack.c.l.b16 %v2417
      %v2514 = vunpack.c.l.b16 %v2418
      %v2515 = vunpack.c.l.b16 %v2419
      %v2516 = vunpack.c.l.b16 %v2420
      %v2517 = vunpack.c.l.b16 %v2421
      %v2518 = vunpack.c.l.b16 %v2422
      %v2519 = vunpack.c.l.b16 %v2423
      %v2520 = vunpack.c.l.b16 %v2424
      %v2521 = vunpack.c.l.b16 %v2425
      %v2522 = vpack.c.b16 %v2475, %v2474
      %v2523 = vpack.c.b16 %v2477, %v2476
      %v2524 = vpack.c.b16 %v2479, %v2478
      %v2525 = vpack.c.b16 %v2481, %v2480
      %v2526 = vpack.c.b16 %v2483, %v2482
      %v2527 = vpack.c.b16 %v2485, %v2484
      %v2528 = vpack.c.b16 %v2487, %v2486
      %v2529 = vpack.c.b16 %v2489, %v2488
      %v2530 = vpack.c.b16 %v2491, %v2490
      %v2531 = vpack.c.b16 %v2493, %v2492
      %v2532 = vpack.c.b16 %v2495, %v2494
      %v2533 = vpack.c.b16 %v2497, %v2496
      %v2534 = vpack.c.b16 %v2499, %v2498
      %v2535 = vpack.c.b16 %v2501, %v2500
      %v2536 = vpack.c.b16 %v2503, %v2502
      %v2537 = vpack.c.b16 %v2505, %v2504
      %v2538 = vpack.c.b16 %v2507, %v2506
      %v2539 = vpack.c.b16 %v2509, %v2508
      %v2540 = vpack.c.b16 %v2511, %v2510
      %v2541 = vpack.c.b16 %v2513, %v2512
      %v2542 = vpack.c.b16 %v2515, %v2514
      %v2543 = vpack.c.b16 %v2517, %v2516
      %v2544 = vpack.c.b16 %v2519, %v2518
      %v2545 = vpack.c.b16 %v2521, %v2520
      %2570 = vmatprep.subr.bf16.mxu0 0
      %2571 = vmatpush1.bf16.msra.mxu0 %v2522
      %2572 = vmatprep.subr.bf16.mxu0 0
      %2573 = vmatpush1.bf16.msra.mxu0 %v2523
      %2574 = vmatprep.subr.bf16.mxu0 0
      %2575 = vmatpush1.bf16.msra.mxu0 %v2524
      %2576 = vmatprep.subr.bf16.mxu0 0
      %2577 = vmatpush1.bf16.msra.mxu0 %v2525
      %2578 = vmatprep.subr.bf16.mxu0 0
      %2579 = vmatpush1.bf16.msra.mxu0 %v2526
      %2580 = vmatprep.subr.bf16.mxu0 0
      %2581 = vmatpush1.bf16.msra.mxu0 %v2527
      %2582 = vmatprep.subr.bf16.mxu0 0
      %2583 = vmatpush1.bf16.msra.mxu0 %v2528
      %2584 = vmatprep.subr.bf16.mxu0 0
      %2585 = vmatpush1.bf16.msra.mxu0 %v2529
      %2586 = vmatprep.subr.bf16.mxu0 0
      %2587 = vmatpush1.bf16.msra.mxu0 %v2530
      %2588 = vmatprep.subr.bf16.mxu0 0
      %2589 = vmatpush1.bf16.msra.mxu0 %v2531
      %2590 = vmatprep.subr.bf16.mxu0 0
      %2591 = vmatpush1.bf16.msra.mxu0 %v2532
      %2592 = vmatprep.subr.bf16.mxu0 0
      %2593 = vmatpush1.bf16.msra.mxu0 %v2533
      %2594 = vmatprep.subr.bf16.mxu0 0
      %2595 = vmatpush1.bf16.msra.mxu0 %v2534
      %2596 = vmatprep.subr.bf16.mxu0 0
      %2597 = vmatpush1.bf16.msra.mxu0 %v2535
      %2598 = vmatprep.subr.bf16.mxu0 0
      %2599 = vmatpush1.bf16.msra.mxu0 %v2536
      %2600 = vmatprep.subr.bf16.mxu0 0
      %2601 = vmatpush1.bf16.msra.mxu0 %v2537
      %2602 = vmatprep.mubr.bf16.mxu0 %v2330
      %2603 = vmatmul.mubr.bf16.gmra.mrb[0].mxu0 %v2329
      %v2604 = vpop.f32.mrb[0].mxu0
      %v2605 = vadd.f32 0.0, %v2604
      %v2606 = vpop.f32.mrb[0].mxu0
      %v2607 = vpop.f32.mrb[0].mxu0
      %v2608 = vadd.f32 0.0, %v2607
      %v2609 = vpop.f32.mrb[0].mxu0
      %2610 = vmatprep.mubr.bf16.mxu0 %v2333
      %2611 = vmatmul.mubr.bf16.gmra.mrb[0].mxu0 %v2332
      %v2612 = vpop.f32.mrb[0].mxu0
      %v2613 = vadd.f32 0.0, %v2612
      %v2614 = vpop.f32.mrb[0].mxu0
      %v2615 = vpop.f32.mrb[0].mxu0
      %v2616 = vadd.f32 0.0, %v2615
      %v2617 = vpop.f32.mrb[0].mxu0
      %2618 = vmatprep.mubr.bf16.mxu0 %v2336
      %2619 = vmatmul.mubr.bf16.gmra.mrb[0].mxu0 %v2335
      %v2620 = vpop.f32.mrb[0].mxu0
      %v2621 = vadd.f32 0.0, %v2620
      %v2622 = vpop.f32.mrb[0].mxu0
      %v2623 = vpop.f32.mrb[0].mxu0
      %v2624 = vadd.f32 0.0, %v2623
      %v2625 = vpop.f32.mrb[0].mxu0
      %2626 = vmatprep.mubr.bf16.mxu0 %v2339
      %2627 = vmatmul.mubr.bf16.gmra.mrb[0].mxu0 %v2338
      %v2628 = vpop.f32.mrb[0].mxu0
      %v2629 = vadd.f32 0.0, %v2628
      %v2630 = vpop.f32.mrb[0].mxu0
      %v2631 = vpop.f32.mrb[0].mxu0
      %v2632 = vadd.f32 0.0, %v2631
      %v2633 = vpop.f32.mrb[0].mxu0
      %2634 = vmatprep.mubr.bf16.mxu0 %v2342
      %2635 = vmatmul.mubr.bf16.gmra.mrb[0].mxu0 %v2341
      %v2636 = vpop.f32.mrb[0].mxu0
      %v2637 = vadd.f32 0.0, %v2636
      %v2638 = vpop.f32.mrb[0].mxu0
      %v2639 = vpop.f32.mrb[0].mxu0
      %v2640 = vadd.f32 0.0, %v2639
      %v2641 = vpop.f32.mrb[0].mxu0
      %2642 = vmatprep.mubr.bf16.mxu0 %v2345
      %2643 = vmatmul.mubr.bf16.gmra.mrb[0].mxu0 %v2344
      %v2644 = vpop.f32.mrb[0].mxu0
      %v2645 = vadd.f32 0.0, %v2644
      %v2646 = vpop.f32.mrb[0].mxu0
      %v2647 = vpop.f32.mrb[0].mxu0
      %v2648 = vadd.f32 0.0, %v2647
      %v2649 = vpop.f32.mrb[0].mxu0
      %2650 = vmatprep.mubr.bf16.mxu0 %v2348
      %2651 = vmatmul.mubr.bf16.gmra.mrb[0].mxu0 %v2347
      %v2652 = vpop.f32.mrb[0].mxu0
      %v2653 = vadd.f32 0.0, %v2652
      %v2654 = vpop.f32.mrb[0].mxu0
      %v2655 = vpop.f32.mrb[0].mxu0
      %v2656 = vadd.f32 0.0, %v2655
      %v2657 = vpop.f32.mrb[0].mxu0
      %2658 = vmatprep.mubr.bf16.mxu0 %v2351
      %2659 = vmatmul.mubr.bf16.gmra.mrb[0].mxu0 %v2350
      %v2660 = vpop.f32.mrb[0].mxu0
      %v2661 = vadd.f32 0.0, %v2660
      %v2662 = vpop.f32.mrb[0].mxu0
      %v2663 = vpop.f32.mrb[0].mxu0
      %v2664 = vadd.f32 0.0, %v2663
      %v2665 = vpop.f32.mrb[0].mxu0
      %2666 = vmatprep.mubr.bf16.mxu0 %v2354
      %2667 = vmatmul.mubr.bf16.gmra.mrb[0].mxu0 %v2353
      %v2668 = vpop.f32.mrb[0].mxu0
      %v2669 = vadd.f32 0.0, %v2668
      %v2670 = vpop.f32.mrb[0].mxu0
      %v2671 = vpop.f32.mrb[0].mxu0
      %v2672 = vadd.f32 0.0, %v2671
      %v2673 = vpop.f32.mrb[0].mxu0
      %2674 = vmatprep.mubr.bf16.mxu0 %v2357
      %2675 = vmatmul.mubr.bf16.gmra.mrb[0].mxu0 %v2356
      %v2676 = vpop.f32.mrb[0].mxu0
      %v2677 = vadd.f32 0.0, %v2676
      %v2678 = vpop.f32.mrb[0].mxu0
      %v2679 = vpop.f32.mrb[0].mxu0
      %v2680 = vadd.f32 0.0, %v2679
      %v2681 = vpop.f32.mrb[0].mxu0
      %2682 = vmatprep.mubr.bf16.mxu0 %v2360
      %2683 = vmatmul.mubr.bf16.gmra.mrb[0].mxu0 %v2359
      %v2684 = vpop.f32.mrb[0].mxu0
      %v2685 = vadd.f32 0.0, %v2684
      %v2686 = vpop.f32.mrb[0].mxu0
      %v2687 = vpop.f32.mrb[0].mxu0
      %v2688 = vadd.f32 0.0, %v2687
      %v2689 = vpop.f32.mrb[0].mxu0
      %2690 = vmatprep.mubr.bf16.mxu0 %v2363
      %2691 = vmatmul.mubr.bf16.gmra.mrb[0].mxu0 %v2362
      %v2692 = vpop.f32.mrb[0].mxu0
      %v2693 = vadd.f32 0.0, %v2692
      %v2694 = vpop.f32.mrb[0].mxu0
      %v2695 = vpop.f32.mrb[0].mxu0
      %v2696 = vadd.f32 0.0, %v2695
      %v2697 = vpop.f32.mrb[0].mxu0
      %2698 = vmatprep.mubr.bf16.mxu0 %v2366
      %2699 = vmatmul.mubr.bf16.gmra.mrb[0].mxu0 %v2365
      %v2700 = vpop.f32.mrb[0].mxu0
      %v2701 = vadd.f32 0.0, %v2700
      %v2702 = vpop.f32.mrb[0].mxu0
      %v2703 = vpop.f32.mrb[0].mxu0
      %v2704 = vadd.f32 0.0, %v2703
      %v2705 = vpop.f32.mrb[0].mxu0
      %2706 = vmatprep.mubr.bf16.mxu0 %v2369
      %2707 = vmatmul.mubr.bf16.gmra.mrb[0].mxu0 %v2368
      %v2708 = vpop.f32.mrb[0].mxu0
      %v2709 = vadd.f32 0.0, %v2708
      %v2710 = vpop.f32.mrb[0].mxu0
      %v2711 = vpop.f32.mrb[0].mxu0
      %v2712 = vadd.f32 0.0, %v2711
      %v2713 = vpop.f32.mrb[0].mxu0
      %2714 = vmatprep.mubr.bf16.mxu0 %v2372
      %2715 = vmatmul.mubr.bf16.gmra.mrb[0].mxu0 %v2371
      %v2716 = vpop.f32.mrb[0].mxu0
      %v2717 = vadd.f32 0.0, %v2716
      %v2718 = vpop.f32.mrb[0].mxu0
      %v2719 = vpop.f32.mrb[0].mxu0
      %v2720 = vadd.f32 0.0, %v2719
      %v2721 = vpop.f32.mrb[0].mxu0
      %2722 = vmatprep.mubr.bf16.mxu0 %v2375
      %2723 = vmatmul.mubr.bf16.gmra.mrb[0].mxu0 %v2374
      %v2724 = vpop.f32.mrb[0].mxu0
      %v2725 = vadd.f32 0.0, %v2724
      %v2726 = vpop.f32.mrb[0].mxu0
      %v2727 = vpop.f32.mrb[0].mxu0
      %v2728 = vadd.f32 0.0, %v2727
      %v2729 = vpop.f32.mrb[0].mxu0
      %2730 = vdwg.mxu0
      %2731 = vmatprep.subr.bf16.mxu0 0
      %2732 = vmatpush1.bf16.msra.mxu0 %v2538
      %2733 = vmatprep.subr.bf16.mxu0 0
      %2734 = vmatpush1.bf16.msra.mxu0 %v2539
      %2735 = vmatprep.subr.bf16.mxu0 0
      %2736 = vmatpush1.bf16.msra.mxu0 %v2540
      %2737 = vmatprep.subr.bf16.mxu0 0
      %2738 = vmatpush1.bf16.msra.mxu0 %v2541
      %2739 = vmatprep.subr.bf16.mxu0 0
      %2740 = vmatpush1.bf16.msra.mxu0 %v2542
      %2741 = vmatprep.subr.bf16.mxu0 0
      %2742 = vmatpush1.bf16.msra.mxu0 %v2543
      %2743 = vmatprep.subr.bf16.mxu0 0
      %2744 = vmatpush1.bf16.msra.mxu0 %v2544
      %2745 = vmatprep.subr.bf16.mxu0 0
      %2746 = vmatpush1.bf16.msra.mxu0 %v2545
      %2747 = vmatprep.subr.bf16.mxu0 0
      %2748 = vmatpush1.bf16.msra.mxu0 0
      %2749 = vmatprep.subr.bf16.mxu0 0
      %2750 = vmatpush1.bf16.msra.mxu0 0
      %2751 = vmatprep.subr.bf16.mxu0 0
      %2752 = vmatpush1.bf16.msra.mxu0 0
      %2753 = vmatprep.subr.bf16.mxu0 0
      %2754 = vmatpush1.bf16.msra.mxu0 0
      %2755 = vmatprep.subr.bf16.mxu0 0
      %2756 = vmatpush1.bf16.msra.mxu0 0
      %2757 = vmatprep.subr.bf16.mxu0 0
      %2758 = vmatpush1.bf16.msra.mxu0 0
      %2759 = vmatprep.subr.bf16.mxu0 0
      %2760 = vmatpush1.bf16.msra.mxu0 0
      %2761 = vmatprep.subr.bf16.mxu0 0
      %2762 = vmatpush1.bf16.msra.mxu0 0
      %2763 = vmatprep.mubr.bf16.mxu0 0
      %2764 = vmatmul.mubr.bf16.gmra.mrb[0].mxu0 %v2331
      %v2765 = vpop.f32.mrb[0].mxu0
      %v2766 = vadd.f32 %v2605, %v2765
      %v2767 = vpop.f32.mrb[0].mxu0
      %v2768 = vpop.f32.mrb[0].mxu0
      %v2769 = vadd.f32 %v2608, %v2768
      %v2770 = vpop.f32.mrb[0].mxu0
      %2771 = vmatprep.mubr.bf16.mxu0 0
      %2772 = vmatmul.mubr.bf16.gmra.mrb[0].mxu0 %v2334
      %v2773 = vpop.f32.mrb[0].mxu0
      %v2774 = vadd.f32 %v2613, %v2773
      %v2775 = vpop.f32.mrb[0].mxu0
      %v2776 = vpop.f32.mrb[0].mxu0
      %v2777 = vadd.f32 %v2616, %v2776
      %v2778 = vpop.f32.mrb[0].mxu0
      %2779 = vmatprep.mubr.bf16.mxu0 0
      %2780 = vmatmul.mubr.bf16.gmra.mrb[0].mxu0 %v2337
      %v2781 = vpop.f32.mrb[0].mxu0
      %v2782 = vadd.f32 %v2621, %v2781
      %v2783 = vpop.f32.mrb[0].mxu0
      %v2784 = vpop.f32.mrb[0].mxu0
      %v2785 = vadd.f32 %v2624, %v2784
      %v2786 = vpop.f32.mrb[0].mxu0
      %2787 = vmatprep.mubr.bf16.mxu0 0
      %2788 = vmatmul.mubr.bf16.gmra.mrb[0].mxu0 %v2340
      %v2789 = vpop.f32.mrb[0].mxu0
      %v2790 = vadd.f32 %v2629, %v2789
      %v2791 = vpop.f32.mrb[0].mxu0
      %v2792 = vpop.f32.mrb[0].mxu0
      %v2793 = vadd.f32 %v2632, %v2792
      %v2794 = vpop.f32.mrb[0].mxu0
      %2795 = vmatprep.mubr.bf16.mxu0 0
      %2796 = vmatmul.mubr.bf16.gmra.mrb[0].mxu0 %v2343
      %v2797 = vpop.f32.mrb[0].mxu0
      %v2798 = vadd.f32 %v2637, %v2797
      %v2799 = vpop.f32.mrb[0].mxu0
      %v2800 = vpop.f32.mrb[0].mxu0
      %v2801 = vadd.f32 %v2640, %v2800
      %v2802 = vpop.f32.mrb[0].mxu0
      %2803 = vmatprep.mubr.bf16.mxu0 0
      %2804 = vmatmul.mubr.bf16.gmra.mrb[0].mxu0 %v2346
      %v2805 = vpop.f32.mrb[0].mxu0
      %v2806 = vadd.f32 %v2645, %v2805
      %v2807 = vpop.f32.mrb[0].mxu0
      %v2808 = vpop.f32.mrb[0].mxu0
      %v2809 = vadd.f32 %v2648, %v2808
      %v2810 = vpop.f32.mrb[0].mxu0
      %2811 = vmatprep.mubr.bf16.mxu0 0
      %2812 = vmatmul.mubr.bf16.gmra.mrb[0].mxu0 %v2349
      %v2813 = vpop.f32.mrb[0].mxu0
      %v2814 = vadd.f32 %v2653, %v2813
      %v2815 = vpop.f32.mrb[0].mxu0
      %v2816 = vpop.f32.mrb[0].mxu0
      %v2817 = vadd.f32 %v2656, %v2816
      %v2818 = vpop.f32.mrb[0].mxu0
      %2819 = vmatprep.mubr.bf16.mxu0 0
      %2820 = vmatmul.mubr.bf16.gmra.mrb[0].mxu0 %v2352
      %v2821 = vpop.f32.mrb[0].mxu0
      %v2822 = vadd.f32 %v2661, %v2821
      %v2823 = vpop.f32.mrb[0].mxu0
      %v2824 = vpop.f32.mrb[0].mxu0
      %v2825 = vadd.f32 %v2664, %v2824
      %v2826 = vpop.f32.mrb[0].mxu0
      %2827 = vmatprep.mubr.bf16.mxu0 0
      %2828 = vmatmul.mubr.bf16.gmra.mrb[0].mxu0 %v2355
      %v2829 = vpop.f32.mrb[0].mxu0
      %v2830 = vadd.f32 %v2669, %v2829
      %v2831 = vpop.f32.mrb[0].mxu0
      %v2832 = vpop.f32.mrb[0].mxu0
      %v2833 = vadd.f32 %v2672, %v2832
      %v2834 = vpop.f32.mrb[0].mxu0
      %2835 = vmatprep.mubr.bf16.mxu0 0
      %2836 = vmatmul.mubr.bf16.gmra.mrb[0].mxu0 %v2358
      %v2837 = vpop.f32.mrb[0].mxu0
      %v2838 = vadd.f32 %v2677, %v2837
      %v2839 = vpop.f32.mrb[0].mxu0
      %v2840 = vpop.f32.mrb[0].mxu0
      %v2841 = vadd.f32 %v2680, %v2840
      %v2842 = vpop.f32.mrb[0].mxu0
      %2843 = vmatprep.mubr.bf16.mxu0 0
      %2844 = vmatmul.mubr.bf16.gmra.mrb[0].mxu0 %v2361
      %v2845 = vpop.f32.mrb[0].mxu0
      %v2846 = vadd.f32 %v2685, %v2845
      %v2847 = vpop.f32.mrb[0].mxu0
      %v2848 = vpop.f32.mrb[0].mxu0
      %v2849 = vadd.f32 %v2688, %v2848
      %v2850 = vpop.f32.mrb[0].mxu0
      %2851 = vmatprep.mubr.bf16.mxu0 0
      %2852 = vmatmul.mubr.bf16.gmra.mrb[0].mxu0 %v2364
      %v2853 = vpop.f32.mrb[0].mxu0
      %v2854 = vadd.f32 %v2693, %v2853
      %v2855 = vpop.f32.mrb[0].mxu0
      %v2856 = vpop.f32.mrb[0].mxu0
      %v2857 = vadd.f32 %v2696, %v2856
      %v2858 = vpop.f32.mrb[0].mxu0
      %2859 = vmatprep.mubr.bf16.mxu0 0
      %2860 = vmatmul.mubr.bf16.gmra.mrb[0].mxu0 %v2367
      %v2861 = vpop.f32.mrb[0].mxu0
      %v2862 = vadd.f32 %v2701, %v2861
      %v2863 = vpop.f32.mrb[0].mxu0
      %v2864 = vpop.f32.mrb[0].mxu0
      %v2865 = vadd.f32 %v2704, %v2864
      %v2866 = vpop.f32.mrb[0].mxu0
      %2867 = vmatprep.mubr.bf16.mxu0 0
      %2868 = vmatmul.mubr.bf16.gmra.mrb[0].mxu0 %v2370
      %v2869 = vpop.f32.mrb[0].mxu0
      %v2870 = vadd.f32 %v2709, %v2869
      %v2871 = vpop.f32.mrb[0].mxu0
      %v2872 = vpop.f32.mrb[0].mxu0
      %v2873 = vadd.f32 %v2712, %v2872
      %v2874 = vpop.f32.mrb[0].mxu0
      %2875 = vmatprep.mubr.bf16.mxu0 0
      %2876 = vmatmul.mubr.bf16.gmra.mrb[0].mxu0 %v2373
      %v2877 = vpop.f32.mrb[0].mxu0
      %v2878 = vadd.f32 %v2717, %v2877
      %v2879 = vpop.f32.mrb[0].mxu0
      %v2880 = vpop.f32.mrb[0].mxu0
      %v2881 = vadd.f32 %v2720, %v2880
      %v2882 = vpop.f32.mrb[0].mxu0
      %2883 = vmatprep.mubr.bf16.mxu0 0
      %2884 = vmatmul.mubr.bf16.gmra.mrb[0].mxu0 %v2376
      %v2885 = vpop.f32.mrb[0].mxu0
      %v2886 = vadd.f32 %v2725, %v2885
      %v2887 = vpop.f32.mrb[0].mxu0
      %v2888 = vpop.f32.mrb[0].mxu0
      %v2889 = vadd.f32 %v2728, %v2888
      %v2890 = vpop.f32.mrb[0].mxu0
      %2891 = vdwg.mxu0
      %v2892 = vld [vmem:[#allocation3] sm:$0xff]
      %v2893 = vld [vmem:[#allocation3 + $0x8] sm:$0xff]
      %v2894 = vld [vmem:[#allocation3 + $0x10] sm:$0xff]
      %v2895 = vld [vmem:[#allocation3 + $0x18] sm:$0xff]
      %v2896 = vld [vmem:[#allocation3 + $0x20] sm:$0xff]
      %v2897 = vld [vmem:[#allocation3 + $0x28] sm:$0xff]
      %v2898 = vld [vmem:[#allocation3 + $0x30] sm:$0xff]
      %v2899 = vld [vmem:[#allocation3 + $0x38] sm:$0xff]
      %v2900 = vld [vmem:[#allocation3 + $0x40] sm:$0xff]
      %v2901 = vld [vmem:[#allocation3 + $0x48] sm:$0xff]
      %v2902 = vld [vmem:[#allocation3 + $0x50] sm:$0xff]
      %v2903 = vld [vmem:[#allocation3 + $0x58] sm:$0xff]
      %v2904 = vld [vmem:[#allocation3 + $0x60] sm:$0xff]
      %v2905 = vld [vmem:[#allocation3 + $0x68] sm:$0xff]
      %v2906 = vld [vmem:[#allocation3 + $0x70] sm:$0xff]
      %v2907 = vld [vmem:[#allocation3 + $0x78] sm:$0xff]
      %v2908 = vld [vmem:[#allocation3 + $0x80] sm:$0xff]
      %v2909 = vld [vmem:[#allocation3 + $0x88] sm:$0xff]
      %v2910 = vld [vmem:[#allocation3 + $0x90] sm:$0xff]
      %v2911 = vld [vmem:[#allocation3 + $0x98] sm:$0xff]
      %v2912 = vld [vmem:[#allocation3 + $0xa0] sm:$0xff]
      %v2913 = vld [vmem:[#allocation3 + $0xa8] sm:$0xff]
      %v2914 = vld [vmem:[#allocation3 + $0xb0] sm:$0xff]
      %v2915 = vld [vmem:[#allocation3 + $0xb8] sm:$0xff]
      %v2916 = vld [vmem:[#allocation3 + $0xc0] sm:$0xff]
      %v2917 = vld [vmem:[#allocation3 + $0xc8] sm:$0xff]
      %v2918 = vld [vmem:[#allocation3 + $0xd0] sm:$0xff]
      %v2919 = vld [vmem:[#allocation3 + $0xd8] sm:$0xff]
      %v2920 = vld [vmem:[#allocation3 + $0xe0] sm:$0xff]
      %v2921 = vld [vmem:[#allocation3 + $0xe8] sm:$0xff]
      %v2922 = vld [vmem:[#allocation3 + $0xf0] sm:$0xff]
      %v2923 = vld [vmem:[#allocation3 + $0xf8] sm:$0xff]
      %v2924 = vadd.f32 %v2892, %v2766
      %v2925 = vadd.f32 %v2893, %v2769
      %v2926 = vadd.f32 %v2894, %v2774
      %v2927 = vadd.f32 %v2895, %v2777
      %v2928 = vadd.f32 %v2896, %v2782
      %v2929 = vadd.f32 %v2897, %v2785
      %v2930 = vadd.f32 %v2898, %v2790
      %v2931 = vadd.f32 %v2899, %v2793
      %v2932 = vadd.f32 %v2900, %v2798
      %v2933 = vadd.f32 %v2901, %v2801
      %v2934 = vadd.f32 %v2902, %v2806
      %v2935 = vadd.f32 %v2903, %v2809
      %v2936 = vadd.f32 %v2904, %v2814
      %v2937 = vadd.f32 %v2905, %v2817
      %v2938 = vadd.f32 %v2906, %v2822
      %v2939 = vadd.f32 %v2907, %v2825
      %v2940 = vadd.f32 %v2908, %v2830
      %v2941 = vadd.f32 %v2909, %v2833
      %v2942 = vadd.f32 %v2910, %v2838
      %v2943 = vadd.f32 %v2911, %v2841
      %v2944 = vadd.f32 %v2912, %v2846
      %v2945 = vadd.f32 %v2913, %v2849
      %v2946 = vadd.f32 %v2914, %v2854
      %v2947 = vadd.f32 %v2915, %v2857
      %v2948 = vadd.f32 %v2916, %v2862
      %v2949 = vadd.f32 %v2917, %v2865
      %v2950 = vadd.f32 %v2918, %v2870
      %v2951 = vadd.f32 %v2919, %v2873
      %v2952 = vadd.f32 %v2920, %v2878
      %v2953 = vadd.f32 %v2921, %v2881
      %v2954 = vadd.f32 %v2922, %v2886
      %v2955 = vadd.f32 %v2923, %v2889
      %2956 = vst [vmem:[#allocation3] sm:$0xff] %v2924
      %2957 = vst [vmem:[#allocation3 + $0x8] sm:$0xff] %v2925
      %2958 = vst [vmem:[#allocation3 + $0x10] sm:$0xff] %v2926
      %2959 = vst [vmem:[#allocation3 + $0x18] sm:$0xff] %v2927
      %2960 = vst [vmem:[#allocation3 + $0x20] sm:$0xff] %v2928
      %2961 = vst [vmem:[#allocation3 + $0x28] sm:$0xff] %v2929
      %2962 = vst [vmem:[#allocation3 + $0x30] sm:$0xff] %v2930
      %2963 = vst [vmem:[#allocation3 + $0x38] sm:$0xff] %v2931
      %2964 = vst [vmem:[#allocation3 + $0x40] sm:$0xff] %v2932
      %2965 = vst [vmem:[#allocation3 + $0x48] sm:$0xff] %v2933
      %2966 = vst [vmem:[#allocation3 + $0x50] sm:$0xff] %v2934
      %2967 = vst [vmem:[#allocation3 + $0x58] sm:$0xff] %v2935
      %2968 = vst [vmem:[#allocation3 + $0x60] sm:$0xff] %v2936
      %2969 = vst [vmem:[#allocation3 + $0x68] sm:$0xff] %v2937
      %2970 = vst [vmem:[#allocation3 + $0x70] sm:$0xff] %v2938
      %2971 = vst [vmem:[#allocation3 + $0x78] sm:$0xff] %v2939
      %2972 = vst [vmem:[#allocation3 + $0x80] sm:$0xff] %v2940
      %2973 = vst [vmem:[#allocation3 + $0x88] sm:$0xff] %v2941
      %2974 = vst [vmem:[#allocation3 + $0x90] sm:$0xff] %v2942
      %2975 = vst [vmem:[#allocation3 + $0x98] sm:$0xff] %v2943
      %2976 = vst [vmem:[#allocation3 + $0xa0] sm:$0xff] %v2944
      %2977 = vst [vmem:[#allocation3 + $0xa8] sm:$0xff] %v2945
      %2978 = vst [vmem:[#allocation3 + $0xb0] sm:$0xff] %v2946
      %2979 = vst [vmem:[#allocation3 + $0xb8] sm:$0xff] %v2947
      %2980 = vst [vmem:[#allocation3 + $0xc0] sm:$0xff] %v2948
      %2981 = vst [vmem:[#allocation3 + $0xc8] sm:$0xff] %v2949
      %2982 = vst [vmem:[#allocation3 + $0xd0] sm:$0xff] %v2950
      %2983 = vst [vmem:[#allocation3 + $0xd8] sm:$0xff] %v2951
      %2984 = vst [vmem:[#allocation3 + $0xe0] sm:$0xff] %v2952
      %2985 = vst [vmem:[#allocation3 + $0xe8] sm:$0xff] %v2953
      %2986 = vst [vmem:[#allocation3 + $0xf0] sm:$0xff] %v2954
      %2987 = vst [vmem:[#allocation3 + $0xf8] sm:$0xff] %v2955
      %v2988 = vld [vmem:[%s1668 + $0x8] sm:$0xff]
      %v2989 = vld [vmem:[%s1668 + $0x20] sm:$0xff]
      %v2990 = vld [vmem:[%s1668 + $0x38] sm:$0xff]
      %v2991 = vld [vmem:[%s1668 + $0x50] sm:$0xff]
      %v2992 = vld [vmem:[%s1668 + $0x68] sm:$0xff]
      %v2993 = vld [vmem:[%s1668 + $0x80] sm:$0xff]
      %v2994 = vld [vmem:[%s1668 + $0x98] sm:$0xff]
      %v2995 = vld [vmem:[%s1668 + $0xb0] sm:$0xff]
      %v2996 = vld [vmem:[%s1668 + $0xc8] sm:$0xff]
      %v2997 = vld [vmem:[%s1668 + $0xe0] sm:$0xff]
      %v2998 = vld [vmem:[%s1668 + $0xf8] sm:$0xff]
      %v2999 = vld [vmem:[%s1668 + $0x110] sm:$0xff]
      %v3000 = vld [vmem:[%s1668 + $0x128] sm:$0xff]
      %v3001 = vld [vmem:[%s1668 + $0x140] sm:$0xff]
      %v3002 = vld [vmem:[%s1668 + $0x158] sm:$0xff]
      %v3003 = vld [vmem:[%s1668 + $0x170] sm:$0xff]
      %v3004 = vld [vmem:[#allocation3] sm:$0xff]
      %v3005 = vld [vmem:[#allocation3 + $0x8] sm:$0xff]
      %v3006 = vld [vmem:[#allocation3 + $0x10] sm:$0xff]
      %v3007 = vld [vmem:[#allocation3 + $0x18] sm:$0xff]
      %v3008 = vld [vmem:[#allocation3 + $0x20] sm:$0xff]
      %v3009 = vld [vmem:[#allocation3 + $0x28] sm:$0xff]
      %v3010 = vld [vmem:[#allocation3 + $0x30] sm:$0xff]
      %v3011 = vld [vmem:[#allocation3 + $0x38] sm:$0xff]
      %v3012 = vld [vmem:[#allocation3 + $0x40] sm:$0xff]
      %v3013 = vld [vmem:[#allocation3 + $0x48] sm:$0xff]
      %v3014 = vld [vmem:[#allocation3 + $0x50] sm:$0xff]
      %v3015 = vld [vmem:[#allocation3 + $0x58] sm:$0xff]
      %v3016 = vld [vmem:[#allocation3 + $0x60] sm:$0xff]
      %v3017 = vld [vmem:[#allocation3 + $0x68] sm:$0xff]
      %v3018 = vld [vmem:[#allocation3 + $0x70] sm:$0xff]
      %v3019 = vld [vmem:[#allocation3 + $0x78] sm:$0xff]
      %v3020 = vld [vmem:[#allocation3 + $0x80] sm:$0xff]
      %v3021 = vld [vmem:[#allocation3 + $0x88] sm:$0xff]
      %v3022 = vld [vmem:[#allocation3 + $0x90] sm:$0xff]
      %v3023 = vld [vmem:[#allocation3 + $0x98] sm:$0xff]
      %v3024 = vld [vmem:[#allocation3 + $0xa0] sm:$0xff]
      %v3025 = vld [vmem:[#allocation3 + $0xa8] sm:$0xff]
      %v3026 = vld [vmem:[#allocation3 + $0xb0] sm:$0xff]
      %v3027 = vld [vmem:[#allocation3 + $0xb8] sm:$0xff]
      %v3028 = vld [vmem:[#allocation3 + $0xc0] sm:$0xff]
      %v3029 = vld [vmem:[#allocation3 + $0xc8] sm:$0xff]
      %v3030 = vld [vmem:[#allocation3 + $0xd0] sm:$0xff]
      %v3031 = vld [vmem:[#allocation3 + $0xd8] sm:$0xff]
      %v3032 = vld [vmem:[#allocation3 + $0xe0] sm:$0xff]
      %v3033 = vld [vmem:[#allocation3 + $0xe8] sm:$0xff]
      %v3034 = vld [vmem:[#allocation3 + $0xf0] sm:$0xff]
      %v3035 = vld [vmem:[#allocation3 + $0xf8] sm:$0xff]
      %v3036 = vunpack.c.l.bf16 %v2988
      %v3037 = vunpack.c.h.bf16 %v2988
      %v3038 = vunpack.c.l.bf16 %v2989
      %v3039 = vunpack.c.h.bf16 %v2989
      %v3040 = vunpack.c.l.bf16 %v2990
      %v3041 = vunpack.c.h.bf16 %v2990
      %v3042 = vunpack.c.l.bf16 %v2991
      %v3043 = vunpack.c.h.bf16 %v2991
      %v3044 = vunpack.c.l.bf16 %v2992
      %v3045 = vunpack.c.h.bf16 %v2992
      %v3046 = vunpack.c.l.bf16 %v2993
      %v3047 = vunpack.c.h.bf16 %v2993
      %v3048 = vunpack.c.l.bf16 %v2994
      %v3049 = vunpack.c.h.bf16 %v2994
      %v3050 = vunpack.c.l.bf16 %v2995
      %v3051 = vunpack.c.h.bf16 %v2995
      %v3052 = vunpack.c.l.bf16 %v2996
      %v3053 = vunpack.c.h.bf16 %v2996
      %v3054 = vunpack.c.l.bf16 %v2997
      %v3055 = vunpack.c.h.bf16 %v2997
      %v3056 = vunpack.c.l.bf16 %v2998
      %v3057 = vunpack.c.h.bf16 %v2998
      %v3058 = vunpack.c.l.bf16 %v2999
      %v3059 = vunpack.c.h.bf16 %v2999
      %v3060 = vunpack.c.l.bf16 %v3000
      %v3061 = vunpack.c.h.bf16 %v3000
      %v3062 = vunpack.c.l.bf16 %v3001
      %v3063 = vunpack.c.h.bf16 %v3001
      %v3064 = vunpack.c.l.bf16 %v3002
      %v3065 = vunpack.c.h.bf16 %v3002
      %v3066 = vunpack.c.l.bf16 %v3003
      %v3067 = vunpack.c.h.bf16 %v3003
      %v3068 = vadd.f32 %v3004, %v3036
      %v3069 = vadd.f32 %v3005, %v3037
      %v3070 = vadd.f32 %v3006, %v3038
      %v3071 = vadd.f32 %v3007, %v3039
      %v3072 = vadd.f32 %v3008, %v3040
      %v3073 = vadd.f32 %v3009, %v3041
      %v3074 = vadd.f32 %v3010, %v3042
      %v3075 = vadd.f32 %v3011, %v3043
      %v3076 = vadd.f32 %v3012, %v3044
      %v3077 = vadd.f32 %v3013, %v3045
      %v3078 = vadd.f32 %v3014, %v3046
      %v3079 = vadd.f32 %v3015, %v3047
      %v3080 = vadd.f32 %v3016, %v3048
      %v3081 = vadd.f32 %v3017, %v3049
      %v3082 = vadd.f32 %v3018, %v3050
      %v3083 = vadd.f32 %v3019, %v3051
      %v3084 = vadd.f32 %v3020, %v3052
      %v3085 = vadd.f32 %v3021, %v3053
      %v3086 = vadd.f32 %v3022, %v3054
      %v3087 = vadd.f32 %v3023, %v3055
      %v3088 = vadd.f32 %v3024, %v3056
      %v3089 = vadd.f32 %v3025, %v3057
      %v3090 = vadd.f32 %v3026, %v3058
      %v3091 = vadd.f32 %v3027, %v3059
      %v3092 = vadd.f32 %v3028, %v3060
      %v3093 = vadd.f32 %v3029, %v3061
      %v3094 = vadd.f32 %v3030, %v3062
      %v3095 = vadd.f32 %v3031, %v3063
      %v3096 = vadd.f32 %v3032, %v3064
      %v3097 = vadd.f32 %v3033, %v3065
      %v3098 = vadd.f32 %v3034, %v3066
      %v3099 = vadd.f32 %v3035, %v3067
      %v3100 = vpack.c.bf16 %v3069, %v3068
      %v3101 = vpack.c.bf16 %v3071, %v3070
      %v3102 = vpack.c.bf16 %v3073, %v3072
      %v3103 = vpack.c.bf16 %v3075, %v3074
      %v3104 = vpack.c.bf16 %v3077, %v3076
      %v3105 = vpack.c.bf16 %v3079, %v3078
      %v3106 = vpack.c.bf16 %v3081, %v3080
      %v3107 = vpack.c.bf16 %v3083, %v3082
      %v3108 = vpack.c.bf16 %v3085, %v3084
      %v3109 = vpack.c.bf16 %v3087, %v3086
      %v3110 = vpack.c.bf16 %v3089, %v3088
      %v3111 = vpack.c.bf16 %v3091, %v3090
      %v3112 = vpack.c.bf16 %v3093, %v3092
      %v3113 = vpack.c.bf16 %v3095, %v3094
      %v3114 = vpack.c.bf16 %v3097, %v3096
      %v3115 = vpack.c.bf16 %v3099, %v3098
      %v3132 = vunpack.c.l.b16 %v3100
      %v3133 = vunpack.c.h.b16 %v3100
      %v3134 = vunpack.c.l.b16 %v3101
      %v3135 = vunpack.c.h.b16 %v3101
      %v3136 = vunpack.c.l.b16 %v3102
      %v3137 = vunpack.c.h.b16 %v3102
      %v3138 = vunpack.c.l.b16 %v3103
      %v3139 = vunpack.c.h.b16 %v3103
      %v3140 = vunpack.c.l.b16 %v3104
      %v3141 = vunpack.c.h.b16 %v3104
      %v3142 = vunpack.c.l.b16 %v3105
      %v3143 = vunpack.c.h.b16 %v3105
      %v3144 = vunpack.c.l.b16 %v3106
      %v3145 = vunpack.c.h.b16 %v3106
      %v3146 = vunpack.c.l.b16 %v3107
      %v3147 = vunpack.c.h.b16 %v3107
      %v3148 = vunpack.c.l.b16 %v3108
      %v3149 = vunpack.c.h.b16 %v3108
      %v3150 = vunpack.c.l.b16 %v3109
      %v3151 = vunpack.c.h.b16 %v3109
      %v3152 = vunpack.c.l.b16 %v3110
      %v3153 = vunpack.c.h.b16 %v3110
      %v3154 = vunpack.c.l.b16 %v3111
      %v3155 = vunpack.c.h.b16 %v3111
      %v3156 = vunpack.c.l.b16 %v3112
      %v3157 = vunpack.c.h.b16 %v3112
      %v3158 = vunpack.c.l.b16 %v3113
      %v3159 = vunpack.c.h.b16 %v3113
      %v3160 = vunpack.c.l.b16 %v3114
      %v3161 = vunpack.c.h.b16 %v3114
      %v3162 = vunpack.c.l.b16 %v3115
      %v3163 = vunpack.c.h.b16 %v3115
      %v3164 = vpack.c.b16 %v3132, %v3132
      %v3165 = vpack.c.b16 %v3133, %v3133
      %v3166 = vpack.c.b16 %v3134, %v3134
      %v3167 = vpack.c.b16 %v3135, %v3135
      %v3168 = vpack.c.b16 %v3136, %v3136
      %v3169 = vpack.c.b16 %v3137, %v3137
      %v3170 = vpack.c.b16 %v3138, %v3138
      %v3171 = vpack.c.b16 %v3139, %v3139
      %v3172 = vpack.c.b16 %v3140, %v3140
      %v3173 = vpack.c.b16 %v3141, %v3141
      %v3174 = vpack.c.b16 %v3142, %v3142
      %v3175 = vpack.c.b16 %v3143, %v3143
      %v3176 = vpack.c.b16 %v3144, %v3144
      %v3177 = vpack.c.b16 %v3145, %v3145
      %v3178 = vpack.c.b16 %v3146, %v3146
      %v3179 = vpack.c.b16 %v3147, %v3147
      %v3180 = vpack.c.b16 %v3148, %v3148
      %v3181 = vpack.c.b16 %v3149, %v3149
      %v3182 = vpack.c.b16 %v3150, %v3150
      %v3183 = vpack.c.b16 %v3151, %v3151
      %v3184 = vpack.c.b16 %v3152, %v3152
      %v3185 = vpack.c.b16 %v3153, %v3153
      %v3186 = vpack.c.b16 %v3154, %v3154
      %v3187 = vpack.c.b16 %v3155, %v3155
      %v3188 = vpack.c.b16 %v3156, %v3156
      %v3189 = vpack.c.b16 %v3157, %v3157
      %v3190 = vpack.c.b16 %v3158, %v3158
      %v3191 = vpack.c.b16 %v3159, %v3159
      %v3192 = vpack.c.b16 %v3160, %v3160
      %v3193 = vpack.c.b16 %v3161, %v3161
      %v3194 = vpack.c.b16 %v3162, %v3162
      %v3195 = vpack.c.b16 %v3163, %v3163
      %3228 = vst [vmem:[%s165] sm:$0xf] %v3164
      %3229 = vst [vmem:[%s165 + $0x4] sm:$0xf] %v3165
      %3230 = vst [vmem:[%s165 + $0x8] sm:$0xf] %v3166
      %3231 = vst [vmem:[%s165 + $0xc] sm:$0xf] %v3167
      %3232 = vst [vmem:[%s165 + $0x10] sm:$0xf] %v3168
      %3233 = vst [vmem:[%s165 + $0x14] sm:$0xf] %v3169
      %3234 = vst [vmem:[%s165 + $0x18] sm:$0xf] %v3170
      %3235 = vst [vmem:[%s165 + $0x1c] sm:$0xf] %v3171
      %3236 = vst [vmem:[%s165 + $0x20] sm:$0xf] %v3172
      %3237 = vst [vmem:[%s165 + $0x24] sm:$0xf] %v3173
      %3238 = vst [vmem:[%s165 + $0x28] sm:$0xf] %v3174
      %3239 = vst [vmem:[%s165 + $0x2c] sm:$0xf] %v3175
      %3240 = vst [vmem:[%s165 + $0x30] sm:$0xf] %v3176
      %3241 = vst [vmem:[%s165 + $0x34] sm:$0xf] %v3177
      %3242 = vst [vmem:[%s165 + $0x38] sm:$0xf] %v3178
      %3243 = vst [vmem:[%s165 + $0x3c] sm:$0xf] %v3179
      %3244 = vst [vmem:[%s165 + $0x40] sm:$0xf] %v3180
      %3245 = vst [vmem:[%s165 + $0x44] sm:$0xf] %v3181
      %3246 = vst [vmem:[%s165 + $0x48] sm:$0xf] %v3182
      %3247 = vst [vmem:[%s165 + $0x4c] sm:$0xf] %v3183
      %3248 = vst [vmem:[%s165 + $0x50] sm:$0xf] %v3184
      %3249 = vst [vmem:[%s165 + $0x54] sm:$0xf] %v3185
      %3250 = vst [vmem:[%s165 + $0x58] sm:$0xf] %v3186
      %3251 = vst [vmem:[%s165 + $0x5c] sm:$0xf] %v3187
      %3252 = vst [vmem:[%s165 + $0x60] sm:$0xf] %v3188
      %3253 = vst [vmem:[%s165 + $0x64] sm:$0xf] %v3189
      %3254 = vst [vmem:[%s165 + $0x68] sm:$0xf] %v3190
      %3255 = vst [vmem:[%s165 + $0x6c] sm:$0xf] %v3191
      %3256 = vst [vmem:[%s165 + $0x70] sm:$0xf] %v3192
      %3257 = vst [vmem:[%s165 + $0x74] sm:$0xf] %v3193
      %3258 = vst [vmem:[%s165 + $0x78] sm:$0xf] %v3194
      %3259 = vst [vmem:[%s165 + $0x7c] sm:$0xf] %v3195
      %s3260 = smul.u32 32, %s18
      %p3261 = scmp.lt.s32.totalorder %s17, 1
      %s3262 = scalar_select %p3261, %s17, 1
      %p3263 = scmp.lt.s32.totalorder %s3260, 31
      %s3264 = scalar_select %p3263, %s3260, 31
      %s3265 = smul.addr %s3262, 32
      %s3266 = sadd.s32 %s3264, %s3265
      %s3267 = smul.addr %s3266, 4
      %s3268 = scalar_lea.vmem %s2, %s3267
      // Predicated region
      $region29: #{residual_recurrent_group_forward.1} parent=27 // pred_check
        %p3269 = pneg %p92
      $region30: #{residual_recurrent_group_forward.1} parent=27 // pred_check_branch
        %3271 = sbr.rel (%p3269) target = $region32
      $region31: #{residual_recurrent_group_forward.1} parent=27 // pred_region
        %s3272 = smul.u32 32, %s18
      $region32: #{residual_recurrent_group_forward.1} parent=27 // pred_fallthru
        _
    $region28: #{residual_recurrent_group_forward.1} parent=5 // pred_fallthru
      _
    %p3273 = scmp.le.s32.totalorder 2, %s8
    // Predicated region
    $region33: #{residual_recurrent_group_forward.1} parent=5 // pred_check
      %p3274 = pneg %p3273
    $region34: #{residual_recurrent_group_forward.1} parent=5 // pred_check_branch
      %3276 = sbr.rel (%p3274) target = $region36
    $region35: #{residual_recurrent_group_forward.1} parent=5 // pred_region
      %s3277 = ssub.s32 %s8, 2
      // Predicated region
      $region37: #{residual_recurrent_group_forward.1} parent=35 // pred_check
        %p3278 = pneg %p98
      $region38: #{residual_recurrent_group_forward.1} parent=35 // pred_check_branch
        %3280 = sbr.rel (%p3278) target = $region40
      $region39: #{residual_recurrent_group_forward.1} parent=35 // pred_region
        %s3281 = smul.u32 32, %s20
        %p3282 = scmp.lt.s32.totalorder %s19, 1
        %s3283 = scalar_select %p3282, %s19, 1
        %p3284 = scmp.lt.s32.totalorder %s3281, 31
        %s3285 = scalar_select %p3284, %s3281, 31
        %s3286 = smul.addr %s3283, 32
        %s3287 = sadd.s32 %s3285, %s3286
        %s3288 = smul.addr %s3287, 4
        %s3289 = scalar_lea.vmem %s2, %s3288
      $region40: #{residual_recurrent_group_forward.1} parent=35 // pred_fallthru
        _
    $region36: #{residual_recurrent_group_forward.1} parent=5 // pred_fallthru
      _
  $region6: #{residual_recurrent_group_forward.1} parent=0 // loop_footer
    %s12 = sadd.s32 1, %s8
  $region7: #{residual_recurrent_group_forward.1} parent=0 // loop_footer_branch
    %7 = sbr.rel target = $region3
  $region8: #{residual_recurrent_group_forward.1} parent=0 // loop_exit
    _

</llo_original>
